<compile_context>
chip_gen: v7x
topology: tpu7x:2x2x1
jax: 0.10.0
libtpu: 0.0.40
codegen_flags: <defaults>
</compile_context>

<pallas_src>
import numpy as np
import jax
import jax.numpy as jnp
from jax.experimental import pallas as pl
from jax.experimental.pallas import tpu as pltpu

SIGMA = 0.1
SIGMA_COLOR = -0.5 * SIGMA * SIGMA  # -0.005
_SENTINEL = -100000                 # row/col value for padded flat positions
_LANES = 128

# 12 unique (dh, dw) offsets; each corresponds to two identical terms in the
# PyTorch module (squared / abs differences are symmetric), hence the final x2.
OFFSETS = [
    (1, 0), (0, 1), (1, 1), (1, -1),
    (2, 0), (0, 2), (2, 1), (2, -1),
    (1, 2), (1, -2), (2, 2), (2, -2),
]


def _make_kernel(W, n_pad, tb):
    shifts = [dh * W + dw for dh, dw in OFFSETS]   # all > 0 for W >= 3
    nr = n_pad // _LANES

    def kernel(row_ref, col_ref, x_ref, y_ref, out_ref):
        # row_ref / col_ref : (1, n_pad) int32 -- h / w index of each flat
        #                     position (padded positions carry _SENTINEL).
        # x_ref : (tb, Ci, n_pad)  "input"  images of this batch group.
        # y_ref : (tb, Co, n_pad)  "output" images of this batch group.
        # out_ref: (1, 24, 128) f32 lane partials:
        #          rows [0,12)  -> per-lane-residue sum of w
        #          rows [12,24) -> per-lane-residue sum of sum_c |d_out|
        row_idx = row_ref[...]
        col_idx = col_ref[...]

        for k, ((dh, dw), s) in enumerate(zip(OFFSETS, shifts)):
            # Roll the index maps with the same primitive as the data.  Flat
            # position i is a valid member of this offset's pair set iff its
            # rolled partner sits exactly (dh, dw) away (in either direction,
            # so the rotate sign convention does not matter).  Wrap-around and
            # zero-padding can never satisfy either equality.
            r_rolled = pltpu.roll(row_idx, shift=s, axis=1)
            c_rolled = pltpu.roll(col_idx, shift=s, axis=1)
            mask = ((r_rolled == row_idx - dh) & (c_rolled == col_idx - dw)) | (
                (r_rolled == row_idx + dh) & (c_rolled == col_idx + dw))

            w_acc = jnp.zeros((1, n_pad), jnp.float32)
            n_acc = jnp.zeros((1, n_pad), jnp.float32)
            for t in range(tb):
                x = x_ref[t]                                    # (Ci, n_pad)
                y = y_ref[t]                                    # (Co, n_pad)
                # Differences in the native dtype (bf16 VPU on v6e/v7x);
                # accumulation and exp stay in f32 (v5e has no bf16 EUP).
                dx = (x - pltpu.roll(x, shift=s, axis=1)).astype(jnp.float32)
                dy = (y - pltpu.roll(y, shift=s, axis=1)).astype(jnp.float32)
                d2 = jnp.sum(dx * dx, axis=0, keepdims=True)    # (1, n_pad)
                w_acc = w_acc + jnp.where(mask, jnp.exp(d2 * SIGMA_COLOR), 0.0)
                n_acc = n_acc + jnp.where(
                    mask, jnp.sum(jnp.abs(dy), axis=0, keepdims=True), 0.0)

            # Fold the flat axis down to 128 lanes using tile-aligned slices
            # (no relayout); the cross-lane sum happens in the JAX epilogue.
            w_fold = w_acc[:, 0:_LANES]
            n_fold = n_acc[:, 0:_LANES]
            for r in range(1, nr):
                w_fold = w_fold + w_acc[:, r * _LANES:(r + 1) * _LANES]
                n_fold = n_fold + n_acc[:, r * _LANES:(r + 1) * _LANES]
            out_ref[0, k:k + 1, :] = w_fold
            out_ref[0, 12 + k:13 + k, :] = n_fold

    return kernel


def smooth_loss(inp, outp):
    """inp, outp: (B, C, H, W). Returns the scalar float32 SmoothLoss."""
    B, Ci, H, W = inp.shape
    Bo, Co, Ho, Wo = outp.shape
    assert (B, H, W) == (Bo, Ho, Wo), "input/output batch+spatial dims must match"
    assert H >= 3 and W >= 3, "SmoothLoss needs at least a 3x3 image"

    n = H * W
    n_pad = max(_LANES, ((n + _LANES - 1) // _LANES) * _LANES)

    # Flatten spatial dims onto the lane axis (lane-dense even when W < 128).
    x = inp.reshape(B, Ci, n)
    y = outp.reshape(B, Co, n)
    if n_pad != n:
        x = jnp.pad(x, ((0, 0), (0, 0), (0, n_pad - n)))
        y = jnp.pad(y, ((0, 0), (0, 0), (0, n_pad - n)))

    # Static per-flat-position row / column index maps (sentinel in the pad).
    rowmap = np.full((1, n_pad), _SENTINEL, np.int32)
    colmap = np.full((1, n_pad), _SENTINEL, np.int32)
    rowmap[0, :n] = np.repeat(np.arange(H, dtype=np.int32), W)
    colmap[0, :n] = np.tile(np.arange(W, dtype=np.int32), H)
    rowmap = jnp.asarray(rowmap)
    colmap = jnp.asarray(colmap)

    # Pack several batch elements per grid step for small images (amortizes the
    # ~0.35us fixed per-step overhead); large images stay at one per step.
    itemsize = jnp.dtype(inp.dtype).itemsize
    per_image = max(Ci, Co) * n_pad * itemsize
    tb = 1
    for cand in range(B, 0, -1):
        if B % cand == 0 and cand * per_image <= (1 << 20):
            tb = cand
            break
    groups = B // tb

    kernel = _make_kernel(W, n_pad, tb)

    flops = int(12 * B * n_pad * (3 * Ci + 3 * Co + 8))
    transcendentals = int(12 * B * n_pad)
    bytes_accessed = int(x.size * itemsize + y.size * itemsize
                         + 2 * n_pad * 4 + groups * 24 * _LANES * 4)

    partials = pl.pallas_call(
        kernel,
        out_shape=jax.ShapeDtypeStruct((groups, 24, _LANES), jnp.float32),
        grid=(groups,),
        in_specs=[
            pl.BlockSpec((1, n_pad), lambda g: (0, 0)),           # rowmap
            pl.BlockSpec((1, n_pad), lambda g: (0, 0)),           # colmap
            pl.BlockSpec((tb, Ci, n_pad), lambda g: (g, 0, 0)),   # input
            pl.BlockSpec((tb, Co, n_pad), lambda g: (g, 0, 0)),   # output img
        ],
        out_specs=pl.BlockSpec((1, 24, _LANES), lambda g: (g, 0, 0)),
        compiler_params=pltpu.CompilerParams(
            dimension_semantics=("parallel",),      # shard batch groups on v7x
        ),
        cost_estimate=pl.CostEstimate(
            flops=flops,
            transcendentals=transcendentals,
            bytes_accessed=bytes_accessed,
        ),
    )(rowmap, colmap, x, y)

    # Tiny JAX epilogue: cross-lane + cross-group sums, static denominators
    # (B*H'*W' for w, B*C_out*H'*W' for the output L1 norm), then sum and x2
    # (each offset appears twice in the torch module).
    w_sums = jnp.sum(partials[:, :12, :], axis=(0, 2))   # (12,)
    n_sums = jnp.sum(partials[:, 12:, :], axis=(0, 2))   # (12,)
    cnt_w = jnp.array([B * (H - dh) * (W - abs(dw)) for dh, dw in OFFSETS],
                      jnp.float32)
    cnt_n = jnp.array([B * Co * (H - dh) * (W - abs(dw)) for dh, dw in OFFSETS],
                      jnp.float32)
    return 2.0 * jnp.sum((w_sums / cnt_w) * (n_sums / cnt_n))


# ----------------------------------------------------------------------------
# Literal pure-JAX reference (all 24 terms, transcribed from the torch module).
_S = slice(None)
_PAIRS = [
    ((slice(1, None), _S), (slice(None, -1), _S)),
    ((slice(None, -1), _S), (slice(1, None), _S)),
    ((_S, slice(1, None)), (_S, slice(None, -1))),
    ((_S, slice(None, -1)), (_S, slice(1, None))),
    ((slice(None, -1), slice(None, -1)), (slice(1, None), slice(1, None))),
    ((slice(1, None), slice(1, None)), (slice(None, -1), slice(None, -1))),
    ((slice(1, None), slice(None, -1)), (slice(None, -1), slice(1, None))),
    ((slice(None, -1), slice(1, None)), (slice(1, None), slice(None, -1))),
    ((slice(2, None), _S), (slice(None, -2), _S)),
    ((slice(None, -2), _S), (slice(2, None), _S)),
    ((_S, slice(2, None)), (_S, slice(None, -2))),
    ((_S, slice(None, -2)), (_S, slice(2, None))),
    ((slice(None, -2), slice(None, -1)), (slice(2, None), slice(1, None))),
    ((slice(2, None), slice(1, None)), (slice(None, -2), slice(None, -1))),
    ((slice(2, None), slice(None, -1)), (slice(None, -2), slice(1, None))),
    ((slice(None, -2), slice(1, None)), (slice(2, None), slice(None, -1))),
    ((slice(None, -1), slice(None, -2)), (slice(1, None), slice(2, None))),
    ((slice(1, None), slice(2, None)), (slice(None, -1), slice(None, -2))),
    ((slice(1, None), slice(None, -2)), (slice(None, -1), slice(2, None))),
    ((slice(None, -1), slice(2, None)), (slice(1, None), slice(None, -2))),
    ((slice(None, -2), slice(None, -2)), (slice(2, None), slice(2, None))),
    ((slice(2, None), slice(2, None)), (slice(None, -2), slice(None, -2))),
    ((slice(2, None), slice(None, -2)), (slice(None, -2), slice(2, None))),
    ((slice(None, -2), slice(2, None)), (slice(2, None), slice(None, -2))),
]


def smooth_loss_ref(inp, outp):
    x = inp.astype(jnp.float32)
    y = outp.astype(jnp.float32)
    total = jnp.float32(0.0)
    for (sa, sb) in _PAIRS:
        ia = x[:, :, sa[0], sa[1]]
        ib = x[:, :, sb[0], sb[1]]
        oa = y[:, :, sa[0], sa[1]]
        ob = y[:, :, sb[0], sb[1]]
        w = jnp.exp(jnp.sum((ia - ib) ** 2, axis=1, keepdims=True) * SIGMA_COLOR)
        nrm = jnp.mean(jnp.abs(oa - ob))
        total = total + jnp.mean(w * nrm)
    return total


if __name__ == "__main__":
    key = jax.random.PRNGKey(0)
    k1, k2 = jax.random.split(key)
    B, C, H, W = 2, 3, 16, 16
    inp = jax.random.uniform(k1, (B, C, H, W), dtype=jnp.float32)
    outp = jax.random.uniform(k2, (B, C, H, W), dtype=jnp.float32)

    loss = jax.block_until_ready(smooth_loss(inp, outp))
    ref = jax.block_until_ready(smooth_loss_ref(inp, outp))

    assert jnp.allclose(loss, ref, rtol=1e-5, atol=1e-5), (loss, ref)
    print("KERNEL_OK")
</pallas_src>

<mosaic_0001>
module attributes {stable_mosaic.version = 11 : i64} {
  func.func @kernel(%arg0: i32, %arg1: memref<1x256xi32, #tpu.memory_space<vmem>>, %arg2: memref<1x256xi32, #tpu.memory_space<vmem>>, %arg3: memref<2x3x256xf32, #tpu.memory_space<vmem>>, %arg4: memref<2x3x256xf32, #tpu.memory_space<vmem>>, %arg5: memref<1x24x128xf32, #tpu.memory_space<vmem>>) attributes {dimension_semantics = [#tpu.dimension_semantics<parallel>], iteration_bounds = array<i64: 1>, scalar_prefetch = 0 : i64, scratch_operands = 0 : i64, tpu.core_type = #tpu.core_type<tc>, window_params = [{pipeline_mode = #tpu.pipeline_mode<synchronous>, transform_indices = @transform_0, window_bounds = array<i64: 1, 256>}, {pipeline_mode = #tpu.pipeline_mode<synchronous>, transform_indices = @transform_1, window_bounds = array<i64: 1, 256>}, {transform_indices = @transform_2, window_bounds = array<i64: 2, 3, 256>}, {transform_indices = @transform_3, window_bounds = array<i64: 2, 3, 256>}, {transform_indices = @transform_4, window_bounds = array<i64: 1, 24, 128>}]} {
    %c0 = arith.constant 0 : index
    %c0_0 = arith.constant 0 : index
    %0 = vector.load %arg1[%c0, %c0_0] : memref<1x256xi32, #tpu.memory_space<vmem>>, vector<1x256xi32>
    %c0_1 = arith.constant 0 : index
    %c0_2 = arith.constant 0 : index
    %1 = vector.load %arg2[%c0_1, %c0_2] : memref<1x256xi32, #tpu.memory_space<vmem>>, vector<1x256xi32>
    %c16_i32 = arith.constant 16 : i32
    %2 = tpu.dynamic_rotate %0 by %c16_i32 dim 1 : vector<1x256xi32>, i32 -> vector<1x256xi32>
    %c16_i32_3 = arith.constant 16 : i32
    %3 = tpu.dynamic_rotate %1 by %c16_i32_3 dim 1 : vector<1x256xi32>, i32 -> vector<1x256xi32>
    %c1_i32 = arith.constant 1 : i32
    %4 = vector.broadcast %c1_i32 : i32 to vector<1x256xi32>
    %5 = arith.subi %0, %4 : vector<1x256xi32>
    %6 = arith.cmpi eq, %2, %5 : vector<1x256xi32>
    %c0_i32 = arith.constant 0 : i32
    %7 = vector.broadcast %c0_i32 : i32 to vector<1x256xi32>
    %8 = arith.subi %1, %7 : vector<1x256xi32>
    %9 = arith.cmpi eq, %3, %8 : vector<1x256xi32>
    %10 = arith.andi %6, %9 : vector<1x256xi1>
    %c1_i32_4 = arith.constant 1 : i32
    %11 = vector.broadcast %c1_i32_4 : i32 to vector<1x256xi32>
    %12 = arith.addi %0, %11 : vector<1x256xi32>
    %13 = arith.cmpi eq, %2, %12 : vector<1x256xi32>
    %c0_i32_5 = arith.constant 0 : i32
    %14 = vector.broadcast %c0_i32_5 : i32 to vector<1x256xi32>
    %15 = arith.addi %1, %14 : vector<1x256xi32>
    %16 = arith.cmpi eq, %3, %15 : vector<1x256xi32>
    %17 = arith.andi %13, %16 : vector<1x256xi1>
    %18 = arith.ori %10, %17 : vector<1x256xi1>
    %cst = arith.constant 0.000000e+00 : f32
    %19 = vector.broadcast %cst : f32 to vector<1x256xf32>
    %cst_6 = arith.constant 0.000000e+00 : f32
    %20 = vector.broadcast %cst_6 : f32 to vector<1x256xf32>
    %c0_7 = arith.constant 0 : index
    %c0_8 = arith.constant 0 : index
    %c0_9 = arith.constant 0 : index
    %21 = vector.load %arg3[%c0_7, %c0_8, %c0_9] : memref<2x3x256xf32, #tpu.memory_space<vmem>>, vector<1x3x256xf32>
    %22 = vector.shape_cast %21 : vector<1x3x256xf32> to vector<3x256xf32>
    %c0_10 = arith.constant 0 : index
    %c0_11 = arith.constant 0 : index
    %c0_12 = arith.constant 0 : index
    %23 = vector.load %arg4[%c0_10, %c0_11, %c0_12] : memref<2x3x256xf32, #tpu.memory_space<vmem>>, vector<1x3x256xf32>
    %24 = vector.shape_cast %23 : vector<1x3x256xf32> to vector<3x256xf32>
    %c16_i32_13 = arith.constant 16 : i32
    %25 = tpu.dynamic_rotate %22 by %c16_i32_13 dim 1 : vector<3x256xf32>, i32 -> vector<3x256xf32>
    %26 = arith.subf %22, %25 : vector<3x256xf32>
    %c16_i32_14 = arith.constant 16 : i32
    %27 = tpu.dynamic_rotate %24 by %c16_i32_14 dim 1 : vector<3x256xf32>, i32 -> vector<3x256xf32>
    %28 = arith.subf %24, %27 : vector<3x256xf32>
    %29 = arith.mulf %26, %26 : vector<3x256xf32>
    %cst_15 = arith.constant dense<0.000000e+00> : vector<256xf32>
    %30 = vector.multi_reduction <add>, %29, %cst_15 [0] : vector<3x256xf32> to vector<256xf32>
    %31 = vector.shape_cast %30 : vector<256xf32> to vector<1x256xf32>
    %cst_16 = arith.constant -5.000000e-03 : f32
    %32 = vector.broadcast %cst_16 : f32 to vector<1x256xf32>
    %33 = arith.mulf %31, %32 : vector<1x256xf32>
    %34 = math.exp %33 : vector<1x256xf32>
    %cst_17 = arith.constant 0.000000e+00 : f32
    %35 = vector.broadcast %cst_17 : f32 to vector<1x256xf32>
    %36 = arith.select %18, %34, %35 : vector<1x256xi1>, vector<1x256xf32>
    %37 = arith.addf %19, %36 : vector<1x256xf32>
    %38 = math.absf %28 : vector<3x256xf32>
    %cst_18 = arith.constant dense<0.000000e+00> : vector<256xf32>
    %39 = vector.multi_reduction <add>, %38, %cst_18 [0] : vector<3x256xf32> to vector<256xf32>
    %40 = vector.shape_cast %39 : vector<256xf32> to vector<1x256xf32>
    %cst_19 = arith.constant 0.000000e+00 : f32
    %41 = vector.broadcast %cst_19 : f32 to vector<1x256xf32>
    %42 = arith.select %18, %40, %41 : vector<1x256xi1>, vector<1x256xf32>
    %43 = arith.addf %20, %42 : vector<1x256xf32>
    %c1 = arith.constant 1 : index
    %c0_20 = arith.constant 0 : index
    %c0_21 = arith.constant 0 : index
    %44 = vector.load %arg3[%c1, %c0_20, %c0_21] : memref<2x3x256xf32, #tpu.memory_space<vmem>>, vector<1x3x256xf32>
    %45 = vector.shape_cast %44 : vector<1x3x256xf32> to vector<3x256xf32>
    %c1_22 = arith.constant 1 : index
    %c0_23 = arith.constant 0 : index
    %c0_24 = arith.constant 0 : index
    %46 = vector.load %arg4[%c1_22, %c0_23, %c0_24] : memref<2x3x256xf32, #tpu.memory_space<vmem>>, vector<1x3x256xf32>
    %47 = vector.shape_cast %46 : vector<1x3x256xf32> to vector<3x256xf32>
    %c16_i32_25 = arith.constant 16 : i32
    %48 = tpu.dynamic_rotate %45 by %c16_i32_25 dim 1 : vector<3x256xf32>, i32 -> vector<3x256xf32>
    %49 = arith.subf %45, %48 : vector<3x256xf32>
    %c16_i32_26 = arith.constant 16 : i32
    %50 = tpu.dynamic_rotate %47 by %c16_i32_26 dim 1 : vector<3x256xf32>, i32 -> vector<3x256xf32>
    %51 = arith.subf %47, %50 : vector<3x256xf32>
    %52 = arith.mulf %49, %49 : vector<3x256xf32>
    %cst_27 = arith.constant dense<0.000000e+00> : vector<256xf32>
    %53 = vector.multi_reduction <add>, %52, %cst_27 [0] : vector<3x256xf32> to vector<256xf32>
    %54 = vector.shape_cast %53 : vector<256xf32> to vector<1x256xf32>
    %cst_28 = arith.constant -5.000000e-03 : f32
    %55 = vector.broadcast %cst_28 : f32 to vector<1x256xf32>
    %56 = arith.mulf %54, %55 : vector<1x256xf32>
    %57 = math.exp %56 : vector<1x256xf32>
    %cst_29 = arith.constant 0.000000e+00 : f32
    %58 = vector.broadcast %cst_29 : f32 to vector<1x256xf32>
    %59 = arith.select %18, %57, %58 : vector<1x256xi1>, vector<1x256xf32>
    %60 = arith.addf %37, %59 : vector<1x256xf32>
    %61 = math.absf %51 : vector<3x256xf32>
    %cst_30 = arith.constant dense<0.000000e+00> : vector<256xf32>
    %62 = vector.multi_reduction <add>, %61, %cst_30 [0] : vector<3x256xf32> to vector<256xf32>
    %63 = vector.shape_cast %62 : vector<256xf32> to vector<1x256xf32>
    %cst_31 = arith.constant 0.000000e+00 : f32
    %64 = vector.broadcast %cst_31 : f32 to vector<1x256xf32>
    %65 = arith.select %18, %63, %64 : vector<1x256xi1>, vector<1x256xf32>
    %66 = arith.addf %43, %65 : vector<1x256xf32>
    %67 = vector.extract_strided_slice %60 {offsets = [0, 0], sizes = [1, 128], strides = [1, 1]} : vector<1x256xf32> to vector<1x128xf32>
    %68 = vector.extract_strided_slice %66 {offsets = [0, 0], sizes = [1, 128], strides = [1, 1]} : vector<1x256xf32> to vector<1x128xf32>
    %69 = vector.extract_strided_slice %60 {offsets = [0, 128], sizes = [1, 128], strides = [1, 1]} : vector<1x256xf32> to vector<1x128xf32>
    %70 = arith.addf %67, %69 : vector<1x128xf32>
    %71 = vector.extract_strided_slice %66 {offsets = [0, 128], sizes = [1, 128], strides = [1, 1]} : vector<1x256xf32> to vector<1x128xf32>
    %72 = arith.addf %68, %71 : vector<1x128xf32>
    %c0_32 = arith.constant 0 : index
    %c0_33 = arith.constant 0 : index
    %c0_34 = arith.constant 0 : index
    %73 = vector.load %arg5[%c0_32, %c0_33, %c0_34] : memref<1x24x128xf32, #tpu.memory_space<vmem>>, vector<1x1x128xf32>
    %74 = vector.shape_cast %73 : vector<1x1x128xf32> to vector<1x128xf32>
    %75 = vector.shape_cast %70 : vector<1x128xf32> to vector<1x1x128xf32>
    tpu.vector_store %arg5[%c0_32, %c0_33, %c0_34], %75 {strides = array<i32>} : memref<1x24x128xf32, #tpu.memory_space<vmem>>, vector<1x1x128xf32>,
    %c0_35 = arith.constant 0 : index
    %c12 = arith.constant 12 : index
    %c0_36 = arith.constant 0 : index
    %76 = vector.load %arg5[%c0_35, %c12, %c0_36] : memref<1x24x128xf32, #tpu.memory_space<vmem>>, vector<1x1x128xf32>
    %77 = vector.shape_cast %76 : vector<1x1x128xf32> to vector<1x128xf32>
    %78 = vector.shape_cast %72 : vector<1x128xf32> to vector<1x1x128xf32>
    tpu.vector_store %arg5[%c0_35, %c12, %c0_36], %78 {strides = array<i32>} : memref<1x24x128xf32, #tpu.memory_space<vmem>>, vector<1x1x128xf32>,
    %c1_i32_37 = arith.constant 1 : i32
    %79 = tpu.dynamic_rotate %0 by %c1_i32_37 dim 1 : vector<1x256xi32>, i32 -> vector<1x256xi32>
    %c1_i32_38 = arith.constant 1 : i32
    %80 = tpu.dynamic_rotate %1 by %c1_i32_38 dim 1 : vector<1x256xi32>, i32 -> vector<1x256xi32>
    %c0_i32_39 = arith.constant 0 : i32
    %81 = vector.broadcast %c0_i32_39 : i32 to vector<1x256xi32>
    %82 = arith.subi %0, %81 : vector<1x256xi32>
    %83 = arith.cmpi eq, %79, %82 : vector<1x256xi32>
    %c1_i32_40 = arith.constant 1 : i32
    %84 = vector.broadcast %c1_i32_40 : i32 to vector<1x256xi32>
    %85 = arith.subi %1, %84 : vector<1x256xi32>
    %86 = arith.cmpi eq, %80, %85 : vector<1x256xi32>
    %87 = arith.andi %83, %86 : vector<1x256xi1>
    %c0_i32_41 = arith.constant 0 : i32
    %88 = vector.broadcast %c0_i32_41 : i32 to vector<1x256xi32>
    %89 = arith.addi %0, %88 : vector<1x256xi32>
    %90 = arith.cmpi eq, %79, %89 : vector<1x256xi32>
    %c1_i32_42 = arith.constant 1 : i32
    %91 = vector.broadcast %c1_i32_42 : i32 to vector<1x256xi32>
    %92 = arith.addi %1, %91 : vector<1x256xi32>
    %93 = arith.cmpi eq, %80, %92 : vector<1x256xi32>
    %94 = arith.andi %90, %93 : vector<1x256xi1>
    %95 = arith.ori %87, %94 : vector<1x256xi1>
    %cst_43 = arith.constant 0.000000e+00 : f32
    %96 = vector.broadcast %cst_43 : f32 to vector<1x256xf32>
    %cst_44 = arith.constant 0.000000e+00 : f32
    %97 = vector.broadcast %cst_44 : f32 to vector<1x256xf32>
    %c0_45 = arith.constant 0 : index
    %c0_46 = arith.constant 0 : index
    %c0_47 = arith.constant 0 : index
    %98 = vector.load %arg3[%c0_45, %c0_46, %c0_47] : memref<2x3x256xf32, #tpu.memory_space<vmem>>, vector<1x3x256xf32>
    %99 = vector.shape_cast %98 : vector<1x3x256xf32> to vector<3x256xf32>
    %c0_48 = arith.constant 0 : index
    %c0_49 = arith.constant 0 : index
    %c0_50 = arith.constant 0 : index
    %100 = vector.load %arg4[%c0_48, %c0_49, %c0_50] : memref<2x3x256xf32, #tpu.memory_space<vmem>>, vector<1x3x256xf32>
    %101 = vector.shape_cast %100 : vector<1x3x256xf32> to vector<3x256xf32>
    %c1_i32_51 = arith.constant 1 : i32
    %102 = tpu.dynamic_rotate %99 by %c1_i32_51 dim 1 : vector<3x256xf32>, i32 -> vector<3x256xf32>
    %103 = arith.subf %99, %102 : vector<3x256xf32>
    %c1_i32_52 = arith.constant 1 : i32
    %104 = tpu.dynamic_rotate %101 by %c1_i32_52 dim 1 : vector<3x256xf32>, i32 -> vector<3x256xf32>
    %105 = arith.subf %101, %104 : vector<3x256xf32>
    %106 = arith.mulf %103, %103 : vector<3x256xf32>
    %cst_53 = arith.constant dense<0.000000e+00> : vector<256xf32>
    %107 = vector.multi_reduction <add>, %106, %cst_53 [0] : vector<3x256xf32> to vector<256xf32>
    %108 = vector.shape_cast %107 : vector<256xf32> to vector<1x256xf32>
    %cst_54 = arith.constant -5.000000e-03 : f32
    %109 = vector.broadcast %cst_54 : f32 to vector<1x256xf32>
    %110 = arith.mulf %108, %109 : vector<1x256xf32>
    %111 = math.exp %110 : vector<1x256xf32>
    %cst_55 = arith.constant 0.000000e+00 : f32
    %112 = vector.broadcast %cst_55 : f32 to vector<1x256xf32>
    %113 = arith.select %95, %111, %112 : vector<1x256xi1>, vector<1x256xf32>
    %114 = arith.addf %96, %113 : vector<1x256xf32>
    %115 = math.absf %105 : vector<3x256xf32>
    %cst_56 = arith.constant dense<0.000000e+00> : vector<256xf32>
    %116 = vector.multi_reduction <add>, %115, %cst_56 [0] : vector<3x256xf32> to vector<256xf32>
    %117 = vector.shape_cast %116 : vector<256xf32> to vector<1x256xf32>
    %cst_57 = arith.constant 0.000000e+00 : f32
    %118 = vector.broadcast %cst_57 : f32 to vector<1x256xf32>
    %119 = arith.select %95, %117, %118 : vector<1x256xi1>, vector<1x256xf32>
    %120 = arith.addf %97, %119 : vector<1x256xf32>
    %c1_58 = arith.constant 1 : index
    %c0_59 = arith.constant 0 : index
    %c0_60 = arith.constant 0 : index
    %121 = vector.load %arg3[%c1_58, %c0_59, %c0_60] : memref<2x3x256xf32, #tpu.memory_space<vmem>>, vector<1x3x256xf32>
    %122 = vector.shape_cast %121 : vector<1x3x256xf32> to vector<3x256xf32>
    %c1_61 = arith.constant 1 : index
    %c0_62 = arith.constant 0 : index
    %c0_63 = arith.constant 0 : index
    %123 = vector.load %arg4[%c1_61, %c0_62, %c0_63] : memref<2x3x256xf32, #tpu.memory_space<vmem>>, vector<1x3x256xf32>
    %124 = vector.shape_cast %123 : vector<1x3x256xf32> to vector<3x256xf32>
    %c1_i32_64 = arith.constant 1 : i32
    %125 = tpu.dynamic_rotate %122 by %c1_i32_64 dim 1 : vector<3x256xf32>, i32 -> vector<3x256xf32>
    %126 = arith.subf %122, %125 : vector<3x256xf32>
    %c1_i32_65 = arith.constant 1 : i32
    %127 = tpu.dynamic_rotate %124 by %c1_i32_65 dim 1 : vector<3x256xf32>, i32 -> vector<3x256xf32>
    %128 = arith.subf %124, %127 : vector<3x256xf32>
    %129 = arith.mulf %126, %126 : vector<3x256xf32>
    %cst_66 = arith.constant dense<0.000000e+00> : vector<256xf32>
    %130 = vector.multi_reduction <add>, %129, %cst_66 [0] : vector<3x256xf32> to vector<256xf32>
    %131 = vector.shape_cast %130 : vector<256xf32> to vector<1x256xf32>
    %cst_67 = arith.constant -5.000000e-03 : f32
    %132 = vector.broadcast %cst_67 : f32 to vector<1x256xf32>
    %133 = arith.mulf %131, %132 : vector<1x256xf32>
    %134 = math.exp %133 : vector<1x256xf32>
    %cst_68 = arith.constant 0.000000e+00 : f32
    %135 = vector.broadcast %cst_68 : f32 to vector<1x256xf32>
    %136 = arith.select %95, %134, %135 : vector<1x256xi1>, vector<1x256xf32>
    %137 = arith.addf %114, %136 : vector<1x256xf32>
    %138 = math.absf %128 : vector<3x256xf32>
    %cst_69 = arith.constant dense<0.000000e+00> : vector<256xf32>
    %139 = vector.multi_reduction <add>, %138, %cst_69 [0] : vector<3x256xf32> to vector<256xf32>
    %140 = vector.shape_cast %139 : vector<256xf32> to vector<1x256xf32>
    %cst_70 = arith.constant 0.000000e+00 : f32
    %141 = vector.broadcast %cst_70 : f32 to vector<1x256xf32>
    %142 = arith.select %95, %140, %141 : vector<1x256xi1>, vector<1x256xf32>
    %143 = arith.addf %120, %142 : vector<1x256xf32>
    %144 = vector.extract_strided_slice %137 {offsets = [0, 0], sizes = [1, 128], strides = [1, 1]} : vector<1x256xf32> to vector<1x128xf32>
    %145 = vector.extract_strided_slice %143 {offsets = [0, 0], sizes = [1, 128], strides = [1, 1]} : vector<1x256xf32> to vector<1x128xf32>
    %146 = vector.extract_strided_slice %137 {offsets = [0, 128], sizes = [1, 128], strides = [1, 1]} : vector<1x256xf32> to vector<1x128xf32>
    %147 = arith.addf %144, %146 : vector<1x128xf32>
    %148 = vector.extract_strided_slice %143 {offsets = [0, 128], sizes = [1, 128], strides = [1, 1]} : vector<1x256xf32> to vector<1x128xf32>
    %149 = arith.addf %145, %148 : vector<1x128xf32>
    %c0_71 = arith.constant 0 : index
    %c1_72 = arith.constant 1 : index
    %c0_73 = arith.constant 0 : index
    %150 = vector.load %arg5[%c0_71, %c1_72, %c0_73] : memref<1x24x128xf32, #tpu.memory_space<vmem>>, vector<1x1x128xf32>
    %151 = vector.shape_cast %150 : vector<1x1x128xf32> to vector<1x128xf32>
    %152 = vector.shape_cast %147 : vector<1x128xf32> to vector<1x1x128xf32>
    tpu.vector_store %arg5[%c0_71, %c1_72, %c0_73], %152 {strides = array<i32>} : memref<1x24x128xf32, #tpu.memory_space<vmem>>, vector<1x1x128xf32>,
    %c0_74 = arith.constant 0 : index
    %c13 = arith.constant 13 : index
    %c0_75 = arith.constant 0 : index
    %153 = vector.load %arg5[%c0_74, %c13, %c0_75] : memref<1x24x128xf32, #tpu.memory_space<vmem>>, vector<1x1x128xf32>
    %154 = vector.shape_cast %153 : vector<1x1x128xf32> to vector<1x128xf32>
    %155 = vector.shape_cast %149 : vector<1x128xf32> to vector<1x1x128xf32>
    tpu.vector_store %arg5[%c0_74, %c13, %c0_75], %155 {strides = array<i32>} : memref<1x24x128xf32, #tpu.memory_space<vmem>>, vector<1x1x128xf32>,
    %c17_i32 = arith.constant 17 : i32
    %156 = tpu.dynamic_rotate %0 by %c17_i32 dim 1 : vector<1x256xi32>, i32 -> vector<1x256xi32>
    %c17_i32_76 = arith.constant 17 : i32
    %157 = tpu.dynamic_rotate %1 by %c17_i32_76 dim 1 : vector<1x256xi32>, i32 -> vector<1x256xi32>
    %c1_i32_77 = arith.constant 1 : i32
    %158 = vector.broadcast %c1_i32_77 : i32 to vector<1x256xi32>
    %159 = arith.subi %0, %158 : vector<1x256xi32>
    %160 = arith.cmpi eq, %156, %159 : vector<1x256xi32>
    %c1_i32_78 = arith.constant 1 : i32
    %161 = vector.broadcast %c1_i32_78 : i32 to vector<1x256xi32>
    %162 = arith.subi %1, %161 : vector<1x256xi32>
    %163 = arith.cmpi eq, %157, %162 : vector<1x256xi32>
    %164 = arith.andi %160, %163 : vector<1x256xi1>
    %c1_i32_79 = arith.constant 1 : i32
    %165 = vector.broadcast %c1_i32_79 : i32 to vector<1x256xi32>
    %166 = arith.addi %0, %165 : vector<1x256xi32>
    %167 = arith.cmpi eq, %156, %166 : vector<1x256xi32>
    %c1_i32_80 = arith.constant 1 : i32
    %168 = vector.broadcast %c1_i32_80 : i32 to vector<1x256xi32>
    %169 = arith.addi %1, %168 : vector<1x256xi32>
    %170 = arith.cmpi eq, %157, %169 : vector<1x256xi32>
    %171 = arith.andi %167, %170 : vector<1x256xi1>
    %172 = arith.ori %164, %171 : vector<1x256xi1>
    %cst_81 = arith.constant 0.000000e+00 : f32
    %173 = vector.broadcast %cst_81 : f32 to vector<1x256xf32>
    %cst_82 = arith.constant 0.000000e+00 : f32
    %174 = vector.broadcast %cst_82 : f32 to vector<1x256xf32>
    %c0_83 = arith.constant 0 : index
    %c0_84 = arith.constant 0 : index
    %c0_85 = arith.constant 0 : index
    %175 = vector.load %arg3[%c0_83, %c0_84, %c0_85] : memref<2x3x256xf32, #tpu.memory_space<vmem>>, vector<1x3x256xf32>
    %176 = vector.shape_cast %175 : vector<1x3x256xf32> to vector<3x256xf32>
    %c0_86 = arith.constant 0 : index
    %c0_87 = arith.constant 0 : index
    %c0_88 = arith.constant 0 : index
    %177 = vector.load %arg4[%c0_86, %c0_87, %c0_88] : memref<2x3x256xf32, #tpu.memory_space<vmem>>, vector<1x3x256xf32>
    %178 = vector.shape_cast %177 : vector<1x3x256xf32> to vector<3x256xf32>
    %c17_i32_89 = arith.constant 17 : i32
    %179 = tpu.dynamic_rotate %176 by %c17_i32_89 dim 1 : vector<3x256xf32>, i32 -> vector<3x256xf32>
    %180 = arith.subf %176, %179 : vector<3x256xf32>
    %c17_i32_90 = arith.constant 17 : i32
    %181 = tpu.dynamic_rotate %178 by %c17_i32_90 dim 1 : vector<3x256xf32>, i32 -> vector<3x256xf32>
    %182 = arith.subf %178, %181 : vector<3x256xf32>
    %183 = arith.mulf %180, %180 : vector<3x256xf32>
    %cst_91 = arith.constant dense<0.000000e+00> : vector<256xf32>
    %184 = vector.multi_reduction <add>, %183, %cst_91 [0] : vector<3x256xf32> to vector<256xf32>
    %185 = vector.shape_cast %184 : vector<256xf32> to vector<1x256xf32>
    %cst_92 = arith.constant -5.000000e-03 : f32
    %186 = vector.broadcast %cst_92 : f32 to vector<1x256xf32>
    %187 = arith.mulf %185, %186 : vector<1x256xf32>
    %188 = math.exp %187 : vector<1x256xf32>
    %cst_93 = arith.constant 0.000000e+00 : f32
    %189 = vector.broadcast %cst_93 : f32 to vector<1x256xf32>
    %190 = arith.select %172, %188, %189 : vector<1x256xi1>, vector<1x256xf32>
    %191 = arith.addf %173, %190 : vector<1x256xf32>
    %192 = math.absf %182 : vector<3x256xf32>
    %cst_94 = arith.constant dense<0.000000e+00> : vector<256xf32>
    %193 = vector.multi_reduction <add>, %192, %cst_94 [0] : vector<3x256xf32> to vector<256xf32>
    %194 = vector.shape_cast %193 : vector<256xf32> to vector<1x256xf32>
    %cst_95 = arith.constant 0.000000e+00 : f32
    %195 = vector.broadcast %cst_95 : f32 to vector<1x256xf32>
    %196 = arith.select %172, %194, %195 : vector<1x256xi1>, vector<1x256xf32>
    %197 = arith.addf %174, %196 : vector<1x256xf32>
    %c1_96 = arith.constant 1 : index
    %c0_97 = arith.constant 0 : index
    %c0_98 = arith.constant 0 : index
    %198 = vector.load %arg3[%c1_96, %c0_97, %c0_98] : memref<2x3x256xf32, #tpu.memory_space<vmem>>, vector<1x3x256xf32>
    %199 = vector.shape_cast %198 : vector<1x3x256xf32> to vector<3x256xf32>
    %c1_99 = arith.constant 1 : index
    %c0_100 = arith.constant 0 : index
    %c0_101 = arith.constant 0 : index
    %200 = vector.load %arg4[%c1_99, %c0_100, %c0_101] : memref<2x3x256xf32, #tpu.memory_space<vmem>>, vector<1x3x256xf32>
    %201 = vector.shape_cast %200 : vector<1x3x256xf32> to vector<3x256xf32>
    %c17_i32_102 = arith.constant 17 : i32
    %202 = tpu.dynamic_rotate %199 by %c17_i32_102 dim 1 : vector<3x256xf32>, i32 -> vector<3x256xf32>
    %203 = arith.subf %199, %202 : vector<3x256xf32>
    %c17_i32_103 = arith.constant 17 : i32
    %204 = tpu.dynamic_rotate %201 by %c17_i32_103 dim 1 : vector<3x256xf32>, i32 -> vector<3x256xf32>
    %205 = arith.subf %201, %204 : vector<3x256xf32>
    %206 = arith.mulf %203, %203 : vector<3x256xf32>
    %cst_104 = arith.constant dense<0.000000e+00> : vector<256xf32>
    %207 = vector.multi_reduction <add>, %206, %cst_104 [0] : vector<3x256xf32> to vector<256xf32>
    %208 = vector.shape_cast %207 : vector<256xf32> to vector<1x256xf32>
    %cst_105 = arith.constant -5.000000e-03 : f32
    %209 = vector.broadcast %cst_105 : f32 to vector<1x256xf32>
    %210 = arith.mulf %208, %209 : vector<1x256xf32>
    %211 = math.exp %210 : vector<1x256xf32>
    %cst_106 = arith.constant 0.000000e+00 : f32
    %212 = vector.broadcast %cst_106 : f32 to vector<1x256xf32>
    %213 = arith.select %172, %211, %212 : vector<1x256xi1>, vector<1x256xf32>
    %214 = arith.addf %191, %213 : vector<1x256xf32>
    %215 = math.absf %205 : vector<3x256xf32>
    %cst_107 = arith.constant dense<0.000000e+00> : vector<256xf32>
    %216 = vector.multi_reduction <add>, %215, %cst_107 [0] : vector<3x256xf32> to vector<256xf32>
    %217 = vector.shape_cast %216 : vector<256xf32> to vector<1x256xf32>
    %cst_108 = arith.constant 0.000000e+00 : f32
    %218 = vector.broadcast %cst_108 : f32 to vector<1x256xf32>
    %219 = arith.select %172, %217, %218 : vector<1x256xi1>, vector<1x256xf32>
    %220 = arith.addf %197, %219 : vector<1x256xf32>
    %221 = vector.extract_strided_slice %214 {offsets = [0, 0], sizes = [1, 128], strides = [1, 1]} : vector<1x256xf32> to vector<1x128xf32>
    %222 = vector.extract_strided_slice %220 {offsets = [0, 0], sizes = [1, 128], strides = [1, 1]} : vector<1x256xf32> to vector<1x128xf32>
    %223 = vector.extract_strided_slice %214 {offsets = [0, 128], sizes = [1, 128], strides = [1, 1]} : vector<1x256xf32> to vector<1x128xf32>
    %224 = arith.addf %221, %223 : vector<1x128xf32>
    %225 = vector.extract_strided_slice %220 {offsets = [0, 128], sizes = [1, 128], strides = [1, 1]} : vector<1x256xf32> to vector<1x128xf32>
    %226 = arith.addf %222, %225 : vector<1x128xf32>
    %c0_109 = arith.constant 0 : index
    %c2 = arith.constant 2 : index
    %c0_110 = arith.constant 0 : index
    %227 = vector.load %arg5[%c0_109, %c2, %c0_110] : memref<1x24x128xf32, #tpu.memory_space<vmem>>, vector<1x1x128xf32>
    %228 = vector.shape_cast %227 : vector<1x1x128xf32> to vector<1x128xf32>
    %229 = vector.shape_cast %224 : vector<1x128xf32> to vector<1x1x128xf32>
    tpu.vector_store %arg5[%c0_109, %c2, %c0_110], %229 {strides = array<i32>} : memref<1x24x128xf32, #tpu.memory_space<vmem>>, vector<1x1x128xf32>,
    %c0_111 = arith.constant 0 : index
    %c14 = arith.constant 14 : index
    %c0_112 = arith.constant 0 : index
    %230 = vector.load %arg5[%c0_111, %c14, %c0_112] : memref<1x24x128xf32, #tpu.memory_space<vmem>>, vector<1x1x128xf32>
    %231 = vector.shape_cast %230 : vector<1x1x128xf32> to vector<1x128xf32>
    %232 = vector.shape_cast %226 : vector<1x128xf32> to vector<1x1x128xf32>
    tpu.vector_store %arg5[%c0_111, %c14, %c0_112], %232 {strides = array<i32>} : memref<1x24x128xf32, #tpu.memory_space<vmem>>, vector<1x1x128xf32>,
    %c15_i32 = arith.constant 15 : i32
    %233 = tpu.dynamic_rotate %0 by %c15_i32 dim 1 : vector<1x256xi32>, i32 -> vector<1x256xi32>
    %c15_i32_113 = arith.constant 15 : i32
    %234 = tpu.dynamic_rotate %1 by %c15_i32_113 dim 1 : vector<1x256xi32>, i32 -> vector<1x256xi32>
    %c1_i32_114 = arith.constant 1 : i32
    %235 = vector.broadcast %c1_i32_114 : i32 to vector<1x256xi32>
    %236 = arith.subi %0, %235 : vector<1x256xi32>
    %237 = arith.cmpi eq, %233, %236 : vector<1x256xi32>
    %c-1_i32 = arith.constant -1 : i32
    %238 = vector.broadcast %c-1_i32 : i32 to vector<1x256xi32>
    %239 = arith.subi %1, %238 : vector<1x256xi32>
    %240 = arith.cmpi eq, %234, %239 : vector<1x256xi32>
    %241 = arith.andi %237, %240 : vector<1x256xi1>
    %c1_i32_115 = arith.constant 1 : i32
    %242 = vector.broadcast %c1_i32_115 : i32 to vector<1x256xi32>
    %243 = arith.addi %0, %242 : vector<1x256xi32>
    %244 = arith.cmpi eq, %233, %243 : vector<1x256xi32>
    %c-1_i32_116 = arith.constant -1 : i32
    %245 = vector.broadcast %c-1_i32_116 : i32 to vector<1x256xi32>
    %246 = arith.addi %1, %245 : vector<1x256xi32>
    %247 = arith.cmpi eq, %234, %246 : vector<1x256xi32>
    %248 = arith.andi %244, %247 : vector<1x256xi1>
    %249 = arith.ori %241, %248 : vector<1x256xi1>
    %cst_117 = arith.constant 0.000000e+00 : f32
    %250 = vector.broadcast %cst_117 : f32 to vector<1x256xf32>
    %cst_118 = arith.constant 0.000000e+00 : f32
    %251 = vector.broadcast %cst_118 : f32 to vector<1x256xf32>
    %c0_119 = arith.constant 0 : index
    %c0_120 = arith.constant 0 : index
    %c0_121 = arith.constant 0 : index
    %252 = vector.load %arg3[%c0_119, %c0_120, %c0_121] : memref<2x3x256xf32, #tpu.memory_space<vmem>>, vector<1x3x256xf32>
    %253 = vector.shape_cast %252 : vector<1x3x256xf32> to vector<3x256xf32>
    %c0_122 = arith.constant 0 : index
    %c0_123 = arith.constant 0 : index
    %c0_124 = arith.constant 0 : index
    %254 = vector.load %arg4[%c0_122, %c0_123, %c0_124] : memref<2x3x256xf32, #tpu.memory_space<vmem>>, vector<1x3x256xf32>
    %255 = vector.shape_cast %254 : vector<1x3x256xf32> to vector<3x256xf32>
    %c15_i32_125 = arith.constant 15 : i32
    %256 = tpu.dynamic_rotate %253 by %c15_i32_125 dim 1 : vector<3x256xf32>, i32 -> vector<3x256xf32>
    %257 = arith.subf %253, %256 : vector<3x256xf32>
    %c15_i32_126 = arith.constant 15 : i32
    %258 = tpu.dynamic_rotate %255 by %c15_i32_126 dim 1 : vector<3x256xf32>, i32 -> vector<3x256xf32>
    %259 = arith.subf %255, %258 : vector<3x256xf32>
    %260 = arith.mulf %257, %257 : vector<3x256xf32>
    %cst_127 = arith.constant dense<0.000000e+00> : vector<256xf32>
    %261 = vector.multi_reduction <add>, %260, %cst_127 [0] : vector<3x256xf32> to vector<256xf32>
    %262 = vector.shape_cast %261 : vector<256xf32> to vector<1x256xf32>
    %cst_128 = arith.constant -5.000000e-03 : f32
    %263 = vector.broadcast %cst_128 : f32 to vector<1x256xf32>
    %264 = arith.mulf %262, %263 : vector<1x256xf32>
    %265 = math.exp %264 : vector<1x256xf32>
    %cst_129 = arith.constant 0.000000e+00 : f32
    %266 = vector.broadcast %cst_129 : f32 to vector<1x256xf32>
    %267 = arith.select %249, %265, %266 : vector<1x256xi1>, vector<1x256xf32>
    %268 = arith.addf %250, %267 : vector<1x256xf32>
    %269 = math.absf %259 : vector<3x256xf32>
    %cst_130 = arith.constant dense<0.000000e+00> : vector<256xf32>
    %270 = vector.multi_reduction <add>, %269, %cst_130 [0] : vector<3x256xf32> to vector<256xf32>
    %271 = vector.shape_cast %270 : vector<256xf32> to vector<1x256xf32>
    %cst_131 = arith.constant 0.000000e+00 : f32
    %272 = vector.broadcast %cst_131 : f32 to vector<1x256xf32>
    %273 = arith.select %249, %271, %272 : vector<1x256xi1>, vector<1x256xf32>
    %274 = arith.addf %251, %273 : vector<1x256xf32>
    %c1_132 = arith.constant 1 : index
    %c0_133 = arith.constant 0 : index
    %c0_134 = arith.constant 0 : index
    %275 = vector.load %arg3[%c1_132, %c0_133, %c0_134] : memref<2x3x256xf32, #tpu.memory_space<vmem>>, vector<1x3x256xf32>
    %276 = vector.shape_cast %275 : vector<1x3x256xf32> to vector<3x256xf32>
    %c1_135 = arith.constant 1 : index
    %c0_136 = arith.constant 0 : index
    %c0_137 = arith.constant 0 : index
    %277 = vector.load %arg4[%c1_135, %c0_136, %c0_137] : memref<2x3x256xf32, #tpu.memory_space<vmem>>, vector<1x3x256xf32>
    %278 = vector.shape_cast %277 : vector<1x3x256xf32> to vector<3x256xf32>
    %c15_i32_138 = arith.constant 15 : i32
    %279 = tpu.dynamic_rotate %276 by %c15_i32_138 dim 1 : vector<3x256xf32>, i32 -> vector<3x256xf32>
    %280 = arith.subf %276, %279 : vector<3x256xf32>
    %c15_i32_139 = arith.constant 15 : i32
    %281 = tpu.dynamic_rotate %278 by %c15_i32_139 dim 1 : vector<3x256xf32>, i32 -> vector<3x256xf32>
    %282 = arith.subf %278, %281 : vector<3x256xf32>
    %283 = arith.mulf %280, %280 : vector<3x256xf32>
    %cst_140 = arith.constant dense<0.000000e+00> : vector<256xf32>
    %284 = vector.multi_reduction <add>, %283, %cst_140 [0] : vector<3x256xf32> to vector<256xf32>
    %285 = vector.shape_cast %284 : vector<256xf32> to vector<1x256xf32>
    %cst_141 = arith.constant -5.000000e-03 : f32
    %286 = vector.broadcast %cst_141 : f32 to vector<1x256xf32>
    %287 = arith.mulf %285, %286 : vector<1x256xf32>
    %288 = math.exp %287 : vector<1x256xf32>
    %cst_142 = arith.constant 0.000000e+00 : f32
    %289 = vector.broadcast %cst_142 : f32 to vector<1x256xf32>
    %290 = arith.select %249, %288, %289 : vector<1x256xi1>, vector<1x256xf32>
    %291 = arith.addf %268, %290 : vector<1x256xf32>
    %292 = math.absf %282 : vector<3x256xf32>
    %cst_143 = arith.constant dense<0.000000e+00> : vector<256xf32>
    %293 = vector.multi_reduction <add>, %292, %cst_143 [0] : vector<3x256xf32> to vector<256xf32>
    %294 = vector.shape_cast %293 : vector<256xf32> to vector<1x256xf32>
    %cst_144 = arith.constant 0.000000e+00 : f32
    %295 = vector.broadcast %cst_144 : f32 to vector<1x256xf32>
    %296 = arith.select %249, %294, %295 : vector<1x256xi1>, vector<1x256xf32>
    %297 = arith.addf %274, %296 : vector<1x256xf32>
    %298 = vector.extract_strided_slice %291 {offsets = [0, 0], sizes = [1, 128], strides = [1, 1]} : vector<1x256xf32> to vector<1x128xf32>
    %299 = vector.extract_strided_slice %297 {offsets = [0, 0], sizes = [1, 128], strides = [1, 1]} : vector<1x256xf32> to vector<1x128xf32>
    %300 = vector.extract_strided_slice %291 {offsets = [0, 128], sizes = [1, 128], strides = [1, 1]} : vector<1x256xf32> to vector<1x128xf32>
    %301 = arith.addf %298, %300 : vector<1x128xf32>
    %302 = vector.extract_strided_slice %297 {offsets = [0, 128], sizes = [1, 128], strides = [1, 1]} : vector<1x256xf32> to vector<1x128xf32>
    %303 = arith.addf %299, %302 : vector<1x128xf32>
    %c0_145 = arith.constant 0 : index
    %c3 = arith.constant 3 : index
    %c0_146 = arith.constant 0 : index
    %304 = vector.load %arg5[%c0_145, %c3, %c0_146] : memref<1x24x128xf32, #tpu.memory_space<vmem>>, vector<1x1x128xf32>
    %305 = vector.shape_cast %304 : vector<1x1x128xf32> to vector<1x128xf32>
    %306 = vector.shape_cast %301 : vector<1x128xf32> to vector<1x1x128xf32>
    tpu.vector_store %arg5[%c0_145, %c3, %c0_146], %306 {strides = array<i32>} : memref<1x24x128xf32, #tpu.memory_space<vmem>>, vector<1x1x128xf32>,
    %c0_147 = arith.constant 0 : index
    %c15 = arith.constant 15 : index
    %c0_148 = arith.constant 0 : index
    %307 = vector.load %arg5[%c0_147, %c15, %c0_148] : memref<1x24x128xf32, #tpu.memory_space<vmem>>, vector<1x1x128xf32>
    %308 = vector.shape_cast %307 : vector<1x1x128xf32> to vector<1x128xf32>
    %309 = vector.shape_cast %303 : vector<1x128xf32> to vector<1x1x128xf32>
    tpu.vector_store %arg5[%c0_147, %c15, %c0_148], %309 {strides = array<i32>} : memref<1x24x128xf32, #tpu.memory_space<vmem>>, vector<1x1x128xf32>,
    %c32_i32 = arith.constant 32 : i32
    %310 = tpu.dynamic_rotate %0 by %c32_i32 dim 1 : vector<1x256xi32>, i32 -> vector<1x256xi32>
    %c32_i32_149 = arith.constant 32 : i32
    %311 = tpu.dynamic_rotate %1 by %c32_i32_149 dim 1 : vector<1x256xi32>, i32 -> vector<1x256xi32>
    %c2_i32 = arith.constant 2 : i32
    %312 = vector.broadcast %c2_i32 : i32 to vector<1x256xi32>
    %313 = arith.subi %0, %312 : vector<1x256xi32>
    %314 = arith.cmpi eq, %310, %313 : vector<1x256xi32>
    %c0_i32_150 = arith.constant 0 : i32
    %315 = vector.broadcast %c0_i32_150 : i32 to vector<1x256xi32>
    %316 = arith.subi %1, %315 : vector<1x256xi32>
    %317 = arith.cmpi eq, %311, %316 : vector<1x256xi32>
    %318 = arith.andi %314, %317 : vector<1x256xi1>
    %c2_i32_151 = arith.constant 2 : i32
    %319 = vector.broadcast %c2_i32_151 : i32 to vector<1x256xi32>
    %320 = arith.addi %0, %319 : vector<1x256xi32>
    %321 = arith.cmpi eq, %310, %320 : vector<1x256xi32>
    %c0_i32_152 = arith.constant 0 : i32
    %322 = vector.broadcast %c0_i32_152 : i32 to vector<1x256xi32>
    %323 = arith.addi %1, %322 : vector<1x256xi32>
    %324 = arith.cmpi eq, %311, %323 : vector<1x256xi32>
    %325 = arith.andi %321, %324 : vector<1x256xi1>
    %326 = arith.ori %318, %325 : vector<1x256xi1>
    %cst_153 = arith.constant 0.000000e+00 : f32
    %327 = vector.broadcast %cst_153 : f32 to vector<1x256xf32>
    %cst_154 = arith.constant 0.000000e+00 : f32
    %328 = vector.broadcast %cst_154 : f32 to vector<1x256xf32>
    %c0_155 = arith.constant 0 : index
    %c0_156 = arith.constant 0 : index
    %c0_157 = arith.constant 0 : index
    %329 = vector.load %arg3[%c0_155, %c0_156, %c0_157] : memref<2x3x256xf32, #tpu.memory_space<vmem>>, vector<1x3x256xf32>
    %330 = vector.shape_cast %329 : vector<1x3x256xf32> to vector<3x256xf32>
    %c0_158 = arith.constant 0 : index
    %c0_159 = arith.constant 0 : index
    %c0_160 = arith.constant 0 : index
    %331 = vector.load %arg4[%c0_158, %c0_159, %c0_160] : memref<2x3x256xf32, #tpu.memory_space<vmem>>, vector<1x3x256xf32>
    %332 = vector.shape_cast %331 : vector<1x3x256xf32> to vector<3x256xf32>
    %c32_i32_161 = arith.constant 32 : i32
    %333 = tpu.dynamic_rotate %330 by %c32_i32_161 dim 1 : vector<3x256xf32>, i32 -> vector<3x256xf32>
    %334 = arith.subf %330, %333 : vector<3x256xf32>
    %c32_i32_162 = arith.constant 32 : i32
    %335 = tpu.dynamic_rotate %332 by %c32_i32_162 dim 1 : vector<3x256xf32>, i32 -> vector<3x256xf32>
    %336 = arith.subf %332, %335 : vector<3x256xf32>
    %337 = arith.mulf %334, %334 : vector<3x256xf32>
    %cst_163 = arith.constant dense<0.000000e+00> : vector<256xf32>
    %338 = vector.multi_reduction <add>, %337, %cst_163 [0] : vector<3x256xf32> to vector<256xf32>
    %339 = vector.shape_cast %338 : vector<256xf32> to vector<1x256xf32>
    %cst_164 = arith.constant -5.000000e-03 : f32
    %340 = vector.broadcast %cst_164 : f32 to vector<1x256xf32>
    %341 = arith.mulf %339, %340 : vector<1x256xf32>
    %342 = math.exp %341 : vector<1x256xf32>
    %cst_165 = arith.constant 0.000000e+00 : f32
    %343 = vector.broadcast %cst_165 : f32 to vector<1x256xf32>
    %344 = arith.select %326, %342, %343 : vector<1x256xi1>, vector<1x256xf32>
    %345 = arith.addf %327, %344 : vector<1x256xf32>
    %346 = math.absf %336 : vector<3x256xf32>
    %cst_166 = arith.constant dense<0.000000e+00> : vector<256xf32>
    %347 = vector.multi_reduction <add>, %346, %cst_166 [0] : vector<3x256xf32> to vector<256xf32>
    %348 = vector.shape_cast %347 : vector<256xf32> to vector<1x256xf32>
    %cst_167 = arith.constant 0.000000e+00 : f32
    %349 = vector.broadcast %cst_167 : f32 to vector<1x256xf32>
    %350 = arith.select %326, %348, %349 : vector<1x256xi1>, vector<1x256xf32>
    %351 = arith.addf %328, %350 : vector<1x256xf32>
    %c1_168 = arith.constant 1 : index
    %c0_169 = arith.constant 0 : index
    %c0_170 = arith.constant 0 : index
    %352 = vector.load %arg3[%c1_168, %c0_169, %c0_170] : memref<2x3x256xf32, #tpu.memory_space<vmem>>, vector<1x3x256xf32>
    %353 = vector.shape_cast %352 : vector<1x3x256xf32> to vector<3x256xf32>
    %c1_171 = arith.constant 1 : index
    %c0_172 = arith.constant 0 : index
    %c0_173 = arith.constant 0 : index
    %354 = vector.load %arg4[%c1_171, %c0_172, %c0_173] : memref<2x3x256xf32, #tpu.memory_space<vmem>>, vector<1x3x256xf32>
    %355 = vector.shape_cast %354 : vector<1x3x256xf32> to vector<3x256xf32>
    %c32_i32_174 = arith.constant 32 : i32
    %356 = tpu.dynamic_rotate %353 by %c32_i32_174 dim 1 : vector<3x256xf32>, i32 -> vector<3x256xf32>
    %357 = arith.subf %353, %356 : vector<3x256xf32>
    %c32_i32_175 = arith.constant 32 : i32
    %358 = tpu.dynamic_rotate %355 by %c32_i32_175 dim 1 : vector<3x256xf32>, i32 -> vector<3x256xf32>
    %359 = arith.subf %355, %358 : vector<3x256xf32>
    %360 = arith.mulf %357, %357 : vector<3x256xf32>
    %cst_176 = arith.constant dense<0.000000e+00> : vector<256xf32>
    %361 = vector.multi_reduction <add>, %360, %cst_176 [0] : vector<3x256xf32> to vector<256xf32>
    %362 = vector.shape_cast %361 : vector<256xf32> to vector<1x256xf32>
    %cst_177 = arith.constant -5.000000e-03 : f32
    %363 = vector.broadcast %cst_177 : f32 to vector<1x256xf32>
    %364 = arith.mulf %362, %363 : vector<1x256xf32>
    %365 = math.exp %364 : vector<1x256xf32>
    %cst_178 = arith.constant 0.000000e+00 : f32
    %366 = vector.broadcast %cst_178 : f32 to vector<1x256xf32>
    %367 = arith.select %326, %365, %366 : vector<1x256xi1>, vector<1x256xf32>
    %368 = arith.addf %345, %367 : vector<1x256xf32>
    %369 = math.absf %359 : vector<3x256xf32>
    %cst_179 = arith.constant dense<0.000000e+00> : vector<256xf32>
    %370 = vector.multi_reduction <add>, %369, %cst_179 [0] : vector<3x256xf32> to vector<256xf32>
    %371 = vector.shape_cast %370 : vector<256xf32> to vector<1x256xf32>
    %cst_180 = arith.constant 0.000000e+00 : f32
    %372 = vector.broadcast %cst_180 : f32 to vector<1x256xf32>
    %373 = arith.select %326, %371, %372 : vector<1x256xi1>, vector<1x256xf32>
    %374 = arith.addf %351, %373 : vector<1x256xf32>
    %375 = vector.extract_strided_slice %368 {offsets = [0, 0], sizes = [1, 128], strides = [1, 1]} : vector<1x256xf32> to vector<1x128xf32>
    %376 = vector.extract_strided_slice %374 {offsets = [0, 0], sizes = [1, 128], strides = [1, 1]} : vector<1x256xf32> to vector<1x128xf32>
    %377 = vector.extract_strided_slice %368 {offsets = [0, 128], sizes = [1, 128], strides = [1, 1]} : vector<1x256xf32> to vector<1x128xf32>
    %378 = arith.addf %375, %377 : vector<1x128xf32>
    %379 = vector.extract_strided_slice %374 {offsets = [0, 128], sizes = [1, 128], strides = [1, 1]} : vector<1x256xf32> to vector<1x128xf32>
    %380 = arith.addf %376, %379 : vector<1x128xf32>
    %c0_181 = arith.constant 0 : index
    %c4 = arith.constant 4 : index
    %c0_182 = arith.constant 0 : index
    %381 = vector.load %arg5[%c0_181, %c4, %c0_182] : memref<1x24x128xf32, #tpu.memory_space<vmem>>, vector<1x1x128xf32>
    %382 = vector.shape_cast %381 : vector<1x1x128xf32> to vector<1x128xf32>
    %383 = vector.shape_cast %378 : vector<1x128xf32> to vector<1x1x128xf32>
    tpu.vector_store %arg5[%c0_181, %c4, %c0_182], %383 {strides = array<i32>} : memref<1x24x128xf32, #tpu.memory_space<vmem>>, vector<1x1x128xf32>,
    %c0_183 = arith.constant 0 : index
    %c16 = arith.constant 16 : index
    %c0_184 = arith.constant 0 : index
    %384 = vector.load %arg5[%c0_183, %c16, %c0_184] : memref<1x24x128xf32, #tpu.memory_space<vmem>>, vector<1x1x128xf32>
    %385 = vector.shape_cast %384 : vector<1x1x128xf32> to vector<1x128xf32>
    %386 = vector.shape_cast %380 : vector<1x128xf32> to vector<1x1x128xf32>
    tpu.vector_store %arg5[%c0_183, %c16, %c0_184], %386 {strides = array<i32>} : memref<1x24x128xf32, #tpu.memory_space<vmem>>, vector<1x1x128xf32>,
    %c2_i32_185 = arith.constant 2 : i32
    %387 = tpu.dynamic_rotate %0 by %c2_i32_185 dim 1 : vector<1x256xi32>, i32 -> vector<1x256xi32>
    %c2_i32_186 = arith.constant 2 : i32
    %388 = tpu.dynamic_rotate %1 by %c2_i32_186 dim 1 : vector<1x256xi32>, i32 -> vector<1x256xi32>
    %c0_i32_187 = arith.constant 0 : i32
    %389 = vector.broadcast %c0_i32_187 : i32 to vector<1x256xi32>
    %390 = arith.subi %0, %389 : vector<1x256xi32>
    %391 = arith.cmpi eq, %387, %390 : vector<1x256xi32>
    %c2_i32_188 = arith.constant 2 : i32
    %392 = vector.broadcast %c2_i32_188 : i32 to vector<1x256xi32>
    %393 = arith.subi %1, %392 : vector<1x256xi32>
    %394 = arith.cmpi eq, %388, %393 : vector<1x256xi32>
    %395 = arith.andi %391, %394 : vector<1x256xi1>
    %c0_i32_189 = arith.constant 0 : i32
    %396 = vector.broadcast %c0_i32_189 : i32 to vector<1x256xi32>
    %397 = arith.addi %0, %396 : vector<1x256xi32>
    %398 = arith.cmpi eq, %387, %397 : vector<1x256xi32>
    %c2_i32_190 = arith.constant 2 : i32
    %399 = vector.broadcast %c2_i32_190 : i32 to vector<1x256xi32>
    %400 = arith.addi %1, %399 : vector<1x256xi32>
    %401 = arith.cmpi eq, %388, %400 : vector<1x256xi32>
    %402 = arith.andi %398, %401 : vector<1x256xi1>
    %403 = arith.ori %395, %402 : vector<1x256xi1>
    %cst_191 = arith.constant 0.000000e+00 : f32
    %404 = vector.broadcast %cst_191 : f32 to vector<1x256xf32>
    %cst_192 = arith.constant 0.000000e+00 : f32
    %405 = vector.broadcast %cst_192 : f32 to vector<1x256xf32>
    %c0_193 = arith.constant 0 : index
    %c0_194 = arith.constant 0 : index
    %c0_195 = arith.constant 0 : index
    %406 = vector.load %arg3[%c0_193, %c0_194, %c0_195] : memref<2x3x256xf32, #tpu.memory_space<vmem>>, vector<1x3x256xf32>
    %407 = vector.shape_cast %406 : vector<1x3x256xf32> to vector<3x256xf32>
    %c0_196 = arith.constant 0 : index
    %c0_197 = arith.constant 0 : index
    %c0_198 = arith.constant 0 : index
    %408 = vector.load %arg4[%c0_196, %c0_197, %c0_198] : memref<2x3x256xf32, #tpu.memory_space<vmem>>, vector<1x3x256xf32>
    %409 = vector.shape_cast %408 : vector<1x3x256xf32> to vector<3x256xf32>
    %c2_i32_199 = arith.constant 2 : i32
    %410 = tpu.dynamic_rotate %407 by %c2_i32_199 dim 1 : vector<3x256xf32>, i32 -> vector<3x256xf32>
    %411 = arith.subf %407, %410 : vector<3x256xf32>
    %c2_i32_200 = arith.constant 2 : i32
    %412 = tpu.dynamic_rotate %409 by %c2_i32_200 dim 1 : vector<3x256xf32>, i32 -> vector<3x256xf32>
    %413 = arith.subf %409, %412 : vector<3x256xf32>
    %414 = arith.mulf %411, %411 : vector<3x256xf32>
    %cst_201 = arith.constant dense<0.000000e+00> : vector<256xf32>
    %415 = vector.multi_reduction <add>, %414, %cst_201 [0] : vector<3x256xf32> to vector<256xf32>
    %416 = vector.shape_cast %415 : vector<256xf32> to vector<1x256xf32>
    %cst_202 = arith.constant -5.000000e-03 : f32
    %417 = vector.broadcast %cst_202 : f32 to vector<1x256xf32>
    %418 = arith.mulf %416, %417 : vector<1x256xf32>
    %419 = math.exp %418 : vector<1x256xf32>
    %cst_203 = arith.constant 0.000000e+00 : f32
    %420 = vector.broadcast %cst_203 : f32 to vector<1x256xf32>
    %421 = arith.select %403, %419, %420 : vector<1x256xi1>, vector<1x256xf32>
    %422 = arith.addf %404, %421 : vector<1x256xf32>
    %423 = math.absf %413 : vector<3x256xf32>
    %cst_204 = arith.constant dense<0.000000e+00> : vector<256xf32>
    %424 = vector.multi_reduction <add>, %423, %cst_204 [0] : vector<3x256xf32> to vector<256xf32>
    %425 = vector.shape_cast %424 : vector<256xf32> to vector<1x256xf32>
    %cst_205 = arith.constant 0.000000e+00 : f32
    %426 = vector.broadcast %cst_205 : f32 to vector<1x256xf32>
    %427 = arith.select %403, %425, %426 : vector<1x256xi1>, vector<1x256xf32>
    %428 = arith.addf %405, %427 : vector<1x256xf32>
    %c1_206 = arith.constant 1 : index
    %c0_207 = arith.constant 0 : index
    %c0_208 = arith.constant 0 : index
    %429 = vector.load %arg3[%c1_206, %c0_207, %c0_208] : memref<2x3x256xf32, #tpu.memory_space<vmem>>, vector<1x3x256xf32>
    %430 = vector.shape_cast %429 : vector<1x3x256xf32> to vector<3x256xf32>
    %c1_209 = arith.constant 1 : index
    %c0_210 = arith.constant 0 : index
    %c0_211 = arith.constant 0 : index
    %431 = vector.load %arg4[%c1_209, %c0_210, %c0_211] : memref<2x3x256xf32, #tpu.memory_space<vmem>>, vector<1x3x256xf32>
    %432 = vector.shape_cast %431 : vector<1x3x256xf32> to vector<3x256xf32>
    %c2_i32_212 = arith.constant 2 : i32
    %433 = tpu.dynamic_rotate %430 by %c2_i32_212 dim 1 : vector<3x256xf32>, i32 -> vector<3x256xf32>
    %434 = arith.subf %430, %433 : vector<3x256xf32>
    %c2_i32_213 = arith.constant 2 : i32
    %435 = tpu.dynamic_rotate %432 by %c2_i32_213 dim 1 : vector<3x256xf32>, i32 -> vector<3x256xf32>
    %436 = arith.subf %432, %435 : vector<3x256xf32>
    %437 = arith.mulf %434, %434 : vector<3x256xf32>
    %cst_214 = arith.constant dense<0.000000e+00> : vector<256xf32>
    %438 = vector.multi_reduction <add>, %437, %cst_214 [0] : vector<3x256xf32> to vector<256xf32>
    %439 = vector.shape_cast %438 : vector<256xf32> to vector<1x256xf32>
    %cst_215 = arith.constant -5.000000e-03 : f32
    %440 = vector.broadcast %cst_215 : f32 to vector<1x256xf32>
    %441 = arith.mulf %439, %440 : vector<1x256xf32>
    %442 = math.exp %441 : vector<1x256xf32>
    %cst_216 = arith.constant 0.000000e+00 : f32
    %443 = vector.broadcast %cst_216 : f32 to vector<1x256xf32>
    %444 = arith.select %403, %442, %443 : vector<1x256xi1>, vector<1x256xf32>
    %445 = arith.addf %422, %444 : vector<1x256xf32>
    %446 = math.absf %436 : vector<3x256xf32>
    %cst_217 = arith.constant dense<0.000000e+00> : vector<256xf32>
    %447 = vector.multi_reduction <add>, %446, %cst_217 [0] : vector<3x256xf32> to vector<256xf32>
    %448 = vector.shape_cast %447 : vector<256xf32> to vector<1x256xf32>
    %cst_218 = arith.constant 0.000000e+00 : f32
    %449 = vector.broadcast %cst_218 : f32 to vector<1x256xf32>
    %450 = arith.select %403, %448, %449 : vector<1x256xi1>, vector<1x256xf32>
    %451 = arith.addf %428, %450 : vector<1x256xf32>
    %452 = vector.extract_strided_slice %445 {offsets = [0, 0], sizes = [1, 128], strides = [1, 1]} : vector<1x256xf32> to vector<1x128xf32>
    %453 = vector.extract_strided_slice %451 {offsets = [0, 0], sizes = [1, 128], strides = [1, 1]} : vector<1x256xf32> to vector<1x128xf32>
    %454 = vector.extract_strided_slice %445 {offsets = [0, 128], sizes = [1, 128], strides = [1, 1]} : vector<1x256xf32> to vector<1x128xf32>
    %455 = arith.addf %452, %454 : vector<1x128xf32>
    %456 = vector.extract_strided_slice %451 {offsets = [0, 128], sizes = [1, 128], strides = [1, 1]} : vector<1x256xf32> to vector<1x128xf32>
    %457 = arith.addf %453, %456 : vector<1x128xf32>
    %c0_219 = arith.constant 0 : index
    %c5 = arith.constant 5 : index
    %c0_220 = arith.constant 0 : index
    %458 = vector.load %arg5[%c0_219, %c5, %c0_220] : memref<1x24x128xf32, #tpu.memory_space<vmem>>, vector<1x1x128xf32>
    %459 = vector.shape_cast %458 : vector<1x1x128xf32> to vector<1x128xf32>
    %460 = vector.shape_cast %455 : vector<1x128xf32> to vector<1x1x128xf32>
    tpu.vector_store %arg5[%c0_219, %c5, %c0_220], %460 {strides = array<i32>} : memref<1x24x128xf32, #tpu.memory_space<vmem>>, vector<1x1x128xf32>,
    %c0_221 = arith.constant 0 : index
    %c17 = arith.constant 17 : index
    %c0_222 = arith.constant 0 : index
    %461 = vector.load %arg5[%c0_221, %c17, %c0_222] : memref<1x24x128xf32, #tpu.memory_space<vmem>>, vector<1x1x128xf32>
    %462 = vector.shape_cast %461 : vector<1x1x128xf32> to vector<1x128xf32>
    %463 = vector.shape_cast %457 : vector<1x128xf32> to vector<1x1x128xf32>
    tpu.vector_store %arg5[%c0_221, %c17, %c0_222], %463 {strides = array<i32>} : memref<1x24x128xf32, #tpu.memory_space<vmem>>, vector<1x1x128xf32>,
    %c33_i32 = arith.constant 33 : i32
    %464 = tpu.dynamic_rotate %0 by %c33_i32 dim 1 : vector<1x256xi32>, i32 -> vector<1x256xi32>
    %c33_i32_223 = arith.constant 33 : i32
    %465 = tpu.dynamic_rotate %1 by %c33_i32_223 dim 1 : vector<1x256xi32>, i32 -> vector<1x256xi32>
    %c2_i32_224 = arith.constant 2 : i32
    %466 = vector.broadcast %c2_i32_224 : i32 to vector<1x256xi32>
    %467 = arith.subi %0, %466 : vector<1x256xi32>
    %468 = arith.cmpi eq, %464, %467 : vector<1x256xi32>
    %c1_i32_225 = arith.constant 1 : i32
    %469 = vector.broadcast %c1_i32_225 : i32 to vector<1x256xi32>
    %470 = arith.subi %1, %469 : vector<1x256xi32>
    %471 = arith.cmpi eq, %465, %470 : vector<1x256xi32>
    %472 = arith.andi %468, %471 : vector<1x256xi1>
    %c2_i32_226 = arith.constant 2 : i32
    %473 = vector.broadcast %c2_i32_226 : i32 to vector<1x256xi32>
    %474 = arith.addi %0, %473 : vector<1x256xi32>
    %475 = arith.cmpi eq, %464, %474 : vector<1x256xi32>
    %c1_i32_227 = arith.constant 1 : i32
    %476 = vector.broadcast %c1_i32_227 : i32 to vector<1x256xi32>
    %477 = arith.addi %1, %476 : vector<1x256xi32>
    %478 = arith.cmpi eq, %465, %477 : vector<1x256xi32>
    %479 = arith.andi %475, %478 : vector<1x256xi1>
    %480 = arith.ori %472, %479 : vector<1x256xi1>
    %cst_228 = arith.constant 0.000000e+00 : f32
    %481 = vector.broadcast %cst_228 : f32 to vector<1x256xf32>
    %cst_229 = arith.constant 0.000000e+00 : f32
    %482 = vector.broadcast %cst_229 : f32 to vector<1x256xf32>
    %c0_230 = arith.constant 0 : index
    %c0_231 = arith.constant 0 : index
    %c0_232 = arith.constant 0 : index
    %483 = vector.load %arg3[%c0_230, %c0_231, %c0_232] : memref<2x3x256xf32, #tpu.memory_space<vmem>>, vector<1x3x256xf32>
    %484 = vector.shape_cast %483 : vector<1x3x256xf32> to vector<3x256xf32>
    %c0_233 = arith.constant 0 : index
    %c0_234 = arith.constant 0 : index
    %c0_235 = arith.constant 0 : index
    %485 = vector.load %arg4[%c0_233, %c0_234, %c0_235] : memref<2x3x256xf32, #tpu.memory_space<vmem>>, vector<1x3x256xf32>
    %486 = vector.shape_cast %485 : vector<1x3x256xf32> to vector<3x256xf32>
    %c33_i32_236 = arith.constant 33 : i32
    %487 = tpu.dynamic_rotate %484 by %c33_i32_236 dim 1 : vector<3x256xf32>, i32 -> vector<3x256xf32>
    %488 = arith.subf %484, %487 : vector<3x256xf32>
    %c33_i32_237 = arith.constant 33 : i32
    %489 = tpu.dynamic_rotate %486 by %c33_i32_237 dim 1 : vector<3x256xf32>, i32 -> vector<3x256xf32>
    %490 = arith.subf %486, %489 : vector<3x256xf32>
    %491 = arith.mulf %488, %488 : vector<3x256xf32>
    %cst_238 = arith.constant dense<0.000000e+00> : vector<256xf32>
    %492 = vector.multi_reduction <add>, %491, %cst_238 [0] : vector<3x256xf32> to vector<256xf32>
    %493 = vector.shape_cast %492 : vector<256xf32> to vector<1x256xf32>
    %cst_239 = arith.constant -5.000000e-03 : f32
    %494 = vector.broadcast %cst_239 : f32 to vector<1x256xf32>
    %495 = arith.mulf %493, %494 : vector<1x256xf32>
    %496 = math.exp %495 : vector<1x256xf32>
    %cst_240 = arith.constant 0.000000e+00 : f32
    %497 = vector.broadcast %cst_240 : f32 to vector<1x256xf32>
    %498 = arith.select %480, %496, %497 : vector<1x256xi1>, vector<1x256xf32>
    %499 = arith.addf %481, %498 : vector<1x256xf32>
    %500 = math.absf %490 : vector<3x256xf32>
    %cst_241 = arith.constant dense<0.000000e+00> : vector<256xf32>
    %501 = vector.multi_reduction <add>, %500, %cst_241 [0] : vector<3x256xf32> to vector<256xf32>
    %502 = vector.shape_cast %501 : vector<256xf32> to vector<1x256xf32>
    %cst_242 = arith.constant 0.000000e+00 : f32
    %503 = vector.broadcast %cst_242 : f32 to vector<1x256xf32>
    %504 = arith.select %480, %502, %503 : vector<1x256xi1>, vector<1x256xf32>
    %505 = arith.addf %482, %504 : vector<1x256xf32>
    %c1_243 = arith.constant 1 : index
    %c0_244 = arith.constant 0 : index
    %c0_245 = arith.constant 0 : index
    %506 = vector.load %arg3[%c1_243, %c0_244, %c0_245] : memref<2x3x256xf32, #tpu.memory_space<vmem>>, vector<1x3x256xf32>
    %507 = vector.shape_cast %506 : vector<1x3x256xf32> to vector<3x256xf32>
    %c1_246 = arith.constant 1 : index
    %c0_247 = arith.constant 0 : index
    %c0_248 = arith.constant 0 : index
    %508 = vector.load %arg4[%c1_246, %c0_247, %c0_248] : memref<2x3x256xf32, #tpu.memory_space<vmem>>, vector<1x3x256xf32>
    %509 = vector.shape_cast %508 : vector<1x3x256xf32> to vector<3x256xf32>
    %c33_i32_249 = arith.constant 33 : i32
    %510 = tpu.dynamic_rotate %507 by %c33_i32_249 dim 1 : vector<3x256xf32>, i32 -> vector<3x256xf32>
    %511 = arith.subf %507, %510 : vector<3x256xf32>
    %c33_i32_250 = arith.constant 33 : i32
    %512 = tpu.dynamic_rotate %509 by %c33_i32_250 dim 1 : vector<3x256xf32>, i32 -> vector<3x256xf32>
    %513 = arith.subf %509, %512 : vector<3x256xf32>
    %514 = arith.mulf %511, %511 : vector<3x256xf32>
    %cst_251 = arith.constant dense<0.000000e+00> : vector<256xf32>
    %515 = vector.multi_reduction <add>, %514, %cst_251 [0] : vector<3x256xf32> to vector<256xf32>
    %516 = vector.shape_cast %515 : vector<256xf32> to vector<1x256xf32>
    %cst_252 = arith.constant -5.000000e-03 : f32
    %517 = vector.broadcast %cst_252 : f32 to vector<1x256xf32>
    %518 = arith.mulf %516, %517 : vector<1x256xf32>
    %519 = math.exp %518 : vector<1x256xf32>
    %cst_253 = arith.constant 0.000000e+00 : f32
    %520 = vector.broadcast %cst_253 : f32 to vector<1x256xf32>
    %521 = arith.select %480, %519, %520 : vector<1x256xi1>, vector<1x256xf32>
    %522 = arith.addf %499, %521 : vector<1x256xf32>
    %523 = math.absf %513 : vector<3x256xf32>
    %cst_254 = arith.constant dense<0.000000e+00> : vector<256xf32>
    %524 = vector.multi_reduction <add>, %523, %cst_254 [0] : vector<3x256xf32> to vector<256xf32>
    %525 = vector.shape_cast %524 : vector<256xf32> to vector<1x256xf32>
    %cst_255 = arith.constant 0.000000e+00 : f32
    %526 = vector.broadcast %cst_255 : f32 to vector<1x256xf32>
    %527 = arith.select %480, %525, %526 : vector<1x256xi1>, vector<1x256xf32>
    %528 = arith.addf %505, %527 : vector<1x256xf32>
    %529 = vector.extract_strided_slice %522 {offsets = [0, 0], sizes = [1, 128], strides = [1, 1]} : vector<1x256xf32> to vector<1x128xf32>
    %530 = vector.extract_strided_slice %528 {offsets = [0, 0], sizes = [1, 128], strides = [1, 1]} : vector<1x256xf32> to vector<1x128xf32>
    %531 = vector.extract_strided_slice %522 {offsets = [0, 128], sizes = [1, 128], strides = [1, 1]} : vector<1x256xf32> to vector<1x128xf32>
    %532 = arith.addf %529, %531 : vector<1x128xf32>
    %533 = vector.extract_strided_slice %528 {offsets = [0, 128], sizes = [1, 128], strides = [1, 1]} : vector<1x256xf32> to vector<1x128xf32>
    %534 = arith.addf %530, %533 : vector<1x128xf32>
    %c0_256 = arith.constant 0 : index
    %c6 = arith.constant 6 : index
    %c0_257 = arith.constant 0 : index
    %535 = vector.load %arg5[%c0_256, %c6, %c0_257] : memref<1x24x128xf32, #tpu.memory_space<vmem>>, vector<1x1x128xf32>
    %536 = vector.shape_cast %535 : vector<1x1x128xf32> to vector<1x128xf32>
    %537 = vector.shape_cast %532 : vector<1x128xf32> to vector<1x1x128xf32>
    tpu.vector_store %arg5[%c0_256, %c6, %c0_257], %537 {strides = array<i32>} : memref<1x24x128xf32, #tpu.memory_space<vmem>>, vector<1x1x128xf32>,
    %c0_258 = arith.constant 0 : index
    %c18 = arith.constant 18 : index
    %c0_259 = arith.constant 0 : index
    %538 = vector.load %arg5[%c0_258, %c18, %c0_259] : memref<1x24x128xf32, #tpu.memory_space<vmem>>, vector<1x1x128xf32>
    %539 = vector.shape_cast %538 : vector<1x1x128xf32> to vector<1x128xf32>
    %540 = vector.shape_cast %534 : vector<1x128xf32> to vector<1x1x128xf32>
    tpu.vector_store %arg5[%c0_258, %c18, %c0_259], %540 {strides = array<i32>} : memref<1x24x128xf32, #tpu.memory_space<vmem>>, vector<1x1x128xf32>,
    %c31_i32 = arith.constant 31 : i32
    %541 = tpu.dynamic_rotate %0 by %c31_i32 dim 1 : vector<1x256xi32>, i32 -> vector<1x256xi32>
    %c31_i32_260 = arith.constant 31 : i32
    %542 = tpu.dynamic_rotate %1 by %c31_i32_260 dim 1 : vector<1x256xi32>, i32 -> vector<1x256xi32>
    %c2_i32_261 = arith.constant 2 : i32
    %543 = vector.broadcast %c2_i32_261 : i32 to vector<1x256xi32>
    %544 = arith.subi %0, %543 : vector<1x256xi32>
    %545 = arith.cmpi eq, %541, %544 : vector<1x256xi32>
    %c-1_i32_262 = arith.constant -1 : i32
    %546 = vector.broadcast %c-1_i32_262 : i32 to vector<1x256xi32>
    %547 = arith.subi %1, %546 : vector<1x256xi32>
    %548 = arith.cmpi eq, %542, %547 : vector<1x256xi32>
    %549 = arith.andi %545, %548 : vector<1x256xi1>
    %c2_i32_263 = arith.constant 2 : i32
    %550 = vector.broadcast %c2_i32_263 : i32 to vector<1x256xi32>
    %551 = arith.addi %0, %550 : vector<1x256xi32>
    %552 = arith.cmpi eq, %541, %551 : vector<1x256xi32>
    %c-1_i32_264 = arith.constant -1 : i32
    %553 = vector.broadcast %c-1_i32_264 : i32 to vector<1x256xi32>
    %554 = arith.addi %1, %553 : vector<1x256xi32>
    %555 = arith.cmpi eq, %542, %554 : vector<1x256xi32>
    %556 = arith.andi %552, %555 : vector<1x256xi1>
    %557 = arith.ori %549, %556 : vector<1x256xi1>
    %cst_265 = arith.constant 0.000000e+00 : f32
    %558 = vector.broadcast %cst_265 : f32 to vector<1x256xf32>
    %cst_266 = arith.constant 0.000000e+00 : f32
    %559 = vector.broadcast %cst_266 : f32 to vector<1x256xf32>
    %c0_267 = arith.constant 0 : index
    %c0_268 = arith.constant 0 : index
    %c0_269 = arith.constant 0 : index
    %560 = vector.load %arg3[%c0_267, %c0_268, %c0_269] : memref<2x3x256xf32, #tpu.memory_space<vmem>>, vector<1x3x256xf32>
    %561 = vector.shape_cast %560 : vector<1x3x256xf32> to vector<3x256xf32>
    %c0_270 = arith.constant 0 : index
    %c0_271 = arith.constant 0 : index
    %c0_272 = arith.constant 0 : index
    %562 = vector.load %arg4[%c0_270, %c0_271, %c0_272] : memref<2x3x256xf32, #tpu.memory_space<vmem>>, vector<1x3x256xf32>
    %563 = vector.shape_cast %562 : vector<1x3x256xf32> to vector<3x256xf32>
    %c31_i32_273 = arith.constant 31 : i32
    %564 = tpu.dynamic_rotate %561 by %c31_i32_273 dim 1 : vector<3x256xf32>, i32 -> vector<3x256xf32>
    %565 = arith.subf %561, %564 : vector<3x256xf32>
    %c31_i32_274 = arith.constant 31 : i32
    %566 = tpu.dynamic_rotate %563 by %c31_i32_274 dim 1 : vector<3x256xf32>, i32 -> vector<3x256xf32>
    %567 = arith.subf %563, %566 : vector<3x256xf32>
    %568 = arith.mulf %565, %565 : vector<3x256xf32>
    %cst_275 = arith.constant dense<0.000000e+00> : vector<256xf32>
    %569 = vector.multi_reduction <add>, %568, %cst_275 [0] : vector<3x256xf32> to vector<256xf32>
    %570 = vector.shape_cast %569 : vector<256xf32> to vector<1x256xf32>
    %cst_276 = arith.constant -5.000000e-03 : f32
    %571 = vector.broadcast %cst_276 : f32 to vector<1x256xf32>
    %572 = arith.mulf %570, %571 : vector<1x256xf32>
    %573 = math.exp %572 : vector<1x256xf32>
    %cst_277 = arith.constant 0.000000e+00 : f32
    %574 = vector.broadcast %cst_277 : f32 to vector<1x256xf32>
    %575 = arith.select %557, %573, %574 : vector<1x256xi1>, vector<1x256xf32>
    %576 = arith.addf %558, %575 : vector<1x256xf32>
    %577 = math.absf %567 : vector<3x256xf32>
    %cst_278 = arith.constant dense<0.000000e+00> : vector<256xf32>
    %578 = vector.multi_reduction <add>, %577, %cst_278 [0] : vector<3x256xf32> to vector<256xf32>
    %579 = vector.shape_cast %578 : vector<256xf32> to vector<1x256xf32>
    %cst_279 = arith.constant 0.000000e+00 : f32
    %580 = vector.broadcast %cst_279 : f32 to vector<1x256xf32>
    %581 = arith.select %557, %579, %580 : vector<1x256xi1>, vector<1x256xf32>
    %582 = arith.addf %559, %581 : vector<1x256xf32>
    %c1_280 = arith.constant 1 : index
    %c0_281 = arith.constant 0 : index
    %c0_282 = arith.constant 0 : index
    %583 = vector.load %arg3[%c1_280, %c0_281, %c0_282] : memref<2x3x256xf32, #tpu.memory_space<vmem>>, vector<1x3x256xf32>
    %584 = vector.shape_cast %583 : vector<1x3x256xf32> to vector<3x256xf32>
    %c1_283 = arith.constant 1 : index
    %c0_284 = arith.constant 0 : index
    %c0_285 = arith.constant 0 : index
    %585 = vector.load %arg4[%c1_283, %c0_284, %c0_285] : memref<2x3x256xf32, #tpu.memory_space<vmem>>, vector<1x3x256xf32>
    %586 = vector.shape_cast %585 : vector<1x3x256xf32> to vector<3x256xf32>
    %c31_i32_286 = arith.constant 31 : i32
    %587 = tpu.dynamic_rotate %584 by %c31_i32_286 dim 1 : vector<3x256xf32>, i32 -> vector<3x256xf32>
    %588 = arith.subf %584, %587 : vector<3x256xf32>
    %c31_i32_287 = arith.constant 31 : i32
    %589 = tpu.dynamic_rotate %586 by %c31_i32_287 dim 1 : vector<3x256xf32>, i32 -> vector<3x256xf32>
    %590 = arith.subf %586, %589 : vector<3x256xf32>
    %591 = arith.mulf %588, %588 : vector<3x256xf32>
    %cst_288 = arith.constant dense<0.000000e+00> : vector<256xf32>
    %592 = vector.multi_reduction <add>, %591, %cst_288 [0] : vector<3x256xf32> to vector<256xf32>
    %593 = vector.shape_cast %592 : vector<256xf32> to vector<1x256xf32>
    %cst_289 = arith.constant -5.000000e-03 : f32
    %594 = vector.broadcast %cst_289 : f32 to vector<1x256xf32>
    %595 = arith.mulf %593, %594 : vector<1x256xf32>
    %596 = math.exp %595 : vector<1x256xf32>
    %cst_290 = arith.constant 0.000000e+00 : f32
    %597 = vector.broadcast %cst_290 : f32 to vector<1x256xf32>
    %598 = arith.select %557, %596, %597 : vector<1x256xi1>, vector<1x256xf32>
    %599 = arith.addf %576, %598 : vector<1x256xf32>
    %600 = math.absf %590 : vector<3x256xf32>
    %cst_291 = arith.constant dense<0.000000e+00> : vector<256xf32>
    %601 = vector.multi_reduction <add>, %600, %cst_291 [0] : vector<3x256xf32> to vector<256xf32>
    %602 = vector.shape_cast %601 : vector<256xf32> to vector<1x256xf32>
    %cst_292 = arith.constant 0.000000e+00 : f32
    %603 = vector.broadcast %cst_292 : f32 to vector<1x256xf32>
    %604 = arith.select %557, %602, %603 : vector<1x256xi1>, vector<1x256xf32>
    %605 = arith.addf %582, %604 : vector<1x256xf32>
    %606 = vector.extract_strided_slice %599 {offsets = [0, 0], sizes = [1, 128], strides = [1, 1]} : vector<1x256xf32> to vector<1x128xf32>
    %607 = vector.extract_strided_slice %605 {offsets = [0, 0], sizes = [1, 128], strides = [1, 1]} : vector<1x256xf32> to vector<1x128xf32>
    %608 = vector.extract_strided_slice %599 {offsets = [0, 128], sizes = [1, 128], strides = [1, 1]} : vector<1x256xf32> to vector<1x128xf32>
    %609 = arith.addf %606, %608 : vector<1x128xf32>
    %610 = vector.extract_strided_slice %605 {offsets = [0, 128], sizes = [1, 128], strides = [1, 1]} : vector<1x256xf32> to vector<1x128xf32>
    %611 = arith.addf %607, %610 : vector<1x128xf32>
    %c0_293 = arith.constant 0 : index
    %c7 = arith.constant 7 : index
    %c0_294 = arith.constant 0 : index
    %612 = vector.load %arg5[%c0_293, %c7, %c0_294] : memref<1x24x128xf32, #tpu.memory_space<vmem>>, vector<1x1x128xf32>
    %613 = vector.shape_cast %612 : vector<1x1x128xf32> to vector<1x128xf32>
    %614 = vector.shape_cast %609 : vector<1x128xf32> to vector<1x1x128xf32>
    tpu.vector_store %arg5[%c0_293, %c7, %c0_294], %614 {strides = array<i32>} : memref<1x24x128xf32, #tpu.memory_space<vmem>>, vector<1x1x128xf32>,
    %c0_295 = arith.constant 0 : index
    %c19 = arith.constant 19 : index
    %c0_296 = arith.constant 0 : index
    %615 = vector.load %arg5[%c0_295, %c19, %c0_296] : memref<1x24x128xf32, #tpu.memory_space<vmem>>, vector<1x1x128xf32>
    %616 = vector.shape_cast %615 : vector<1x1x128xf32> to vector<1x128xf32>
    %617 = vector.shape_cast %611 : vector<1x128xf32> to vector<1x1x128xf32>
    tpu.vector_store %arg5[%c0_295, %c19, %c0_296], %617 {strides = array<i32>} : memref<1x24x128xf32, #tpu.memory_space<vmem>>, vector<1x1x128xf32>,
    %c18_i32 = arith.constant 18 : i32
    %618 = tpu.dynamic_rotate %0 by %c18_i32 dim 1 : vector<1x256xi32>, i32 -> vector<1x256xi32>
    %c18_i32_297 = arith.constant 18 : i32
    %619 = tpu.dynamic_rotate %1 by %c18_i32_297 dim 1 : vector<1x256xi32>, i32 -> vector<1x256xi32>
    %c1_i32_298 = arith.constant 1 : i32
    %620 = vector.broadcast %c1_i32_298 : i32 to vector<1x256xi32>
    %621 = arith.subi %0, %620 : vector<1x256xi32>
    %622 = arith.cmpi eq, %618, %621 : vector<1x256xi32>
    %c2_i32_299 = arith.constant 2 : i32
    %623 = vector.broadcast %c2_i32_299 : i32 to vector<1x256xi32>
    %624 = arith.subi %1, %623 : vector<1x256xi32>
    %625 = arith.cmpi eq, %619, %624 : vector<1x256xi32>
    %626 = arith.andi %622, %625 : vector<1x256xi1>
    %c1_i32_300 = arith.constant 1 : i32
    %627 = vector.broadcast %c1_i32_300 : i32 to vector<1x256xi32>
    %628 = arith.addi %0, %627 : vector<1x256xi32>
    %629 = arith.cmpi eq, %618, %628 : vector<1x256xi32>
    %c2_i32_301 = arith.constant 2 : i32
    %630 = vector.broadcast %c2_i32_301 : i32 to vector<1x256xi32>
    %631 = arith.addi %1, %630 : vector<1x256xi32>
    %632 = arith.cmpi eq, %619, %631 : vector<1x256xi32>
    %633 = arith.andi %629, %632 : vector<1x256xi1>
    %634 = arith.ori %626, %633 : vector<1x256xi1>
    %cst_302 = arith.constant 0.000000e+00 : f32
    %635 = vector.broadcast %cst_302 : f32 to vector<1x256xf32>
    %cst_303 = arith.constant 0.000000e+00 : f32
    %636 = vector.broadcast %cst_303 : f32 to vector<1x256xf32>
    %c0_304 = arith.constant 0 : index
    %c0_305 = arith.constant 0 : index
    %c0_306 = arith.constant 0 : index
    %637 = vector.load %arg3[%c0_304, %c0_305, %c0_306] : memref<2x3x256xf32, #tpu.memory_space<vmem>>, vector<1x3x256xf32>
    %638 = vector.shape_cast %637 : vector<1x3x256xf32> to vector<3x256xf32>
    %c0_307 = arith.constant 0 : index
    %c0_308 = arith.constant 0 : index
    %c0_309 = arith.constant 0 : index
    %639 = vector.load %arg4[%c0_307, %c0_308, %c0_309] : memref<2x3x256xf32, #tpu.memory_space<vmem>>, vector<1x3x256xf32>
    %640 = vector.shape_cast %639 : vector<1x3x256xf32> to vector<3x256xf32>
    %c18_i32_310 = arith.constant 18 : i32
    %641 = tpu.dynamic_rotate %638 by %c18_i32_310 dim 1 : vector<3x256xf32>, i32 -> vector<3x256xf32>
    %642 = arith.subf %638, %641 : vector<3x256xf32>
    %c18_i32_311 = arith.constant 18 : i32
    %643 = tpu.dynamic_rotate %640 by %c18_i32_311 dim 1 : vector<3x256xf32>, i32 -> vector<3x256xf32>
    %644 = arith.subf %640, %643 : vector<3x256xf32>
    %645 = arith.mulf %642, %642 : vector<3x256xf32>
    %cst_312 = arith.constant dense<0.000000e+00> : vector<256xf32>
    %646 = vector.multi_reduction <add>, %645, %cst_312 [0] : vector<3x256xf32> to vector<256xf32>
    %647 = vector.shape_cast %646 : vector<256xf32> to vector<1x256xf32>
    %cst_313 = arith.constant -5.000000e-03 : f32
    %648 = vector.broadcast %cst_313 : f32 to vector<1x256xf32>
    %649 = arith.mulf %647, %648 : vector<1x256xf32>
    %650 = math.exp %649 : vector<1x256xf32>
    %cst_314 = arith.constant 0.000000e+00 : f32
    %651 = vector.broadcast %cst_314 : f32 to vector<1x256xf32>
    %652 = arith.select %634, %650, %651 : vector<1x256xi1>, vector<1x256xf32>
    %653 = arith.addf %635, %652 : vector<1x256xf32>
    %654 = math.absf %644 : vector<3x256xf32>
    %cst_315 = arith.constant dense<0.000000e+00> : vector<256xf32>
    %655 = vector.multi_reduction <add>, %654, %cst_315 [0] : vector<3x256xf32> to vector<256xf32>
    %656 = vector.shape_cast %655 : vector<256xf32> to vector<1x256xf32>
    %cst_316 = arith.constant 0.000000e+00 : f32
    %657 = vector.broadcast %cst_316 : f32 to vector<1x256xf32>
    %658 = arith.select %634, %656, %657 : vector<1x256xi1>, vector<1x256xf32>
    %659 = arith.addf %636, %658 : vector<1x256xf32>
    %c1_317 = arith.constant 1 : index
    %c0_318 = arith.constant 0 : index
    %c0_319 = arith.constant 0 : index
    %660 = vector.load %arg3[%c1_317, %c0_318, %c0_319] : memref<2x3x256xf32, #tpu.memory_space<vmem>>, vector<1x3x256xf32>
    %661 = vector.shape_cast %660 : vector<1x3x256xf32> to vector<3x256xf32>
    %c1_320 = arith.constant 1 : index
    %c0_321 = arith.constant 0 : index
    %c0_322 = arith.constant 0 : index
    %662 = vector.load %arg4[%c1_320, %c0_321, %c0_322] : memref<2x3x256xf32, #tpu.memory_space<vmem>>, vector<1x3x256xf32>
    %663 = vector.shape_cast %662 : vector<1x3x256xf32> to vector<3x256xf32>
    %c18_i32_323 = arith.constant 18 : i32
    %664 = tpu.dynamic_rotate %661 by %c18_i32_323 dim 1 : vector<3x256xf32>, i32 -> vector<3x256xf32>
    %665 = arith.subf %661, %664 : vector<3x256xf32>
    %c18_i32_324 = arith.constant 18 : i32
    %666 = tpu.dynamic_rotate %663 by %c18_i32_324 dim 1 : vector<3x256xf32>, i32 -> vector<3x256xf32>
    %667 = arith.subf %663, %666 : vector<3x256xf32>
    %668 = arith.mulf %665, %665 : vector<3x256xf32>
    %cst_325 = arith.constant dense<0.000000e+00> : vector<256xf32>
    %669 = vector.multi_reduction <add>, %668, %cst_325 [0] : vector<3x256xf32> to vector<256xf32>
    %670 = vector.shape_cast %669 : vector<256xf32> to vector<1x256xf32>
    %cst_326 = arith.constant -5.000000e-03 : f32
    %671 = vector.broadcast %cst_326 : f32 to vector<1x256xf32>
    %672 = arith.mulf %670, %671 : vector<1x256xf32>
    %673 = math.exp %672 : vector<1x256xf32>
    %cst_327 = arith.constant 0.000000e+00 : f32
    %674 = vector.broadcast %cst_327 : f32 to vector<1x256xf32>
    %675 = arith.select %634, %673, %674 : vector<1x256xi1>, vector<1x256xf32>
    %676 = arith.addf %653, %675 : vector<1x256xf32>
    %677 = math.absf %667 : vector<3x256xf32>
    %cst_328 = arith.constant dense<0.000000e+00> : vector<256xf32>
    %678 = vector.multi_reduction <add>, %677, %cst_328 [0] : vector<3x256xf32> to vector<256xf32>
    %679 = vector.shape_cast %678 : vector<256xf32> to vector<1x256xf32>
    %cst_329 = arith.constant 0.000000e+00 : f32
    %680 = vector.broadcast %cst_329 : f32 to vector<1x256xf32>
    %681 = arith.select %634, %679, %680 : vector<1x256xi1>, vector<1x256xf32>
    %682 = arith.addf %659, %681 : vector<1x256xf32>
    %683 = vector.extract_strided_slice %676 {offsets = [0, 0], sizes = [1, 128], strides = [1, 1]} : vector<1x256xf32> to vector<1x128xf32>
    %684 = vector.extract_strided_slice %682 {offsets = [0, 0], sizes = [1, 128], strides = [1, 1]} : vector<1x256xf32> to vector<1x128xf32>
    %685 = vector.extract_strided_slice %676 {offsets = [0, 128], sizes = [1, 128], strides = [1, 1]} : vector<1x256xf32> to vector<1x128xf32>
    %686 = arith.addf %683, %685 : vector<1x128xf32>
    %687 = vector.extract_strided_slice %682 {offsets = [0, 128], sizes = [1, 128], strides = [1, 1]} : vector<1x256xf32> to vector<1x128xf32>
    %688 = arith.addf %684, %687 : vector<1x128xf32>
    %c0_330 = arith.constant 0 : index
    %c8 = arith.constant 8 : index
    %c0_331 = arith.constant 0 : index
    %689 = vector.load %arg5[%c0_330, %c8, %c0_331] : memref<1x24x128xf32, #tpu.memory_space<vmem>>, vector<1x1x128xf32>
    %690 = vector.shape_cast %689 : vector<1x1x128xf32> to vector<1x128xf32>
    %691 = vector.shape_cast %686 : vector<1x128xf32> to vector<1x1x128xf32>
    tpu.vector_store %arg5[%c0_330, %c8, %c0_331], %691 {strides = array<i32>} : memref<1x24x128xf32, #tpu.memory_space<vmem>>, vector<1x1x128xf32>,
    %c0_332 = arith.constant 0 : index
    %c20 = arith.constant 20 : index
    %c0_333 = arith.constant 0 : index
    %692 = vector.load %arg5[%c0_332, %c20, %c0_333] : memref<1x24x128xf32, #tpu.memory_space<vmem>>, vector<1x1x128xf32>
    %693 = vector.shape_cast %692 : vector<1x1x128xf32> to vector<1x128xf32>
    %694 = vector.shape_cast %688 : vector<1x128xf32> to vector<1x1x128xf32>
    tpu.vector_store %arg5[%c0_332, %c20, %c0_333], %694 {strides = array<i32>} : memref<1x24x128xf32, #tpu.memory_space<vmem>>, vector<1x1x128xf32>,
    %c14_i32 = arith.constant 14 : i32
    %695 = tpu.dynamic_rotate %0 by %c14_i32 dim 1 : vector<1x256xi32>, i32 -> vector<1x256xi32>
    %c14_i32_334 = arith.constant 14 : i32
    %696 = tpu.dynamic_rotate %1 by %c14_i32_334 dim 1 : vector<1x256xi32>, i32 -> vector<1x256xi32>
    %c1_i32_335 = arith.constant 1 : i32
    %697 = vector.broadcast %c1_i32_335 : i32 to vector<1x256xi32>
    %698 = arith.subi %0, %697 : vector<1x256xi32>
    %699 = arith.cmpi eq, %695, %698 : vector<1x256xi32>
    %c-2_i32 = arith.constant -2 : i32
    %700 = vector.broadcast %c-2_i32 : i32 to vector<1x256xi32>
    %701 = arith.subi %1, %700 : vector<1x256xi32>
    %702 = arith.cmpi eq, %696, %701 : vector<1x256xi32>
    %703 = arith.andi %699, %702 : vector<1x256xi1>
    %c1_i32_336 = arith.constant 1 : i32
    %704 = vector.broadcast %c1_i32_336 : i32 to vector<1x256xi32>
    %705 = arith.addi %0, %704 : vector<1x256xi32>
    %706 = arith.cmpi eq, %695, %705 : vector<1x256xi32>
    %c-2_i32_337 = arith.constant -2 : i32
    %707 = vector.broadcast %c-2_i32_337 : i32 to vector<1x256xi32>
    %708 = arith.addi %1, %707 : vector<1x256xi32>
    %709 = arith.cmpi eq, %696, %708 : vector<1x256xi32>
    %710 = arith.andi %706, %709 : vector<1x256xi1>
    %711 = arith.ori %703, %710 : vector<1x256xi1>
    %cst_338 = arith.constant 0.000000e+00 : f32
    %712 = vector.broadcast %cst_338 : f32 to vector<1x256xf32>
    %cst_339 = arith.constant 0.000000e+00 : f32
    %713 = vector.broadcast %cst_339 : f32 to vector<1x256xf32>
    %c0_340 = arith.constant 0 : index
    %c0_341 = arith.constant 0 : index
    %c0_342 = arith.constant 0 : index
    %714 = vector.load %arg3[%c0_340, %c0_341, %c0_342] : memref<2x3x256xf32, #tpu.memory_space<vmem>>, vector<1x3x256xf32>
    %715 = vector.shape_cast %714 : vector<1x3x256xf32> to vector<3x256xf32>
    %c0_343 = arith.constant 0 : index
    %c0_344 = arith.constant 0 : index
    %c0_345 = arith.constant 0 : index
    %716 = vector.load %arg4[%c0_343, %c0_344, %c0_345] : memref<2x3x256xf32, #tpu.memory_space<vmem>>, vector<1x3x256xf32>
    %717 = vector.shape_cast %716 : vector<1x3x256xf32> to vector<3x256xf32>
    %c14_i32_346 = arith.constant 14 : i32
    %718 = tpu.dynamic_rotate %715 by %c14_i32_346 dim 1 : vector<3x256xf32>, i32 -> vector<3x256xf32>
    %719 = arith.subf %715, %718 : vector<3x256xf32>
    %c14_i32_347 = arith.constant 14 : i32
    %720 = tpu.dynamic_rotate %717 by %c14_i32_347 dim 1 : vector<3x256xf32>, i32 -> vector<3x256xf32>
    %721 = arith.subf %717, %720 : vector<3x256xf32>
    %722 = arith.mulf %719, %719 : vector<3x256xf32>
    %cst_348 = arith.constant dense<0.000000e+00> : vector<256xf32>
    %723 = vector.multi_reduction <add>, %722, %cst_348 [0] : vector<3x256xf32> to vector<256xf32>
    %724 = vector.shape_cast %723 : vector<256xf32> to vector<1x256xf32>
    %cst_349 = arith.constant -5.000000e-03 : f32
    %725 = vector.broadcast %cst_349 : f32 to vector<1x256xf32>
    %726 = arith.mulf %724, %725 : vector<1x256xf32>
    %727 = math.exp %726 : vector<1x256xf32>
    %cst_350 = arith.constant 0.000000e+00 : f32
    %728 = vector.broadcast %cst_350 : f32 to vector<1x256xf32>
    %729 = arith.select %711, %727, %728 : vector<1x256xi1>, vector<1x256xf32>
    %730 = arith.addf %712, %729 : vector<1x256xf32>
    %731 = math.absf %721 : vector<3x256xf32>
    %cst_351 = arith.constant dense<0.000000e+00> : vector<256xf32>
    %732 = vector.multi_reduction <add>, %731, %cst_351 [0] : vector<3x256xf32> to vector<256xf32>
    %733 = vector.shape_cast %732 : vector<256xf32> to vector<1x256xf32>
    %cst_352 = arith.constant 0.000000e+00 : f32
    %734 = vector.broadcast %cst_352 : f32 to vector<1x256xf32>
    %735 = arith.select %711, %733, %734 : vector<1x256xi1>, vector<1x256xf32>
    %736 = arith.addf %713, %735 : vector<1x256xf32>
    %c1_353 = arith.constant 1 : index
    %c0_354 = arith.constant 0 : index
    %c0_355 = arith.constant 0 : index
    %737 = vector.load %arg3[%c1_353, %c0_354, %c0_355] : memref<2x3x256xf32, #tpu.memory_space<vmem>>, vector<1x3x256xf32>
    %738 = vector.shape_cast %737 : vector<1x3x256xf32> to vector<3x256xf32>
    %c1_356 = arith.constant 1 : index
    %c0_357 = arith.constant 0 : index
    %c0_358 = arith.constant 0 : index
    %739 = vector.load %arg4[%c1_356, %c0_357, %c0_358] : memref<2x3x256xf32, #tpu.memory_space<vmem>>, vector<1x3x256xf32>
    %740 = vector.shape_cast %739 : vector<1x3x256xf32> to vector<3x256xf32>
    %c14_i32_359 = arith.constant 14 : i32
    %741 = tpu.dynamic_rotate %738 by %c14_i32_359 dim 1 : vector<3x256xf32>, i32 -> vector<3x256xf32>
    %742 = arith.subf %738, %741 : vector<3x256xf32>
    %c14_i32_360 = arith.constant 14 : i32
    %743 = tpu.dynamic_rotate %740 by %c14_i32_360 dim 1 : vector<3x256xf32>, i32 -> vector<3x256xf32>
    %744 = arith.subf %740, %743 : vector<3x256xf32>
    %745 = arith.mulf %742, %742 : vector<3x256xf32>
    %cst_361 = arith.constant dense<0.000000e+00> : vector<256xf32>
    %746 = vector.multi_reduction <add>, %745, %cst_361 [0] : vector<3x256xf32> to vector<256xf32>
    %747 = vector.shape_cast %746 : vector<256xf32> to vector<1x256xf32>
    %cst_362 = arith.constant -5.000000e-03 : f32
    %748 = vector.broadcast %cst_362 : f32 to vector<1x256xf32>
    %749 = arith.mulf %747, %748 : vector<1x256xf32>
    %750 = math.exp %749 : vector<1x256xf32>
    %cst_363 = arith.constant 0.000000e+00 : f32
    %751 = vector.broadcast %cst_363 : f32 to vector<1x256xf32>
    %752 = arith.select %711, %750, %751 : vector<1x256xi1>, vector<1x256xf32>
    %753 = arith.addf %730, %752 : vector<1x256xf32>
    %754 = math.absf %744 : vector<3x256xf32>
    %cst_364 = arith.constant dense<0.000000e+00> : vector<256xf32>
    %755 = vector.multi_reduction <add>, %754, %cst_364 [0] : vector<3x256xf32> to vector<256xf32>
    %756 = vector.shape_cast %755 : vector<256xf32> to vector<1x256xf32>
    %cst_365 = arith.constant 0.000000e+00 : f32
    %757 = vector.broadcast %cst_365 : f32 to vector<1x256xf32>
    %758 = arith.select %711, %756, %757 : vector<1x256xi1>, vector<1x256xf32>
    %759 = arith.addf %736, %758 : vector<1x256xf32>
    %760 = vector.extract_strided_slice %753 {offsets = [0, 0], sizes = [1, 128], strides = [1, 1]} : vector<1x256xf32> to vector<1x128xf32>
    %761 = vector.extract_strided_slice %759 {offsets = [0, 0], sizes = [1, 128], strides = [1, 1]} : vector<1x256xf32> to vector<1x128xf32>
    %762 = vector.extract_strided_slice %753 {offsets = [0, 128], sizes = [1, 128], strides = [1, 1]} : vector<1x256xf32> to vector<1x128xf32>
    %763 = arith.addf %760, %762 : vector<1x128xf32>
    %764 = vector.extract_strided_slice %759 {offsets = [0, 128], sizes = [1, 128], strides = [1, 1]} : vector<1x256xf32> to vector<1x128xf32>
    %765 = arith.addf %761, %764 : vector<1x128xf32>
    %c0_366 = arith.constant 0 : index
    %c9 = arith.constant 9 : index
    %c0_367 = arith.constant 0 : index
    %766 = vector.load %arg5[%c0_366, %c9, %c0_367] : memref<1x24x128xf32, #tpu.memory_space<vmem>>, vector<1x1x128xf32>
    %767 = vector.shape_cast %766 : vector<1x1x128xf32> to vector<1x128xf32>
    %768 = vector.shape_cast %763 : vector<1x128xf32> to vector<1x1x128xf32>
    tpu.vector_store %arg5[%c0_366, %c9, %c0_367], %768 {strides = array<i32>} : memref<1x24x128xf32, #tpu.memory_space<vmem>>, vector<1x1x128xf32>,
    %c0_368 = arith.constant 0 : index
    %c21 = arith.constant 21 : index
    %c0_369 = arith.constant 0 : index
    %769 = vector.load %arg5[%c0_368, %c21, %c0_369] : memref<1x24x128xf32, #tpu.memory_space<vmem>>, vector<1x1x128xf32>
    %770 = vector.shape_cast %769 : vector<1x1x128xf32> to vector<1x128xf32>
    %771 = vector.shape_cast %765 : vector<1x128xf32> to vector<1x1x128xf32>
    tpu.vector_store %arg5[%c0_368, %c21, %c0_369], %771 {strides = array<i32>} : memref<1x24x128xf32, #tpu.memory_space<vmem>>, vector<1x1x128xf32>,
    %c34_i32 = arith.constant 34 : i32
    %772 = tpu.dynamic_rotate %0 by %c34_i32 dim 1 : vector<1x256xi32>, i32 -> vector<1x256xi32>
    %c34_i32_370 = arith.constant 34 : i32
    %773 = tpu.dynamic_rotate %1 by %c34_i32_370 dim 1 : vector<1x256xi32>, i32 -> vector<1x256xi32>
    %c2_i32_371 = arith.constant 2 : i32
    %774 = vector.broadcast %c2_i32_371 : i32 to vector<1x256xi32>
    %775 = arith.subi %0, %774 : vector<1x256xi32>
    %776 = arith.cmpi eq, %772, %775 : vector<1x256xi32>
    %c2_i32_372 = arith.constant 2 : i32
    %777 = vector.broadcast %c2_i32_372 : i32 to vector<1x256xi32>
    %778 = arith.subi %1, %777 : vector<1x256xi32>
    %779 = arith.cmpi eq, %773, %778 : vector<1x256xi32>
    %780 = arith.andi %776, %779 : vector<1x256xi1>
    %c2_i32_373 = arith.constant 2 : i32
    %781 = vector.broadcast %c2_i32_373 : i32 to vector<1x256xi32>
    %782 = arith.addi %0, %781 : vector<1x256xi32>
    %783 = arith.cmpi eq, %772, %782 : vector<1x256xi32>
    %c2_i32_374 = arith.constant 2 : i32
    %784 = vector.broadcast %c2_i32_374 : i32 to vector<1x256xi32>
    %785 = arith.addi %1, %784 : vector<1x256xi32>
    %786 = arith.cmpi eq, %773, %785 : vector<1x256xi32>
    %787 = arith.andi %783, %786 : vector<1x256xi1>
    %788 = arith.ori %780, %787 : vector<1x256xi1>
    %cst_375 = arith.constant 0.000000e+00 : f32
    %789 = vector.broadcast %cst_375 : f32 to vector<1x256xf32>
    %cst_376 = arith.constant 0.000000e+00 : f32
    %790 = vector.broadcast %cst_376 : f32 to vector<1x256xf32>
    %c0_377 = arith.constant 0 : index
    %c0_378 = arith.constant 0 : index
    %c0_379 = arith.constant 0 : index
    %791 = vector.load %arg3[%c0_377, %c0_378, %c0_379] : memref<2x3x256xf32, #tpu.memory_space<vmem>>, vector<1x3x256xf32>
    %792 = vector.shape_cast %791 : vector<1x3x256xf32> to vector<3x256xf32>
    %c0_380 = arith.constant 0 : index
    %c0_381 = arith.constant 0 : index
    %c0_382 = arith.constant 0 : index
    %793 = vector.load %arg4[%c0_380, %c0_381, %c0_382] : memref<2x3x256xf32, #tpu.memory_space<vmem>>, vector<1x3x256xf32>
    %794 = vector.shape_cast %793 : vector<1x3x256xf32> to vector<3x256xf32>
    %c34_i32_383 = arith.constant 34 : i32
    %795 = tpu.dynamic_rotate %792 by %c34_i32_383 dim 1 : vector<3x256xf32>, i32 -> vector<3x256xf32>
    %796 = arith.subf %792, %795 : vector<3x256xf32>
    %c34_i32_384 = arith.constant 34 : i32
    %797 = tpu.dynamic_rotate %794 by %c34_i32_384 dim 1 : vector<3x256xf32>, i32 -> vector<3x256xf32>
    %798 = arith.subf %794, %797 : vector<3x256xf32>
    %799 = arith.mulf %796, %796 : vector<3x256xf32>
    %cst_385 = arith.constant dense<0.000000e+00> : vector<256xf32>
    %800 = vector.multi_reduction <add>, %799, %cst_385 [0] : vector<3x256xf32> to vector<256xf32>
    %801 = vector.shape_cast %800 : vector<256xf32> to vector<1x256xf32>
    %cst_386 = arith.constant -5.000000e-03 : f32
    %802 = vector.broadcast %cst_386 : f32 to vector<1x256xf32>
    %803 = arith.mulf %801, %802 : vector<1x256xf32>
    %804 = math.exp %803 : vector<1x256xf32>
    %cst_387 = arith.constant 0.000000e+00 : f32
    %805 = vector.broadcast %cst_387 : f32 to vector<1x256xf32>
    %806 = arith.select %788, %804, %805 : vector<1x256xi1>, vector<1x256xf32>
    %807 = arith.addf %789, %806 : vector<1x256xf32>
    %808 = math.absf %798 : vector<3x256xf32>
    %cst_388 = arith.constant dense<0.000000e+00> : vector<256xf32>
    %809 = vector.multi_reduction <add>, %808, %cst_388 [0] : vector<3x256xf32> to vector<256xf32>
    %810 = vector.shape_cast %809 : vector<256xf32> to vector<1x256xf32>
    %cst_389 = arith.constant 0.000000e+00 : f32
    %811 = vector.broadcast %cst_389 : f32 to vector<1x256xf32>
    %812 = arith.select %788, %810, %811 : vector<1x256xi1>, vector<1x256xf32>
    %813 = arith.addf %790, %812 : vector<1x256xf32>
    %c1_390 = arith.constant 1 : index
    %c0_391 = arith.constant 0 : index
    %c0_392 = arith.constant 0 : index
    %814 = vector.load %arg3[%c1_390, %c0_391, %c0_392] : memref<2x3x256xf32, #tpu.memory_space<vmem>>, vector<1x3x256xf32>
    %815 = vector.shape_cast %814 : vector<1x3x256xf32> to vector<3x256xf32>
    %c1_393 = arith.constant 1 : index
    %c0_394 = arith.constant 0 : index
    %c0_395 = arith.constant 0 : index
    %816 = vector.load %arg4[%c1_393, %c0_394, %c0_395] : memref<2x3x256xf32, #tpu.memory_space<vmem>>, vector<1x3x256xf32>
    %817 = vector.shape_cast %816 : vector<1x3x256xf32> to vector<3x256xf32>
    %c34_i32_396 = arith.constant 34 : i32
    %818 = tpu.dynamic_rotate %815 by %c34_i32_396 dim 1 : vector<3x256xf32>, i32 -> vector<3x256xf32>
    %819 = arith.subf %815, %818 : vector<3x256xf32>
    %c34_i32_397 = arith.constant 34 : i32
    %820 = tpu.dynamic_rotate %817 by %c34_i32_397 dim 1 : vector<3x256xf32>, i32 -> vector<3x256xf32>
    %821 = arith.subf %817, %820 : vector<3x256xf32>
    %822 = arith.mulf %819, %819 : vector<3x256xf32>
    %cst_398 = arith.constant dense<0.000000e+00> : vector<256xf32>
    %823 = vector.multi_reduction <add>, %822, %cst_398 [0] : vector<3x256xf32> to vector<256xf32>
    %824 = vector.shape_cast %823 : vector<256xf32> to vector<1x256xf32>
    %cst_399 = arith.constant -5.000000e-03 : f32
    %825 = vector.broadcast %cst_399 : f32 to vector<1x256xf32>
    %826 = arith.mulf %824, %825 : vector<1x256xf32>
    %827 = math.exp %826 : vector<1x256xf32>
    %cst_400 = arith.constant 0.000000e+00 : f32
    %828 = vector.broadcast %cst_400 : f32 to vector<1x256xf32>
    %829 = arith.select %788, %827, %828 : vector<1x256xi1>, vector<1x256xf32>
    %830 = arith.addf %807, %829 : vector<1x256xf32>
    %831 = math.absf %821 : vector<3x256xf32>
    %cst_401 = arith.constant dense<0.000000e+00> : vector<256xf32>
    %832 = vector.multi_reduction <add>, %831, %cst_401 [0] : vector<3x256xf32> to vector<256xf32>
    %833 = vector.shape_cast %832 : vector<256xf32> to vector<1x256xf32>
    %cst_402 = arith.constant 0.000000e+00 : f32
    %834 = vector.broadcast %cst_402 : f32 to vector<1x256xf32>
    %835 = arith.select %788, %833, %834 : vector<1x256xi1>, vector<1x256xf32>
    %836 = arith.addf %813, %835 : vector<1x256xf32>
    %837 = vector.extract_strided_slice %830 {offsets = [0, 0], sizes = [1, 128], strides = [1, 1]} : vector<1x256xf32> to vector<1x128xf32>
    %838 = vector.extract_strided_slice %836 {offsets = [0, 0], sizes = [1, 128], strides = [1, 1]} : vector<1x256xf32> to vector<1x128xf32>
    %839 = vector.extract_strided_slice %830 {offsets = [0, 128], sizes = [1, 128], strides = [1, 1]} : vector<1x256xf32> to vector<1x128xf32>
    %840 = arith.addf %837, %839 : vector<1x128xf32>
    %841 = vector.extract_strided_slice %836 {offsets = [0, 128], sizes = [1, 128], strides = [1, 1]} : vector<1x256xf32> to vector<1x128xf32>
    %842 = arith.addf %838, %841 : vector<1x128xf32>
    %c0_403 = arith.constant 0 : index
    %c10 = arith.constant 10 : index
    %c0_404 = arith.constant 0 : index
    %843 = vector.load %arg5[%c0_403, %c10, %c0_404] : memref<1x24x128xf32, #tpu.memory_space<vmem>>, vector<1x1x128xf32>
    %844 = vector.shape_cast %843 : vector<1x1x128xf32> to vector<1x128xf32>
    %845 = vector.shape_cast %840 : vector<1x128xf32> to vector<1x1x128xf32>
    tpu.vector_store %arg5[%c0_403, %c10, %c0_404], %845 {strides = array<i32>} : memref<1x24x128xf32, #tpu.memory_space<vmem>>, vector<1x1x128xf32>,
    %c0_405 = arith.constant 0 : index
    %c22 = arith.constant 22 : index
    %c0_406 = arith.constant 0 : index
    %846 = vector.load %arg5[%c0_405, %c22, %c0_406] : memref<1x24x128xf32, #tpu.memory_space<vmem>>, vector<1x1x128xf32>
    %847 = vector.shape_cast %846 : vector<1x1x128xf32> to vector<1x128xf32>
    %848 = vector.shape_cast %842 : vector<1x128xf32> to vector<1x1x128xf32>
    tpu.vector_store %arg5[%c0_405, %c22, %c0_406], %848 {strides = array<i32>} : memref<1x24x128xf32, #tpu.memory_space<vmem>>, vector<1x1x128xf32>,
    %c30_i32 = arith.constant 30 : i32
    %849 = tpu.dynamic_rotate %0 by %c30_i32 dim 1 : vector<1x256xi32>, i32 -> vector<1x256xi32>
    %c30_i32_407 = arith.constant 30 : i32
    %850 = tpu.dynamic_rotate %1 by %c30_i32_407 dim 1 : vector<1x256xi32>, i32 -> vector<1x256xi32>
    %c2_i32_408 = arith.constant 2 : i32
    %851 = vector.broadcast %c2_i32_408 : i32 to vector<1x256xi32>
    %852 = arith.subi %0, %851 : vector<1x256xi32>
    %853 = arith.cmpi eq, %849, %852 : vector<1x256xi32>
    %c-2_i32_409 = arith.constant -2 : i32
    %854 = vector.broadcast %c-2_i32_409 : i32 to vector<1x256xi32>
    %855 = arith.subi %1, %854 : vector<1x256xi32>
    %856 = arith.cmpi eq, %850, %855 : vector<1x256xi32>
    %857 = arith.andi %853, %856 : vector<1x256xi1>
    %c2_i32_410 = arith.constant 2 : i32
    %858 = vector.broadcast %c2_i32_410 : i32 to vector<1x256xi32>
    %859 = arith.addi %0, %858 : vector<1x256xi32>
    %860 = arith.cmpi eq, %849, %859 : vector<1x256xi32>
    %c-2_i32_411 = arith.constant -2 : i32
    %861 = vector.broadcast %c-2_i32_411 : i32 to vector<1x256xi32>
    %862 = arith.addi %1, %861 : vector<1x256xi32>
    %863 = arith.cmpi eq, %850, %862 : vector<1x256xi32>
    %864 = arith.andi %860, %863 : vector<1x256xi1>
    %865 = arith.ori %857, %864 : vector<1x256xi1>
    %cst_412 = arith.constant 0.000000e+00 : f32
    %866 = vector.broadcast %cst_412 : f32 to vector<1x256xf32>
    %cst_413 = arith.constant 0.000000e+00 : f32
    %867 = vector.broadcast %cst_413 : f32 to vector<1x256xf32>
    %c0_414 = arith.constant 0 : index
    %c0_415 = arith.constant 0 : index
    %c0_416 = arith.constant 0 : index
    %868 = vector.load %arg3[%c0_414, %c0_415, %c0_416] : memref<2x3x256xf32, #tpu.memory_space<vmem>>, vector<1x3x256xf32>
    %869 = vector.shape_cast %868 : vector<1x3x256xf32> to vector<3x256xf32>
    %c0_417 = arith.constant 0 : index
    %c0_418 = arith.constant 0 : index
    %c0_419 = arith.constant 0 : index
    %870 = vector.load %arg4[%c0_417, %c0_418, %c0_419] : memref<2x3x256xf32, #tpu.memory_space<vmem>>, vector<1x3x256xf32>
    %871 = vector.shape_cast %870 : vector<1x3x256xf32> to vector<3x256xf32>
    %c30_i32_420 = arith.constant 30 : i32
    %872 = tpu.dynamic_rotate %869 by %c30_i32_420 dim 1 : vector<3x256xf32>, i32 -> vector<3x256xf32>
    %873 = arith.subf %869, %872 : vector<3x256xf32>
    %c30_i32_421 = arith.constant 30 : i32
    %874 = tpu.dynamic_rotate %871 by %c30_i32_421 dim 1 : vector<3x256xf32>, i32 -> vector<3x256xf32>
    %875 = arith.subf %871, %874 : vector<3x256xf32>
    %876 = arith.mulf %873, %873 : vector<3x256xf32>
    %cst_422 = arith.constant dense<0.000000e+00> : vector<256xf32>
    %877 = vector.multi_reduction <add>, %876, %cst_422 [0] : vector<3x256xf32> to vector<256xf32>
    %878 = vector.shape_cast %877 : vector<256xf32> to vector<1x256xf32>
    %cst_423 = arith.constant -5.000000e-03 : f32
    %879 = vector.broadcast %cst_423 : f32 to vector<1x256xf32>
    %880 = arith.mulf %878, %879 : vector<1x256xf32>
    %881 = math.exp %880 : vector<1x256xf32>
    %cst_424 = arith.constant 0.000000e+00 : f32
    %882 = vector.broadcast %cst_424 : f32 to vector<1x256xf32>
    %883 = arith.select %865, %881, %882 : vector<1x256xi1>, vector<1x256xf32>
    %884 = arith.addf %866, %883 : vector<1x256xf32>
    %885 = math.absf %875 : vector<3x256xf32>
    %cst_425 = arith.constant dense<0.000000e+00> : vector<256xf32>
    %886 = vector.multi_reduction <add>, %885, %cst_425 [0] : vector<3x256xf32> to vector<256xf32>
    %887 = vector.shape_cast %886 : vector<256xf32> to vector<1x256xf32>
    %cst_426 = arith.constant 0.000000e+00 : f32
    %888 = vector.broadcast %cst_426 : f32 to vector<1x256xf32>
    %889 = arith.select %865, %887, %888 : vector<1x256xi1>, vector<1x256xf32>
    %890 = arith.addf %867, %889 : vector<1x256xf32>
    %c1_427 = arith.constant 1 : index
    %c0_428 = arith.constant 0 : index
    %c0_429 = arith.constant 0 : index
    %891 = vector.load %arg3[%c1_427, %c0_428, %c0_429] : memref<2x3x256xf32, #tpu.memory_space<vmem>>, vector<1x3x256xf32>
    %892 = vector.shape_cast %891 : vector<1x3x256xf32> to vector<3x256xf32>
    %c1_430 = arith.constant 1 : index
    %c0_431 = arith.constant 0 : index
    %c0_432 = arith.constant 0 : index
    %893 = vector.load %arg4[%c1_430, %c0_431, %c0_432] : memref<2x3x256xf32, #tpu.memory_space<vmem>>, vector<1x3x256xf32>
    %894 = vector.shape_cast %893 : vector<1x3x256xf32> to vector<3x256xf32>
    %c30_i32_433 = arith.constant 30 : i32
    %895 = tpu.dynamic_rotate %892 by %c30_i32_433 dim 1 : vector<3x256xf32>, i32 -> vector<3x256xf32>
    %896 = arith.subf %892, %895 : vector<3x256xf32>
    %c30_i32_434 = arith.constant 30 : i32
    %897 = tpu.dynamic_rotate %894 by %c30_i32_434 dim 1 : vector<3x256xf32>, i32 -> vector<3x256xf32>
    %898 = arith.subf %894, %897 : vector<3x256xf32>
    %899 = arith.mulf %896, %896 : vector<3x256xf32>
    %cst_435 = arith.constant dense<0.000000e+00> : vector<256xf32>
    %900 = vector.multi_reduction <add>, %899, %cst_435 [0] : vector<3x256xf32> to vector<256xf32>
    %901 = vector.shape_cast %900 : vector<256xf32> to vector<1x256xf32>
    %cst_436 = arith.constant -5.000000e-03 : f32
    %902 = vector.broadcast %cst_436 : f32 to vector<1x256xf32>
    %903 = arith.mulf %901, %902 : vector<1x256xf32>
    %904 = math.exp %903 : vector<1x256xf32>
    %cst_437 = arith.constant 0.000000e+00 : f32
    %905 = vector.broadcast %cst_437 : f32 to vector<1x256xf32>
    %906 = arith.select %865, %904, %905 : vector<1x256xi1>, vector<1x256xf32>
    %907 = arith.addf %884, %906 : vector<1x256xf32>
    %908 = math.absf %898 : vector<3x256xf32>
    %cst_438 = arith.constant dense<0.000000e+00> : vector<256xf32>
    %909 = vector.multi_reduction <add>, %908, %cst_438 [0] : vector<3x256xf32> to vector<256xf32>
    %910 = vector.shape_cast %909 : vector<256xf32> to vector<1x256xf32>
    %cst_439 = arith.constant 0.000000e+00 : f32
    %911 = vector.broadcast %cst_439 : f32 to vector<1x256xf32>
    %912 = arith.select %865, %910, %911 : vector<1x256xi1>, vector<1x256xf32>
    %913 = arith.addf %890, %912 : vector<1x256xf32>
    %914 = vector.extract_strided_slice %907 {offsets = [0, 0], sizes = [1, 128], strides = [1, 1]} : vector<1x256xf32> to vector<1x128xf32>
    %915 = vector.extract_strided_slice %913 {offsets = [0, 0], sizes = [1, 128], strides = [1, 1]} : vector<1x256xf32> to vector<1x128xf32>
    %916 = vector.extract_strided_slice %907 {offsets = [0, 128], sizes = [1, 128], strides = [1, 1]} : vector<1x256xf32> to vector<1x128xf32>
    %917 = arith.addf %914, %916 : vector<1x128xf32>
    %918 = vector.extract_strided_slice %913 {offsets = [0, 128], sizes = [1, 128], strides = [1, 1]} : vector<1x256xf32> to vector<1x128xf32>
    %919 = arith.addf %915, %918 : vector<1x128xf32>
    %c0_440 = arith.constant 0 : index
    %c11 = arith.constant 11 : index
    %c0_441 = arith.constant 0 : index
    %920 = vector.load %arg5[%c0_440, %c11, %c0_441] : memref<1x24x128xf32, #tpu.memory_space<vmem>>, vector<1x1x128xf32>
    %921 = vector.shape_cast %920 : vector<1x1x128xf32> to vector<1x128xf32>
    %922 = vector.shape_cast %917 : vector<1x128xf32> to vector<1x1x128xf32>
    tpu.vector_store %arg5[%c0_440, %c11, %c0_441], %922 {strides = array<i32>} : memref<1x24x128xf32, #tpu.memory_space<vmem>>, vector<1x1x128xf32>,
    %c0_442 = arith.constant 0 : index
    %c23 = arith.constant 23 : index
    %c0_443 = arith.constant 0 : index
    %923 = vector.load %arg5[%c0_442, %c23, %c0_443] : memref<1x24x128xf32, #tpu.memory_space<vmem>>, vector<1x1x128xf32>
    %924 = vector.shape_cast %923 : vector<1x1x128xf32> to vector<1x128xf32>
    %925 = vector.shape_cast %919 : vector<1x128xf32> to vector<1x1x128xf32>
    tpu.vector_store %arg5[%c0_442, %c23, %c0_443], %925 {strides = array<i32>} : memref<1x24x128xf32, #tpu.memory_space<vmem>>, vector<1x1x128xf32>,
    return
  }
  func.func @transform_0(%arg0: i32) -> (i32, i32) {
    %c0_i32 = arith.constant 0 : i32
    %c0_i32_0 = arith.constant 0 : i32
    %c0_i32_1 = arith.constant 0 : i32
    return %c0_i32, %c0_i32_0 : i32, i32
  }
  func.func @transform_1(%arg0: i32) -> (i32, i32) {
    %c0_i32 = arith.constant 0 : i32
    %c0_i32_0 = arith.constant 0 : i32
    %c0_i32_1 = arith.constant 0 : i32
    return %c0_i32, %c0_i32_0 : i32, i32
  }
  func.func @transform_2(%arg0: i32) -> (i32, i32, i32) {
    %c0_i32 = arith.constant 0 : i32
    %c0_i32_0 = arith.constant 0 : i32
    %c0_i32_1 = arith.constant 0 : i32
    return %arg0, %c0_i32, %c0_i32_0 : i32, i32, i32
  }
  func.func @transform_3(%arg0: i32) -> (i32, i32, i32) {
    %c0_i32 = arith.constant 0 : i32
    %c0_i32_0 = arith.constant 0 : i32
    %c0_i32_1 = arith.constant 0 : i32
    return %arg0, %c0_i32, %c0_i32_0 : i32, i32, i32
  }
  func.func @transform_4(%arg0: i32) -> (i32, i32, i32) {
    %c0_i32 = arith.constant 0 : i32
    %c0_i32_0 = arith.constant 0 : i32
    %c0_i32_1 = arith.constant 0 : i32
    return %arg0, %c0_i32, %c0_i32_0 : i32, i32, i32
  }
}

</mosaic_0001>

<llo_original>
// kernel: tpu_custom_call.1
$region0: #{tpu_custom_call.1}
  #allocation0 [shape = 'u32[]', space=smem, size = 0x4, offset = 0x4, fixed_abs, tag = 'smem constant byte address 0x4 - core index']
  #allocation1 [shape = 'u32[144,128]{1,0:T(1,128)}', space=vmem, size = 0x12000, scoped, tag = 'internal scratch']
  %s0 = inlined_call_operand.vmem [shape: s32[1,256], index: 0, kind: input, shape index: {}]
  %s1 = inlined_call_operand.vmem [shape: s32[1,256], index: 1, kind: input, shape index: {}]
  %s2 = inlined_call_operand.vmem [shape: f32[2,3,256], index: 2, kind: input, shape index: {}]
  %s3 = inlined_call_operand.vmem [shape: f32[2,3,256], index: 3, kind: input, shape index: {}]
  %s4 = inlined_call_operand.hbm [shape: f32[1,24,128], index: 4, kind: output, shape index: {}]
  %s5 = sld [smem:[#allocation0]]
  $region26: #{tpu_custom_call.1} parent=0
    _
  %s7 = ssub.s32 1, %s5
  %s8 = scalar_select 0, %s7, %s5
  $region1: #{tpu_custom_call.1} parent=0
    #allocation2 [shape = 'u8[12288]{0}', space=vmem, size = 0x3000, scoped, tag = 'output window, operand 0, single buffered']
    #allocation3 [shape = 's32[1]{0}', space=sflag, size = 0x4, scoped, tag = 'scoped memory for tpu_custom_call.1']
    %9 = vsyncpa [#allocation3], 0
    // Predicated region
    $region2: #{tpu_custom_call.1} parent=1 // pred_check
      _
    $region3: #{tpu_custom_call.1} parent=1 // pred_check_branch
      %11 = sbr.rel (0) target = $region5
    $region4: #{tpu_custom_call.1} parent=1 // pred_region
      _
    $region5: #{tpu_custom_call.1} parent=1 // pred_fallthru
      _
    // Predicated region
    $region6: #{tpu_custom_call.1} parent=1 // pred_check
      _
    $region7: #{tpu_custom_call.1} parent=1 // pred_check_branch
      %13 = sbr.rel (0) target = $region9
    $region8: #{tpu_custom_call.1} parent=1 // pred_region
      _
    $region9: #{tpu_custom_call.1} parent=1 // pred_fallthru
      _
    // Predicated region
    $region10: #{tpu_custom_call.1} parent=1 // pred_check
      _
    $region11: #{tpu_custom_call.1} parent=1 // pred_check_branch
      %15 = sbr.rel (0) target = $region13
    $region12: #{tpu_custom_call.1} parent=1 // pred_region
      _
    $region13: #{tpu_custom_call.1} parent=1 // pred_fallthru
      _
    // Predicated region
    $region14: #{tpu_custom_call.1} parent=1 // pred_check
      _
    $region15: #{tpu_custom_call.1} parent=1 // pred_check_branch
      %17 = sbr.rel (0) target = $region17
    $region16: #{tpu_custom_call.1} parent=1 // pred_region
      _
    $region17: #{tpu_custom_call.1} parent=1 // pred_fallthru
      _
    %v18 = vld [vmem:[%s0] sm:$0x3]
    %v19 = vld [vmem:[%s1] sm:$0x3]
    %v20 = vlaneseq
    %v21 = vshrl.u32 %v20, 7
    %v22 = vsub.s32 0, %v21
    %v23 = vrot.slane %v18, %v22
    %v24 = vlaneseq
    %v25 = vshrl.u32 %v24, 7
    %v26 = vsub.s32 1, %v25
    %v27 = vrot.slane %v18, %v26
    %28 = vrot.lane.b32.xlu0 %v23, 16
    %v29 = vpop.permute.xlu0 %28
    %30 = vrot.lane.b32.xlu0 %v27, 16
    %v31 = vpop.permute.xlu0 %30
    %v32 = vlaneseq
    %v33 = vand.u32 %v32, 127
    %vm34 = vcmp.lt.s32.totalorder %v33, 16
    %v35 = vsel %vm34, %v29, %v31
    %v36 = vsel %vm34, %v31, %v29
    %v37 = vlaneseq
    %v38 = vshrl.u32 %v37, 7
    %v39 = vsub.s32 0, %v38
    %v40 = vrot.slane %v19, %v39
    %v41 = vlaneseq
    %v42 = vshrl.u32 %v41, 7
    %v43 = vsub.s32 1, %v42
    %v44 = vrot.slane %v19, %v43
    %45 = vrot.lane.b32.xlu0 %v40, 16
    %v46 = vpop.permute.xlu0 %45
    %47 = vrot.lane.b32.xlu0 %v44, 16
    %v48 = vpop.permute.xlu0 %47
    %v49 = vsel %vm34, %v46, %v48
    %v50 = vsel %vm34, %v48, %v46
    %v51 = vsub.s32 %v18, 1
    %v52 = vlaneseq
    %v53 = vshrl.u32 %v52, 7
    %v54 = vsub.s32 0, %v53
    %v55 = vrot.slane %v51, %v54
    %v56 = vlaneseq
    %v57 = vshrl.u32 %v56, 7
    %v58 = vsub.s32 1, %v57
    %v59 = vrot.slane %v51, %v58
    %vm60 = vcmp.eq.s32.totalorder %v36, %v55
    %vm61 = vcmp.eq.s32.totalorder %v35, %v59
    %vm62 = vcmp.eq.s32.totalorder %v50, %v40
    %vm63 = vcmp.eq.s32.totalorder %v49, %v44
    %vm64 = vmand %vm60, %vm62
    %vm65 = vmand %vm61, %vm63
    %v66 = vadd.s32 %v18, 1
    %v67 = vlaneseq
    %v68 = vshrl.u32 %v67, 7
    %v69 = vsub.s32 0, %v68
    %v70 = vrot.slane %v66, %v69
    %v71 = vlaneseq
    %v72 = vshrl.u32 %v71, 7
    %v73 = vsub.s32 1, %v72
    %v74 = vrot.slane %v66, %v73
    %vm75 = vcmp.eq.s32.totalorder %v36, %v70
    %vm76 = vcmp.eq.s32.totalorder %v35, %v74
    %vm77 = vmand %vm75, %vm62
    %vm78 = vmand %vm76, %vm63
    %vm79 = vmor %vm64, %vm77
    %vm80 = vmor %vm65, %vm78
    %v81 = vld [vmem:[%s2] sm:$0x77]
    %v82 = vld [vmem:[%s3] sm:$0x77]
    %v84 = vcombine.high %v81, %v81
    %86 = vrot.lane.b32.xlu0 %v81, 16
    %v87 = vpop.permute.xlu0 %86
    %88 = vrot.lane.b32.xlu0 %v84, 16
    %v89 = vpop.permute.xlu0 %88
    %v90 = vsel %vm34, %v87, %v89
    %v91 = vsel %vm34, %v89, %v87
    %v94 = vcombine.low %v91, %v90
    %v96 = vsub.f32 %v81, %v94
    %v98 = vcombine.high %v82, %v82
    %100 = vrot.lane.b32.xlu0 %v82, 16
    %v101 = vpop.permute.xlu0 %100
    %102 = vrot.lane.b32.xlu0 %v98, 16
    %v103 = vpop.permute.xlu0 %102
    %v104 = vsel %vm34, %v101, %v103
    %v105 = vsel %vm34, %v103, %v101
    %v108 = vcombine.low %v105, %v104
    %v110 = vsub.f32 %v82, %v108
    %v111 = vmul.f32 %v96, %v96
    %v113 = vcombine.high %v111, %v111
    %vm115 = vcmask 1042432
    %v116 = vsel %vm115, %v111, 0.0
    %v117 = vrot.slane %v116, 4
    %v118 = vadd.f32 %v116, %v117
    %v119 = vrot.slane %v118, 2
    %v120 = vadd.f32 %v118, %v119
    %v121 = vrot.slane %v120, 1
    %v122 = vadd.f32 %v120, %v121
    %v123 = vsel %vm115, %v113, 0.0
    %v124 = vrot.slane %v123, 4
    %v125 = vadd.f32 %v123, %v124
    %v126 = vrot.slane %v125, 2
    %v127 = vadd.f32 %v125, %v126
    %v128 = vrot.slane %v127, 1
    %v129 = vadd.f32 %v127, %v128
    %v130 = vmul.f32 %v122, -0.005
    %v131 = vmul.f32 %v129, -0.005
    %v132 = vmul.f32 %v130, 1.442695
    %v133 = vpow.pop %v132
    %v134 = vmul.f32 %v131, 1.442695
    %v135 = vpow.pop %v134
    %v136 = vsel %vm79, %v133, 0.0
    %v137 = vsel %vm80, %v135, 0.0
    %v138 = vadd.f32 %v136, 0.0
    %v139 = vadd.f32 %v137, 0.0
    %v140 = vand.u32 2147483647, %v110
    %v142 = vcombine.high %v140, %v140
    %v144 = vsel %vm115, %v140, 0.0
    %v145 = vrot.slane %v144, 4
    %v146 = vadd.f32 %v144, %v145
    %v147 = vrot.slane %v146, 2
    %v148 = vadd.f32 %v146, %v147
    %v149 = vrot.slane %v148, 1
    %v150 = vadd.f32 %v148, %v149
    %v151 = vsel %vm115, %v142, 0.0
    %v152 = vrot.slane %v151, 4
    %v153 = vadd.f32 %v151, %v152
    %v154 = vrot.slane %v153, 2
    %v155 = vadd.f32 %v153, %v154
    %v156 = vrot.slane %v155, 1
    %v157 = vadd.f32 %v155, %v156
    %v158 = vsel %vm79, %v150, 0.0
    %v159 = vsel %vm80, %v157, 0.0
    %v160 = vadd.f32 %v158, 0.0
    %v161 = vadd.f32 %v159, 0.0
    %s162 = scalar_lea.vmem %s2, 8
    %v163 = vld [vmem:[%s162] sm:$0x77]
    %s164 = scalar_lea.vmem %s3, 8
    %v165 = vld [vmem:[%s164] sm:$0x77]
    %v167 = vcombine.high %v163, %v163
    %169 = vrot.lane.b32.xlu0 %v163, 16
    %v170 = vpop.permute.xlu0 %169
    %171 = vrot.lane.b32.xlu0 %v167, 16
    %v172 = vpop.permute.xlu0 %171
    %v173 = vsel %vm34, %v170, %v172
    %v174 = vsel %vm34, %v172, %v170
    %v177 = vcombine.low %v174, %v173
    %v179 = vsub.f32 %v163, %v177
    %v181 = vcombine.high %v165, %v165
    %183 = vrot.lane.b32.xlu0 %v165, 16
    %v184 = vpop.permute.xlu0 %183
    %185 = vrot.lane.b32.xlu0 %v181, 16
    %v186 = vpop.permute.xlu0 %185
    %v187 = vsel %vm34, %v184, %v186
    %v188 = vsel %vm34, %v186, %v184
    %v191 = vcombine.low %v188, %v187
    %v193 = vsub.f32 %v165, %v191
    %v194 = vmul.f32 %v179, %v179
    %v196 = vcombine.high %v194, %v194
    %v198 = vsel %vm115, %v194, 0.0
    %v199 = vrot.slane %v198, 4
    %v200 = vadd.f32 %v198, %v199
    %v201 = vrot.slane %v200, 2
    %v202 = vadd.f32 %v200, %v201
    %v203 = vrot.slane %v202, 1
    %v204 = vadd.f32 %v202, %v203
    %v205 = vsel %vm115, %v196, 0.0
    %v206 = vrot.slane %v205, 4
    %v207 = vadd.f32 %v205, %v206
    %v208 = vrot.slane %v207, 2
    %v209 = vadd.f32 %v207, %v208
    %v210 = vrot.slane %v209, 1
    %v211 = vadd.f32 %v209, %v210
    %v212 = vmul.f32 %v204, -0.005
    %v213 = vmul.f32 %v211, -0.005
    %v214 = vmul.f32 %v212, 1.442695
    %v215 = vpow.pop %v214
    %v216 = vmul.f32 %v213, 1.442695
    %v217 = vpow.pop %v216
    %v218 = vsel %vm79, %v215, 0.0
    %v219 = vsel %vm80, %v217, 0.0
    %v220 = vadd.f32 %v138, %v218
    %v221 = vadd.f32 %v139, %v219
    %v222 = vand.u32 2147483647, %v193
    %v224 = vcombine.high %v222, %v222
    %v226 = vsel %vm115, %v222, 0.0
    %v227 = vrot.slane %v226, 4
    %v228 = vadd.f32 %v226, %v227
    %v229 = vrot.slane %v228, 2
    %v230 = vadd.f32 %v228, %v229
    %v231 = vrot.slane %v230, 1
    %v232 = vadd.f32 %v230, %v231
    %v233 = vsel %vm115, %v224, 0.0
    %v234 = vrot.slane %v233, 4
    %v235 = vadd.f32 %v233, %v234
    %v236 = vrot.slane %v235, 2
    %v237 = vadd.f32 %v235, %v236
    %v238 = vrot.slane %v237, 1
    %v239 = vadd.f32 %v237, %v238
    %v240 = vsel %vm79, %v232, 0.0
    %v241 = vsel %vm80, %v239, 0.0
    %v242 = vadd.f32 %v160, %v240
    %v243 = vadd.f32 %v161, %v241
    %v244 = vadd.f32 %v220, %v221
    %v245 = vadd.f32 %v242, %v243
    %246 = vst [vmem:[#allocation2] sm:$0x1] %v244
    %247 = vst [vmem:[#allocation2 + $0xc] sm:$0x1] %v245
    %248 = vrot.lane.b32.xlu0 %v23, 1
    %v249 = vpop.permute.xlu0 %248
    %250 = vrot.lane.b32.xlu0 %v27, 1
    %v251 = vpop.permute.xlu0 %250
    %vm252 = vcmp.lt.s32.totalorder %v33, 1
    %v253 = vsel %vm252, %v249, %v251
    %v254 = vsel %vm252, %v251, %v249
    %255 = vrot.lane.b32.xlu0 %v40, 1
    %v256 = vpop.permute.xlu0 %255
    %257 = vrot.lane.b32.xlu0 %v44, 1
    %v258 = vpop.permute.xlu0 %257
    %v259 = vsel %vm252, %v256, %v258
    %v260 = vsel %vm252, %v258, %v256
    %vm261 = vcmp.eq.s32.totalorder %v254, %v23
    %vm262 = vcmp.eq.s32.totalorder %v253, %v27
    %v263 = vsub.s32 %v19, 1
    %v264 = vlaneseq
    %v265 = vshrl.u32 %v264, 7
    %v266 = vsub.s32 0, %v265
    %v267 = vrot.slane %v263, %v266
    %v268 = vlaneseq
    %v269 = vshrl.u32 %v268, 7
    %v270 = vsub.s32 1, %v269
    %v271 = vrot.slane %v263, %v270
    %vm272 = vcmp.eq.s32.totalorder %v260, %v267
    %vm273 = vcmp.eq.s32.totalorder %v259, %v271
    %vm274 = vmand %vm261, %vm272
    %vm275 = vmand %vm262, %vm273
    %v276 = vadd.s32 %v19, 1
    %v277 = vlaneseq
    %v278 = vshrl.u32 %v277, 7
    %v279 = vsub.s32 0, %v278
    %v280 = vrot.slane %v276, %v279
    %v281 = vlaneseq
    %v282 = vshrl.u32 %v281, 7
    %v283 = vsub.s32 1, %v282
    %v284 = vrot.slane %v276, %v283
    %vm285 = vcmp.eq.s32.totalorder %v260, %v280
    %vm286 = vcmp.eq.s32.totalorder %v259, %v284
    %vm287 = vmand %vm261, %vm285
    %vm288 = vmand %vm262, %vm286
    %vm289 = vmor %vm274, %vm287
    %vm290 = vmor %vm275, %vm288
    %v291 = vld [vmem:[%s2] sm:$0x77]
    %v292 = vld [vmem:[%s3] sm:$0x77]
    %v294 = vcombine.high %v291, %v291
    %296 = vrot.lane.b32.xlu0 %v291, 1
    %v297 = vpop.permute.xlu0 %296
    %298 = vrot.lane.b32.xlu0 %v294, 1
    %v299 = vpop.permute.xlu0 %298
    %v300 = vsel %vm252, %v297, %v299
    %v301 = vsel %vm252, %v299, %v297
    %v304 = vcombine.low %v301, %v300
    %v306 = vsub.f32 %v291, %v304
    %v308 = vcombine.high %v292, %v292
    %310 = vrot.lane.b32.xlu0 %v292, 1
    %v311 = vpop.permute.xlu0 %310
    %312 = vrot.lane.b32.xlu0 %v308, 1
    %v313 = vpop.permute.xlu0 %312
    %v314 = vsel %vm252, %v311, %v313
    %v315 = vsel %vm252, %v313, %v311
    %v318 = vcombine.low %v315, %v314
    %v320 = vsub.f32 %v292, %v318
    %v321 = vmul.f32 %v306, %v306
    %v323 = vcombine.high %v321, %v321
    %v325 = vsel %vm115, %v321, 0.0
    %v326 = vrot.slane %v325, 4
    %v327 = vadd.f32 %v325, %v326
    %v328 = vrot.slane %v327, 2
    %v329 = vadd.f32 %v327, %v328
    %v330 = vrot.slane %v329, 1
    %v331 = vadd.f32 %v329, %v330
    %v332 = vsel %vm115, %v323, 0.0
    %v333 = vrot.slane %v332, 4
    %v334 = vadd.f32 %v332, %v333
    %v335 = vrot.slane %v334, 2
    %v336 = vadd.f32 %v334, %v335
    %v337 = vrot.slane %v336, 1
    %v338 = vadd.f32 %v336, %v337
    %v339 = vmul.f32 %v331, -0.005
    %v340 = vmul.f32 %v338, -0.005
    %v341 = vmul.f32 %v339, 1.442695
    %v342 = vpow.pop %v341
    %v343 = vmul.f32 %v340, 1.442695
    %v344 = vpow.pop %v343
    %v345 = vsel %vm289, %v342, 0.0
    %v346 = vsel %vm290, %v344, 0.0
    %v347 = vadd.f32 %v345, 0.0
    %v348 = vadd.f32 %v346, 0.0
    %v349 = vand.u32 2147483647, %v320
    %v351 = vcombine.high %v349, %v349
    %v353 = vsel %vm115, %v349, 0.0
    %v354 = vrot.slane %v353, 4
    %v355 = vadd.f32 %v353, %v354
    %v356 = vrot.slane %v355, 2
    %v357 = vadd.f32 %v355, %v356
    %v358 = vrot.slane %v357, 1
    %v359 = vadd.f32 %v357, %v358
    %v360 = vsel %vm115, %v351, 0.0
    %v361 = vrot.slane %v360, 4
    %v362 = vadd.f32 %v360, %v361
    %v363 = vrot.slane %v362, 2
    %v364 = vadd.f32 %v362, %v363
    %v365 = vrot.slane %v364, 1
    %v366 = vadd.f32 %v364, %v365
    %v367 = vsel %vm289, %v359, 0.0
    %v368 = vsel %vm290, %v366, 0.0
    %v369 = vadd.f32 %v367, 0.0
    %v370 = vadd.f32 %v368, 0.0
    %v371 = vld [vmem:[%s162] sm:$0x77]
    %v372 = vld [vmem:[%s164] sm:$0x77]
    %v374 = vcombine.high %v371, %v371
    %376 = vrot.lane.b32.xlu0 %v371, 1
    %v377 = vpop.permute.xlu0 %376
    %378 = vrot.lane.b32.xlu0 %v374, 1
    %v379 = vpop.permute.xlu0 %378
    %v380 = vsel %vm252, %v377, %v379
    %v381 = vsel %vm252, %v379, %v377
    %v384 = vcombine.low %v381, %v380
    %v386 = vsub.f32 %v371, %v384
    %v388 = vcombine.high %v372, %v372
    %390 = vrot.lane.b32.xlu0 %v372, 1
    %v391 = vpop.permute.xlu0 %390
    %392 = vrot.lane.b32.xlu0 %v388, 1
    %v393 = vpop.permute.xlu0 %392
    %v394 = vsel %vm252, %v391, %v393
    %v395 = vsel %vm252, %v393, %v391
    %v398 = vcombine.low %v395, %v394
    %v400 = vsub.f32 %v372, %v398
    %v401 = vmul.f32 %v386, %v386
    %v403 = vcombine.high %v401, %v401
    %v405 = vsel %vm115, %v401, 0.0
    %v406 = vrot.slane %v405, 4
    %v407 = vadd.f32 %v405, %v406
    %v408 = vrot.slane %v407, 2
    %v409 = vadd.f32 %v407, %v408
    %v410 = vrot.slane %v409, 1
    %v411 = vadd.f32 %v409, %v410
    %v412 = vsel %vm115, %v403, 0.0
    %v413 = vrot.slane %v412, 4
    %v414 = vadd.f32 %v412, %v413
    %v415 = vrot.slane %v414, 2
    %v416 = vadd.f32 %v414, %v415
    %v417 = vrot.slane %v416, 1
    %v418 = vadd.f32 %v416, %v417
    %v419 = vmul.f32 %v411, -0.005
    %v420 = vmul.f32 %v418, -0.005
    %v421 = vmul.f32 %v419, 1.442695
    %v422 = vpow.pop %v421
    %v423 = vmul.f32 %v420, 1.442695
    %v424 = vpow.pop %v423
    %v425 = vsel %vm289, %v422, 0.0
    %v426 = vsel %vm290, %v424, 0.0
    %v427 = vadd.f32 %v347, %v425
    %v428 = vadd.f32 %v348, %v426
    %v429 = vand.u32 2147483647, %v400
    %v431 = vcombine.high %v429, %v429
    %v433 = vsel %vm115, %v429, 0.0
    %v434 = vrot.slane %v433, 4
    %v435 = vadd.f32 %v433, %v434
    %v436 = vrot.slane %v435, 2
    %v437 = vadd.f32 %v435, %v436
    %v438 = vrot.slane %v437, 1
    %v439 = vadd.f32 %v437, %v438
    %v440 = vsel %vm115, %v431, 0.0
    %v441 = vrot.slane %v440, 4
    %v442 = vadd.f32 %v440, %v441
    %v443 = vrot.slane %v442, 2
    %v444 = vadd.f32 %v442, %v443
    %v445 = vrot.slane %v444, 1
    %v446 = vadd.f32 %v444, %v445
    %v447 = vsel %vm289, %v439, 0.0
    %v448 = vsel %vm290, %v446, 0.0
    %v449 = vadd.f32 %v369, %v447
    %v450 = vadd.f32 %v370, %v448
    %v451 = vadd.f32 %v427, %v428
    %v452 = vadd.f32 %v449, %v450
    %453 = vst [vmem:[#allocation2 + $0x1] sm:$0x1] %v451
    %454 = vst [vmem:[#allocation2 + $0xd] sm:$0x1] %v452
    %455 = vrot.lane.b32.xlu0 %v23, 17
    %v456 = vpop.permute.xlu0 %455
    %457 = vrot.lane.b32.xlu0 %v27, 17
    %v458 = vpop.permute.xlu0 %457
    %vm459 = vcmp.lt.s32.totalorder %v33, 17
    %v460 = vsel %vm459, %v456, %v458
    %v461 = vsel %vm459, %v458, %v456
    %462 = vrot.lane.b32.xlu0 %v40, 17
    %v463 = vpop.permute.xlu0 %462
    %464 = vrot.lane.b32.xlu0 %v44, 17
    %v465 = vpop.permute.xlu0 %464
    %v466 = vsel %vm459, %v463, %v465
    %v467 = vsel %vm459, %v465, %v463
    %vm468 = vcmp.eq.s32.totalorder %v461, %v55
    %vm469 = vcmp.eq.s32.totalorder %v460, %v59
    %vm470 = vcmp.eq.s32.totalorder %v467, %v267
    %vm471 = vcmp.eq.s32.totalorder %v466, %v271
    %vm472 = vmand %vm468, %vm470
    %vm473 = vmand %vm469, %vm471
    %vm474 = vcmp.eq.s32.totalorder %v461, %v70
    %vm475 = vcmp.eq.s32.totalorder %v460, %v74
    %vm476 = vcmp.eq.s32.totalorder %v467, %v280
    %vm477 = vcmp.eq.s32.totalorder %v466, %v284
    %vm478 = vmand %vm474, %vm476
    %vm479 = vmand %vm475, %vm477
    %vm480 = vmor %vm472, %vm478
    %vm481 = vmor %vm473, %vm479
    %v482 = vld [vmem:[%s2] sm:$0x77]
    %v483 = vld [vmem:[%s3] sm:$0x77]
    %v485 = vcombine.high %v482, %v482
    %487 = vrot.lane.b32.xlu0 %v482, 17
    %v488 = vpop.permute.xlu0 %487
    %489 = vrot.lane.b32.xlu0 %v485, 17
    %v490 = vpop.permute.xlu0 %489
    %v491 = vsel %vm459, %v488, %v490
    %v492 = vsel %vm459, %v490, %v488
    %v495 = vcombine.low %v492, %v491
    %v497 = vsub.f32 %v482, %v495
    %v499 = vcombine.high %v483, %v483
    %501 = vrot.lane.b32.xlu0 %v483, 17
    %v502 = vpop.permute.xlu0 %501
    %503 = vrot.lane.b32.xlu0 %v499, 17
    %v504 = vpop.permute.xlu0 %503
    %v505 = vsel %vm459, %v502, %v504
    %v506 = vsel %vm459, %v504, %v502
    %v509 = vcombine.low %v506, %v505
    %v511 = vsub.f32 %v483, %v509
    %v512 = vmul.f32 %v497, %v497
    %v514 = vcombine.high %v512, %v512
    %v516 = vsel %vm115, %v512, 0.0
    %v517 = vrot.slane %v516, 4
    %v518 = vadd.f32 %v516, %v517
    %v519 = vrot.slane %v518, 2
    %v520 = vadd.f32 %v518, %v519
    %v521 = vrot.slane %v520, 1
    %v522 = vadd.f32 %v520, %v521
    %v523 = vsel %vm115, %v514, 0.0
    %v524 = vrot.slane %v523, 4
    %v525 = vadd.f32 %v523, %v524
    %v526 = vrot.slane %v525, 2
    %v527 = vadd.f32 %v525, %v526
    %v528 = vrot.slane %v527, 1
    %v529 = vadd.f32 %v527, %v528
    %v530 = vmul.f32 %v522, -0.005
    %v531 = vmul.f32 %v529, -0.005
    %v532 = vmul.f32 %v530, 1.442695
    %v533 = vpow.pop %v532
    %v534 = vmul.f32 %v531, 1.442695
    %v535 = vpow.pop %v534
    %v536 = vsel %vm480, %v533, 0.0
    %v537 = vsel %vm481, %v535, 0.0
    %v538 = vadd.f32 %v536, 0.0
    %v539 = vadd.f32 %v537, 0.0
    %v540 = vand.u32 2147483647, %v511
    %v542 = vcombine.high %v540, %v540
    %v544 = vsel %vm115, %v540, 0.0
    %v545 = vrot.slane %v544, 4
    %v546 = vadd.f32 %v544, %v545
    %v547 = vrot.slane %v546, 2
    %v548 = vadd.f32 %v546, %v547
    %v549 = vrot.slane %v548, 1
    %v550 = vadd.f32 %v548, %v549
    %v551 = vsel %vm115, %v542, 0.0
    %v552 = vrot.slane %v551, 4
    %v553 = vadd.f32 %v551, %v552
    %v554 = vrot.slane %v553, 2
    %v555 = vadd.f32 %v553, %v554
    %v556 = vrot.slane %v555, 1
    %v557 = vadd.f32 %v555, %v556
    %v558 = vsel %vm480, %v550, 0.0
    %v559 = vsel %vm481, %v557, 0.0
    %v560 = vadd.f32 %v558, 0.0
    %v561 = vadd.f32 %v559, 0.0
    %v562 = vld [vmem:[%s162] sm:$0x77]
    %v563 = vld [vmem:[%s164] sm:$0x77]
    %v565 = vcombine.high %v562, %v562
    %567 = vrot.lane.b32.xlu0 %v562, 17
    %v568 = vpop.permute.xlu0 %567
    %569 = vrot.lane.b32.xlu0 %v565, 17
    %v570 = vpop.permute.xlu0 %569
    %v571 = vsel %vm459, %v568, %v570
    %v572 = vsel %vm459, %v570, %v568
    %v575 = vcombine.low %v572, %v571
    %v577 = vsub.f32 %v562, %v575
    %v579 = vcombine.high %v563, %v563
    %581 = vrot.lane.b32.xlu0 %v563, 17
    %v582 = vpop.permute.xlu0 %581
    %583 = vrot.lane.b32.xlu0 %v579, 17
    %v584 = vpop.permute.xlu0 %583
    %v585 = vsel %vm459, %v582, %v584
    %v586 = vsel %vm459, %v584, %v582
    %v589 = vcombine.low %v586, %v585
    %v591 = vsub.f32 %v563, %v589
    %v592 = vmul.f32 %v577, %v577
    %v594 = vcombine.high %v592, %v592
    %v596 = vsel %vm115, %v592, 0.0
    %v597 = vrot.slane %v596, 4
    %v598 = vadd.f32 %v596, %v597
    %v599 = vrot.slane %v598, 2
    %v600 = vadd.f32 %v598, %v599
    %v601 = vrot.slane %v600, 1
    %v602 = vadd.f32 %v600, %v601
    %v603 = vsel %vm115, %v594, 0.0
    %v604 = vrot.slane %v603, 4
    %v605 = vadd.f32 %v603, %v604
    %v606 = vrot.slane %v605, 2
    %v607 = vadd.f32 %v605, %v606
    %v608 = vrot.slane %v607, 1
    %v609 = vadd.f32 %v607, %v608
    %v610 = vmul.f32 %v602, -0.005
    %v611 = vmul.f32 %v609, -0.005
    %v612 = vmul.f32 %v610, 1.442695
    %v613 = vpow.pop %v612
    %v614 = vmul.f32 %v611, 1.442695
    %v615 = vpow.pop %v614
    %v616 = vsel %vm480, %v613, 0.0
    %v617 = vsel %vm481, %v615, 0.0
    %v618 = vadd.f32 %v538, %v616
    %v619 = vadd.f32 %v539, %v617
    %v620 = vand.u32 2147483647, %v591
    %v622 = vcombine.high %v620, %v620
    %v624 = vsel %vm115, %v620, 0.0
    %v625 = vrot.slane %v624, 4
    %v626 = vadd.f32 %v624, %v625
    %v627 = vrot.slane %v626, 2
    %v628 = vadd.f32 %v626, %v627
    %v629 = vrot.slane %v628, 1
    %v630 = vadd.f32 %v628, %v629
    %v631 = vsel %vm115, %v622, 0.0
    %v632 = vrot.slane %v631, 4
    %v633 = vadd.f32 %v631, %v632
    %v634 = vrot.slane %v633, 2
    %v635 = vadd.f32 %v633, %v634
    %v636 = vrot.slane %v635, 1
    %v637 = vadd.f32 %v635, %v636
    %v638 = vsel %vm480, %v630, 0.0
    %v639 = vsel %vm481, %v637, 0.0
    %v640 = vadd.f32 %v560, %v638
    %v641 = vadd.f32 %v561, %v639
    %v642 = vadd.f32 %v618, %v619
    %v643 = vadd.f32 %v640, %v641
    %644 = vst [vmem:[#allocation2 + $0x2] sm:$0x1] %v642
    %645 = vst [vmem:[#allocation2 + $0xe] sm:$0x1] %v643
    %646 = vrot.lane.b32.xlu0 %v23, 15
    %v647 = vpop.permute.xlu0 %646
    %648 = vrot.lane.b32.xlu0 %v27, 15
    %v649 = vpop.permute.xlu0 %648
    %vm650 = vcmp.lt.s32.totalorder %v33, 15
    %v651 = vsel %vm650, %v647, %v649
    %v652 = vsel %vm650, %v649, %v647
    %653 = vrot.lane.b32.xlu0 %v40, 15
    %v654 = vpop.permute.xlu0 %653
    %655 = vrot.lane.b32.xlu0 %v44, 15
    %v656 = vpop.permute.xlu0 %655
    %v657 = vsel %vm650, %v654, %v656
    %v658 = vsel %vm650, %v656, %v654
    %vm659 = vcmp.eq.s32.totalorder %v652, %v55
    %vm660 = vcmp.eq.s32.totalorder %v651, %v59
    %v661 = vsub.s32 %v19, 4294967295
    %v662 = vlaneseq
    %v663 = vshrl.u32 %v662, 7
    %v664 = vsub.s32 0, %v663
    %v665 = vrot.slane %v661, %v664
    %v666 = vlaneseq
    %v667 = vshrl.u32 %v666, 7
    %v668 = vsub.s32 1, %v667
    %v669 = vrot.slane %v661, %v668
    %vm670 = vcmp.eq.s32.totalorder %v658, %v665
    %vm671 = vcmp.eq.s32.totalorder %v657, %v669
    %vm672 = vmand %vm659, %vm670
    %vm673 = vmand %vm660, %vm671
    %vm674 = vcmp.eq.s32.totalorder %v652, %v70
    %vm675 = vcmp.eq.s32.totalorder %v651, %v74
    %v676 = vadd.s32 %v19, 4294967295
    %v677 = vlaneseq
    %v678 = vshrl.u32 %v677, 7
    %v679 = vsub.s32 0, %v678
    %v680 = vrot.slane %v676, %v679
    %v681 = vlaneseq
    %v682 = vshrl.u32 %v681, 7
    %v683 = vsub.s32 1, %v682
    %v684 = vrot.slane %v676, %v683
    %vm685 = vcmp.eq.s32.totalorder %v658, %v680
    %vm686 = vcmp.eq.s32.totalorder %v657, %v684
    %vm687 = vmand %vm674, %vm685
    %vm688 = vmand %vm675, %vm686
    %vm689 = vmor %vm672, %vm687
    %vm690 = vmor %vm673, %vm688
    %v691 = vld [vmem:[%s2] sm:$0x77]
    %v692 = vld [vmem:[%s3] sm:$0x77]
    %v694 = vcombine.high %v691, %v691
    %696 = vrot.lane.b32.xlu0 %v691, 15
    %v697 = vpop.permute.xlu0 %696
    %698 = vrot.lane.b32.xlu0 %v694, 15
    %v699 = vpop.permute.xlu0 %698
    %v700 = vsel %vm650, %v697, %v699
    %v701 = vsel %vm650, %v699, %v697
    %v704 = vcombine.low %v701, %v700
    %v706 = vsub.f32 %v691, %v704
    %v708 = vcombine.high %v692, %v692
    %710 = vrot.lane.b32.xlu0 %v692, 15
    %v711 = vpop.permute.xlu0 %710
    %712 = vrot.lane.b32.xlu0 %v708, 15
    %v713 = vpop.permute.xlu0 %712
    %v714 = vsel %vm650, %v711, %v713
    %v715 = vsel %vm650, %v713, %v711
    %v718 = vcombine.low %v715, %v714
    %v720 = vsub.f32 %v692, %v718
    %v721 = vmul.f32 %v706, %v706
    %v723 = vcombine.high %v721, %v721
    %v725 = vsel %vm115, %v721, 0.0
    %v726 = vrot.slane %v725, 4
    %v727 = vadd.f32 %v725, %v726
    %v728 = vrot.slane %v727, 2
    %v729 = vadd.f32 %v727, %v728
    %v730 = vrot.slane %v729, 1
    %v731 = vadd.f32 %v729, %v730
    %v732 = vsel %vm115, %v723, 0.0
    %v733 = vrot.slane %v732, 4
    %v734 = vadd.f32 %v732, %v733
    %v735 = vrot.slane %v734, 2
    %v736 = vadd.f32 %v734, %v735
    %v737 = vrot.slane %v736, 1
    %v738 = vadd.f32 %v736, %v737
    %v739 = vmul.f32 %v731, -0.005
    %v740 = vmul.f32 %v738, -0.005
    %v741 = vmul.f32 %v739, 1.442695
    %v742 = vpow.pop %v741
    %v743 = vmul.f32 %v740, 1.442695
    %v744 = vpow.pop %v743
    %v745 = vsel %vm689, %v742, 0.0
    %v746 = vsel %vm690, %v744, 0.0
    %v747 = vadd.f32 %v745, 0.0
    %v748 = vadd.f32 %v746, 0.0
    %v749 = vand.u32 2147483647, %v720
    %v751 = vcombine.high %v749, %v749
    %v753 = vsel %vm115, %v749, 0.0
    %v754 = vrot.slane %v753, 4
    %v755 = vadd.f32 %v753, %v754
    %v756 = vrot.slane %v755, 2
    %v757 = vadd.f32 %v755, %v756
    %v758 = vrot.slane %v757, 1
    %v759 = vadd.f32 %v757, %v758
    %v760 = vsel %vm115, %v751, 0.0
    %v761 = vrot.slane %v760, 4
    %v762 = vadd.f32 %v760, %v761
    %v763 = vrot.slane %v762, 2
    %v764 = vadd.f32 %v762, %v763
    %v765 = vrot.slane %v764, 1
    %v766 = vadd.f32 %v764, %v765
    %v767 = vsel %vm689, %v759, 0.0
    %v768 = vsel %vm690, %v766, 0.0
    %v769 = vadd.f32 %v767, 0.0
    %v770 = vadd.f32 %v768, 0.0
    %v771 = vld [vmem:[%s162] sm:$0x77]
    %v772 = vld [vmem:[%s164] sm:$0x77]
    %v774 = vcombine.high %v771, %v771
    %776 = vrot.lane.b32.xlu0 %v771, 15
    %v777 = vpop.permute.xlu0 %776
    %778 = vrot.lane.b32.xlu0 %v774, 15
    %v779 = vpop.permute.xlu0 %778
    %v780 = vsel %vm650, %v777, %v779
    %v781 = vsel %vm650, %v779, %v777
    %v784 = vcombine.low %v781, %v780
    %v786 = vsub.f32 %v771, %v784
    %v788 = vcombine.high %v772, %v772
    %790 = vrot.lane.b32.xlu0 %v772, 15
    %v791 = vpop.permute.xlu0 %790
    %792 = vrot.lane.b32.xlu0 %v788, 15
    %v793 = vpop.permute.xlu0 %792
    %v794 = vsel %vm650, %v791, %v793
    %v795 = vsel %vm650, %v793, %v791
    %v798 = vcombine.low %v795, %v794
    %v800 = vsub.f32 %v772, %v798
    %v801 = vmul.f32 %v786, %v786
    %v803 = vcombine.high %v801, %v801
    %v805 = vsel %vm115, %v801, 0.0
    %v806 = vrot.slane %v805, 4
    %v807 = vadd.f32 %v805, %v806
    %v808 = vrot.slane %v807, 2
    %v809 = vadd.f32 %v807, %v808
    %v810 = vrot.slane %v809, 1
    %v811 = vadd.f32 %v809, %v810
    %v812 = vsel %vm115, %v803, 0.0
    %v813 = vrot.slane %v812, 4
    %v814 = vadd.f32 %v812, %v813
    %v815 = vrot.slane %v814, 2
    %v816 = vadd.f32 %v814, %v815
    %v817 = vrot.slane %v816, 1
    %v818 = vadd.f32 %v816, %v817
    %v819 = vmul.f32 %v811, -0.005
    %v820 = vmul.f32 %v818, -0.005
    %v821 = vmul.f32 %v819, 1.442695
    %v822 = vpow.pop %v821
    %v823 = vmul.f32 %v820, 1.442695
    %v824 = vpow.pop %v823
    %v825 = vsel %vm689, %v822, 0.0
    %v826 = vsel %vm690, %v824, 0.0
    %v827 = vadd.f32 %v747, %v825
    %v828 = vadd.f32 %v748, %v826
    %v829 = vand.u32 2147483647, %v800
    %v831 = vcombine.high %v829, %v829
    %v833 = vsel %vm115, %v829, 0.0
    %v834 = vrot.slane %v833, 4
    %v835 = vadd.f32 %v833, %v834
    %v836 = vrot.slane %v835, 2
    %v837 = vadd.f32 %v835, %v836
    %v838 = vrot.slane %v837, 1
    %v839 = vadd.f32 %v837, %v838
    %v840 = vsel %vm115, %v831, 0.0
    %v841 = vrot.slane %v840, 4
    %v842 = vadd.f32 %v840, %v841
    %v843 = vrot.slane %v842, 2
    %v844 = vadd.f32 %v842, %v843
    %v845 = vrot.slane %v844, 1
    %v846 = vadd.f32 %v844, %v845
    %v847 = vsel %vm689, %v839, 0.0
    %v848 = vsel %vm690, %v846, 0.0
    %v849 = vadd.f32 %v769, %v847
    %v850 = vadd.f32 %v770, %v848
    %v851 = vadd.f32 %v827, %v828
    %v852 = vadd.f32 %v849, %v850
    %853 = vst [vmem:[#allocation2 + $0x3] sm:$0x1] %v851
    %854 = vst [vmem:[#allocation2 + $0xf] sm:$0x1] %v852
    %855 = vrot.lane.b32.xlu0 %v23, 32
    %v856 = vpop.permute.xlu0 %855
    %857 = vrot.lane.b32.xlu0 %v27, 32
    %v858 = vpop.permute.xlu0 %857
    %vm859 = vcmp.lt.s32.totalorder %v33, 32
    %v860 = vsel %vm859, %v856, %v858
    %v861 = vsel %vm859, %v858, %v856
    %862 = vrot.lane.b32.xlu0 %v40, 32
    %v863 = vpop.permute.xlu0 %862
    %864 = vrot.lane.b32.xlu0 %v44, 32
    %v865 = vpop.permute.xlu0 %864
    %v866 = vsel %vm859, %v863, %v865
    %v867 = vsel %vm859, %v865, %v863
    %v868 = vsub.s32 %v18, 2
    %v869 = vlaneseq
    %v870 = vshrl.u32 %v869, 7
    %v871 = vsub.s32 0, %v870
    %v872 = vrot.slane %v868, %v871
    %v873 = vlaneseq
    %v874 = vshrl.u32 %v873, 7
    %v875 = vsub.s32 1, %v874
    %v876 = vrot.slane %v868, %v875
    %vm877 = vcmp.eq.s32.totalorder %v861, %v872
    %vm878 = vcmp.eq.s32.totalorder %v860, %v876
    %vm879 = vcmp.eq.s32.totalorder %v867, %v40
    %vm880 = vcmp.eq.s32.totalorder %v866, %v44
    %vm881 = vmand %vm877, %vm879
    %vm882 = vmand %vm878, %vm880
    %v883 = vadd.s32 %v18, 2
    %v884 = vlaneseq
    %v885 = vshrl.u32 %v884, 7
    %v886 = vsub.s32 0, %v885
    %v887 = vrot.slane %v883, %v886
    %v888 = vlaneseq
    %v889 = vshrl.u32 %v888, 7
    %v890 = vsub.s32 1, %v889
    %v891 = vrot.slane %v883, %v890
    %vm892 = vcmp.eq.s32.totalorder %v861, %v887
    %vm893 = vcmp.eq.s32.totalorder %v860, %v891
    %vm894 = vmand %vm892, %vm879
    %vm895 = vmand %vm893, %vm880
    %vm896 = vmor %vm881, %vm894
    %vm897 = vmor %vm882, %vm895
    %v898 = vld [vmem:[%s2] sm:$0x77]
    %v899 = vld [vmem:[%s3] sm:$0x77]
    %v901 = vcombine.high %v898, %v898
    %903 = vrot.lane.b32.xlu0 %v898, 32
    %v904 = vpop.permute.xlu0 %903
    %905 = vrot.lane.b32.xlu0 %v901, 32
    %v906 = vpop.permute.xlu0 %905
    %v907 = vsel %vm859, %v904, %v906
    %v908 = vsel %vm859, %v906, %v904
    %v911 = vcombine.low %v908, %v907
    %v913 = vsub.f32 %v898, %v911
    %v915 = vcombine.high %v899, %v899
    %917 = vrot.lane.b32.xlu0 %v899, 32
    %v918 = vpop.permute.xlu0 %917
    %919 = vrot.lane.b32.xlu0 %v915, 32
    %v920 = vpop.permute.xlu0 %919
    %v921 = vsel %vm859, %v918, %v920
    %v922 = vsel %vm859, %v920, %v918
    %v925 = vcombine.low %v922, %v921
    %v927 = vsub.f32 %v899, %v925
    %v928 = vmul.f32 %v913, %v913
    %v930 = vcombine.high %v928, %v928
    %v932 = vsel %vm115, %v928, 0.0
    %v933 = vrot.slane %v932, 4
    %v934 = vadd.f32 %v932, %v933
    %v935 = vrot.slane %v934, 2
    %v936 = vadd.f32 %v934, %v935
    %v937 = vrot.slane %v936, 1
    %v938 = vadd.f32 %v936, %v937
    %v939 = vsel %vm115, %v930, 0.0
    %v940 = vrot.slane %v939, 4
    %v941 = vadd.f32 %v939, %v940
    %v942 = vrot.slane %v941, 2
    %v943 = vadd.f32 %v941, %v942
    %v944 = vrot.slane %v943, 1
    %v945 = vadd.f32 %v943, %v944
    %v946 = vmul.f32 %v938, -0.005
    %v947 = vmul.f32 %v945, -0.005
    %v948 = vmul.f32 %v946, 1.442695
    %v949 = vpow.pop %v948
    %v950 = vmul.f32 %v947, 1.442695
    %v951 = vpow.pop %v950
    %v952 = vsel %vm896, %v949, 0.0
    %v953 = vsel %vm897, %v951, 0.0
    %v954 = vadd.f32 %v952, 0.0
    %v955 = vadd.f32 %v953, 0.0
    %v956 = vand.u32 2147483647, %v927
    %v958 = vcombine.high %v956, %v956
    %v960 = vsel %vm115, %v956, 0.0
    %v961 = vrot.slane %v960, 4
    %v962 = vadd.f32 %v960, %v961
    %v963 = vrot.slane %v962, 2
    %v964 = vadd.f32 %v962, %v963
    %v965 = vrot.slane %v964, 1
    %v966 = vadd.f32 %v964, %v965
    %v967 = vsel %vm115, %v958, 0.0
    %v968 = vrot.slane %v967, 4
    %v969 = vadd.f32 %v967, %v968
    %v970 = vrot.slane %v969, 2
    %v971 = vadd.f32 %v969, %v970
    %v972 = vrot.slane %v971, 1
    %v973 = vadd.f32 %v971, %v972
    %v974 = vsel %vm896, %v966, 0.0
    %v975 = vsel %vm897, %v973, 0.0
    %v976 = vadd.f32 %v974, 0.0
    %v977 = vadd.f32 %v975, 0.0
    %v978 = vld [vmem:[%s162] sm:$0x77]
    %v979 = vld [vmem:[%s164] sm:$0x77]
    %v981 = vcombine.high %v978, %v978
    %983 = vrot.lane.b32.xlu0 %v978, 32
    %v984 = vpop.permute.xlu0 %983
    %985 = vrot.lane.b32.xlu0 %v981, 32
    %v986 = vpop.permute.xlu0 %985
    %v987 = vsel %vm859, %v984, %v986
    %v988 = vsel %vm859, %v986, %v984
    %v991 = vcombine.low %v988, %v987
    %v993 = vsub.f32 %v978, %v991
    %v995 = vcombine.high %v979, %v979
    %997 = vrot.lane.b32.xlu0 %v979, 32
    %v998 = vpop.permute.xlu0 %997
    %999 = vrot.lane.b32.xlu0 %v995, 32
    %v1000 = vpop.permute.xlu0 %999
    %v1001 = vsel %vm859, %v998, %v1000
    %v1002 = vsel %vm859, %v1000, %v998
    %v1005 = vcombine.low %v1002, %v1001
    %v1007 = vsub.f32 %v979, %v1005
    %v1008 = vmul.f32 %v993, %v993
    %v1010 = vcombine.high %v1008, %v1008
    %v1012 = vsel %vm115, %v1008, 0.0
    %v1013 = vrot.slane %v1012, 4
    %v1014 = vadd.f32 %v1012, %v1013
    %v1015 = vrot.slane %v1014, 2
    %v1016 = vadd.f32 %v1014, %v1015
    %v1017 = vrot.slane %v1016, 1
    %v1018 = vadd.f32 %v1016, %v1017
    %v1019 = vsel %vm115, %v1010, 0.0
    %v1020 = vrot.slane %v1019, 4
    %v1021 = vadd.f32 %v1019, %v1020
    %v1022 = vrot.slane %v1021, 2
    %v1023 = vadd.f32 %v1021, %v1022
    %v1024 = vrot.slane %v1023, 1
    %v1025 = vadd.f32 %v1023, %v1024
    %v1026 = vmul.f32 %v1018, -0.005
    %v1027 = vmul.f32 %v1025, -0.005
    %v1028 = vmul.f32 %v1026, 1.442695
    %v1029 = vpow.pop %v1028
    %v1030 = vmul.f32 %v1027, 1.442695
    %v1031 = vpow.pop %v1030
    %v1032 = vsel %vm896, %v1029, 0.0
    %v1033 = vsel %vm897, %v1031, 0.0
    %v1034 = vadd.f32 %v954, %v1032
    %v1035 = vadd.f32 %v955, %v1033
    %v1036 = vand.u32 2147483647, %v1007
    %v1038 = vcombine.high %v1036, %v1036
    %v1040 = vsel %vm115, %v1036, 0.0
    %v1041 = vrot.slane %v1040, 4
    %v1042 = vadd.f32 %v1040, %v1041
    %v1043 = vrot.slane %v1042, 2
    %v1044 = vadd.f32 %v1042, %v1043
    %v1045 = vrot.slane %v1044, 1
    %v1046 = vadd.f32 %v1044, %v1045
    %v1047 = vsel %vm115, %v1038, 0.0
    %v1048 = vrot.slane %v1047, 4
    %v1049 = vadd.f32 %v1047, %v1048
    %v1050 = vrot.slane %v1049, 2
    %v1051 = vadd.f32 %v1049, %v1050
    %v1052 = vrot.slane %v1051, 1
    %v1053 = vadd.f32 %v1051, %v1052
    %v1054 = vsel %vm896, %v1046, 0.0
    %v1055 = vsel %vm897, %v1053, 0.0
    %v1056 = vadd.f32 %v976, %v1054
    %v1057 = vadd.f32 %v977, %v1055
    %v1058 = vadd.f32 %v1034, %v1035
    %v1059 = vadd.f32 %v1056, %v1057
    %1060 = vst [vmem:[#allocation2 + $0x4] sm:$0x1] %v1058
    %1061 = vst [vmem:[#allocation2 + $0x10] sm:$0x1] %v1059
    %1062 = vrot.lane.b32.xlu0 %v23, 2
    %v1063 = vpop.permute.xlu0 %1062
    %1064 = vrot.lane.b32.xlu0 %v27, 2
    %v1065 = vpop.permute.xlu0 %1064
    %vm1066 = vcmp.lt.s32.totalorder %v33, 2
    %v1067 = vsel %vm1066, %v1063, %v1065
    %v1068 = vsel %vm1066, %v1065, %v1063
    %1069 = vrot.lane.b32.xlu0 %v40, 2
    %v1070 = vpop.permute.xlu0 %1069
    %1071 = vrot.lane.b32.xlu0 %v44, 2
    %v1072 = vpop.permute.xlu0 %1071
    %v1073 = vsel %vm1066, %v1070, %v1072
    %v1074 = vsel %vm1066, %v1072, %v1070
    %vm1075 = vcmp.eq.s32.totalorder %v1068, %v23
    %vm1076 = vcmp.eq.s32.totalorder %v1067, %v27
    %v1077 = vsub.s32 %v19, 2
    %v1078 = vlaneseq
    %v1079 = vshrl.u32 %v1078, 7
    %v1080 = vsub.s32 0, %v1079
    %v1081 = vrot.slane %v1077, %v1080
    %v1082 = vlaneseq
    %v1083 = vshrl.u32 %v1082, 7
    %v1084 = vsub.s32 1, %v1083
    %v1085 = vrot.slane %v1077, %v1084
    %vm1086 = vcmp.eq.s32.totalorder %v1074, %v1081
    %vm1087 = vcmp.eq.s32.totalorder %v1073, %v1085
    %vm1088 = vmand %vm1075, %vm1086
    %vm1089 = vmand %vm1076, %vm1087
    %v1090 = vadd.s32 %v19, 2
    %v1091 = vlaneseq
    %v1092 = vshrl.u32 %v1091, 7
    %v1093 = vsub.s32 0, %v1092
    %v1094 = vrot.slane %v1090, %v1093
    %v1095 = vlaneseq
    %v1096 = vshrl.u32 %v1095, 7
    %v1097 = vsub.s32 1, %v1096
    %v1098 = vrot.slane %v1090, %v1097
    %vm1099 = vcmp.eq.s32.totalorder %v1074, %v1094
    %vm1100 = vcmp.eq.s32.totalorder %v1073, %v1098
    %vm1101 = vmand %vm1075, %vm1099
    %vm1102 = vmand %vm1076, %vm1100
    %vm1103 = vmor %vm1088, %vm1101
    %vm1104 = vmor %vm1089, %vm1102
    %v1105 = vld [vmem:[%s2] sm:$0x77]
    %v1106 = vld [vmem:[%s3] sm:$0x77]
    %v1108 = vcombine.high %v1105, %v1105
    %1110 = vrot.lane.b32.xlu0 %v1105, 2
    %v1111 = vpop.permute.xlu0 %1110
    %1112 = vrot.lane.b32.xlu0 %v1108, 2
    %v1113 = vpop.permute.xlu0 %1112
    %v1114 = vsel %vm1066, %v1111, %v1113
    %v1115 = vsel %vm1066, %v1113, %v1111
    %v1118 = vcombine.low %v1115, %v1114
    %v1120 = vsub.f32 %v1105, %v1118
    %v1122 = vcombine.high %v1106, %v1106
    %1124 = vrot.lane.b32.xlu0 %v1106, 2
    %v1125 = vpop.permute.xlu0 %1124
    %1126 = vrot.lane.b32.xlu0 %v1122, 2
    %v1127 = vpop.permute.xlu0 %1126
    %v1128 = vsel %vm1066, %v1125, %v1127
    %v1129 = vsel %vm1066, %v1127, %v1125
    %v1132 = vcombine.low %v1129, %v1128
    %v1134 = vsub.f32 %v1106, %v1132
    %v1135 = vmul.f32 %v1120, %v1120
    %v1137 = vcombine.high %v1135, %v1135
    %v1139 = vsel %vm115, %v1135, 0.0
    %v1140 = vrot.slane %v1139, 4
    %v1141 = vadd.f32 %v1139, %v1140
    %v1142 = vrot.slane %v1141, 2
    %v1143 = vadd.f32 %v1141, %v1142
    %v1144 = vrot.slane %v1143, 1
    %v1145 = vadd.f32 %v1143, %v1144
    %v1146 = vsel %vm115, %v1137, 0.0
    %v1147 = vrot.slane %v1146, 4
    %v1148 = vadd.f32 %v1146, %v1147
    %v1149 = vrot.slane %v1148, 2
    %v1150 = vadd.f32 %v1148, %v1149
    %v1151 = vrot.slane %v1150, 1
    %v1152 = vadd.f32 %v1150, %v1151
    %v1153 = vmul.f32 %v1145, -0.005
    %v1154 = vmul.f32 %v1152, -0.005
    %v1155 = vmul.f32 %v1153, 1.442695
    %v1156 = vpow.pop %v1155
    %v1157 = vmul.f32 %v1154, 1.442695
    %v1158 = vpow.pop %v1157
    %v1159 = vsel %vm1103, %v1156, 0.0
    %v1160 = vsel %vm1104, %v1158, 0.0
    %v1161 = vadd.f32 %v1159, 0.0
    %v1162 = vadd.f32 %v1160, 0.0
    %v1163 = vand.u32 2147483647, %v1134
    %v1165 = vcombine.high %v1163, %v1163
    %v1167 = vsel %vm115, %v1163, 0.0
    %v1168 = vrot.slane %v1167, 4
    %v1169 = vadd.f32 %v1167, %v1168
    %v1170 = vrot.slane %v1169, 2
    %v1171 = vadd.f32 %v1169, %v1170
    %v1172 = vrot.slane %v1171, 1
    %v1173 = vadd.f32 %v1171, %v1172
    %v1174 = vsel %vm115, %v1165, 0.0
    %v1175 = vrot.slane %v1174, 4
    %v1176 = vadd.f32 %v1174, %v1175
    %v1177 = vrot.slane %v1176, 2
    %v1178 = vadd.f32 %v1176, %v1177
    %v1179 = vrot.slane %v1178, 1
    %v1180 = vadd.f32 %v1178, %v1179
    %v1181 = vsel %vm1103, %v1173, 0.0
    %v1182 = vsel %vm1104, %v1180, 0.0
    %v1183 = vadd.f32 %v1181, 0.0
    %v1184 = vadd.f32 %v1182, 0.0
    %v1185 = vld [vmem:[%s162] sm:$0x77]
    %v1186 = vld [vmem:[%s164] sm:$0x77]
    %v1188 = vcombine.high %v1185, %v1185
    %1190 = vrot.lane.b32.xlu0 %v1185, 2
    %v1191 = vpop.permute.xlu0 %1190
    %1192 = vrot.lane.b32.xlu0 %v1188, 2
    %v1193 = vpop.permute.xlu0 %1192
    %v1194 = vsel %vm1066, %v1191, %v1193
    %v1195 = vsel %vm1066, %v1193, %v1191
    %v1198 = vcombine.low %v1195, %v1194
    %v1200 = vsub.f32 %v1185, %v1198
    %v1202 = vcombine.high %v1186, %v1186
    %1204 = vrot.lane.b32.xlu0 %v1186, 2
    %v1205 = vpop.permute.xlu0 %1204
    %1206 = vrot.lane.b32.xlu0 %v1202, 2
    %v1207 = vpop.permute.xlu0 %1206
    %v1208 = vsel %vm1066, %v1205, %v1207
    %v1209 = vsel %vm1066, %v1207, %v1205
    %v1212 = vcombine.low %v1209, %v1208
    %v1214 = vsub.f32 %v1186, %v1212
    %v1215 = vmul.f32 %v1200, %v1200
    %v1217 = vcombine.high %v1215, %v1215
    %v1219 = vsel %vm115, %v1215, 0.0
    %v1220 = vrot.slane %v1219, 4
    %v1221 = vadd.f32 %v1219, %v1220
    %v1222 = vrot.slane %v1221, 2
    %v1223 = vadd.f32 %v1221, %v1222
    %v1224 = vrot.slane %v1223, 1
    %v1225 = vadd.f32 %v1223, %v1224
    %v1226 = vsel %vm115, %v1217, 0.0
    %v1227 = vrot.slane %v1226, 4
    %v1228 = vadd.f32 %v1226, %v1227
    %v1229 = vrot.slane %v1228, 2
    %v1230 = vadd.f32 %v1228, %v1229
    %v1231 = vrot.slane %v1230, 1
    %v1232 = vadd.f32 %v1230, %v1231
    %v1233 = vmul.f32 %v1225, -0.005
    %v1234 = vmul.f32 %v1232, -0.005
    %v1235 = vmul.f32 %v1233, 1.442695
    %v1236 = vpow.pop %v1235
    %v1237 = vmul.f32 %v1234, 1.442695
    %v1238 = vpow.pop %v1237
    %v1239 = vsel %vm1103, %v1236, 0.0
    %v1240 = vsel %vm1104, %v1238, 0.0
    %v1241 = vadd.f32 %v1161, %v1239
    %v1242 = vadd.f32 %v1162, %v1240
    %v1243 = vand.u32 2147483647, %v1214
    %v1245 = vcombine.high %v1243, %v1243
    %v1247 = vsel %vm115, %v1243, 0.0
    %v1248 = vrot.slane %v1247, 4
    %v1249 = vadd.f32 %v1247, %v1248
    %v1250 = vrot.slane %v1249, 2
    %v1251 = vadd.f32 %v1249, %v1250
    %v1252 = vrot.slane %v1251, 1
    %v1253 = vadd.f32 %v1251, %v1252
    %v1254 = vsel %vm115, %v1245, 0.0
    %v1255 = vrot.slane %v1254, 4
    %v1256 = vadd.f32 %v1254, %v1255
    %v1257 = vrot.slane %v1256, 2
    %v1258 = vadd.f32 %v1256, %v1257
    %v1259 = vrot.slane %v1258, 1
    %v1260 = vadd.f32 %v1258, %v1259
    %v1261 = vsel %vm1103, %v1253, 0.0
    %v1262 = vsel %vm1104, %v1260, 0.0
    %v1263 = vadd.f32 %v1183, %v1261
    %v1264 = vadd.f32 %v1184, %v1262
    %v1265 = vadd.f32 %v1241, %v1242
    %v1266 = vadd.f32 %v1263, %v1264
    %1267 = vst [vmem:[#allocation2 + $0x5] sm:$0x1] %v1265
    %1268 = vst [vmem:[#allocation2 + $0x11] sm:$0x1] %v1266
    %1269 = vrot.lane.b32.xlu0 %v23, 33
    %v1270 = vpop.permute.xlu0 %1269
    %1271 = vrot.lane.b32.xlu0 %v27, 33
    %v1272 = vpop.permute.xlu0 %1271
    %vm1273 = vcmp.lt.s32.totalorder %v33, 33
    %v1274 = vsel %vm1273, %v1270, %v1272
    %v1275 = vsel %vm1273, %v1272, %v1270
    %1276 = vrot.lane.b32.xlu0 %v40, 33
    %v1277 = vpop.permute.xlu0 %1276
    %1278 = vrot.lane.b32.xlu0 %v44, 33
    %v1279 = vpop.permute.xlu0 %1278
    %v1280 = vsel %vm1273, %v1277, %v1279
    %v1281 = vsel %vm1273, %v1279, %v1277
    %vm1282 = vcmp.eq.s32.totalorder %v1275, %v872
    %vm1283 = vcmp.eq.s32.totalorder %v1274, %v876
    %vm1284 = vcmp.eq.s32.totalorder %v1281, %v267
    %vm1285 = vcmp.eq.s32.totalorder %v1280, %v271
    %vm1286 = vmand %vm1282, %vm1284
    %vm1287 = vmand %vm1283, %vm1285
    %vm1288 = vcmp.eq.s32.totalorder %v1275, %v887
    %vm1289 = vcmp.eq.s32.totalorder %v1274, %v891
    %vm1290 = vcmp.eq.s32.totalorder %v1281, %v280
    %vm1291 = vcmp.eq.s32.totalorder %v1280, %v284
    %vm1292 = vmand %vm1288, %vm1290
    %vm1293 = vmand %vm1289, %vm1291
    %vm1294 = vmor %vm1286, %vm1292
    %vm1295 = vmor %vm1287, %vm1293
    %v1296 = vld [vmem:[%s2] sm:$0x77]
    %v1297 = vld [vmem:[%s3] sm:$0x77]
    %v1299 = vcombine.high %v1296, %v1296
    %1301 = vrot.lane.b32.xlu0 %v1296, 33
    %v1302 = vpop.permute.xlu0 %1301
    %1303 = vrot.lane.b32.xlu0 %v1299, 33
    %v1304 = vpop.permute.xlu0 %1303
    %v1305 = vsel %vm1273, %v1302, %v1304
    %v1306 = vsel %vm1273, %v1304, %v1302
    %v1309 = vcombine.low %v1306, %v1305
    %v1311 = vsub.f32 %v1296, %v1309
    %v1313 = vcombine.high %v1297, %v1297
    %1315 = vrot.lane.b32.xlu0 %v1297, 33
    %v1316 = vpop.permute.xlu0 %1315
    %1317 = vrot.lane.b32.xlu0 %v1313, 33
    %v1318 = vpop.permute.xlu0 %1317
    %v1319 = vsel %vm1273, %v1316, %v1318
    %v1320 = vsel %vm1273, %v1318, %v1316
    %v1323 = vcombine.low %v1320, %v1319
    %v1325 = vsub.f32 %v1297, %v1323
    %v1326 = vmul.f32 %v1311, %v1311
    %v1328 = vcombine.high %v1326, %v1326
    %v1330 = vsel %vm115, %v1326, 0.0
    %v1331 = vrot.slane %v1330, 4
    %v1332 = vadd.f32 %v1330, %v1331
    %v1333 = vrot.slane %v1332, 2
    %v1334 = vadd.f32 %v1332, %v1333
    %v1335 = vrot.slane %v1334, 1
    %v1336 = vadd.f32 %v1334, %v1335
    %v1337 = vsel %vm115, %v1328, 0.0
    %v1338 = vrot.slane %v1337, 4
    %v1339 = vadd.f32 %v1337, %v1338
    %v1340 = vrot.slane %v1339, 2
    %v1341 = vadd.f32 %v1339, %v1340
    %v1342 = vrot.slane %v1341, 1
    %v1343 = vadd.f32 %v1341, %v1342
    %v1344 = vmul.f32 %v1336, -0.005
    %v1345 = vmul.f32 %v1343, -0.005
    %v1346 = vmul.f32 %v1344, 1.442695
    %v1347 = vpow.pop %v1346
    %v1348 = vmul.f32 %v1345, 1.442695
    %v1349 = vpow.pop %v1348
    %v1350 = vsel %vm1294, %v1347, 0.0
    %v1351 = vsel %vm1295, %v1349, 0.0
    %v1352 = vadd.f32 %v1350, 0.0
    %v1353 = vadd.f32 %v1351, 0.0
    %v1354 = vand.u32 2147483647, %v1325
    %v1356 = vcombine.high %v1354, %v1354
    %v1358 = vsel %vm115, %v1354, 0.0
    %v1359 = vrot.slane %v1358, 4
    %v1360 = vadd.f32 %v1358, %v1359
    %v1361 = vrot.slane %v1360, 2
    %v1362 = vadd.f32 %v1360, %v1361
    %v1363 = vrot.slane %v1362, 1
    %v1364 = vadd.f32 %v1362, %v1363
    %v1365 = vsel %vm115, %v1356, 0.0
    %v1366 = vrot.slane %v1365, 4
    %v1367 = vadd.f32 %v1365, %v1366
    %v1368 = vrot.slane %v1367, 2
    %v1369 = vadd.f32 %v1367, %v1368
    %v1370 = vrot.slane %v1369, 1
    %v1371 = vadd.f32 %v1369, %v1370
    %v1372 = vsel %vm1294, %v1364, 0.0
    %v1373 = vsel %vm1295, %v1371, 0.0
    %v1374 = vadd.f32 %v1372, 0.0
    %v1375 = vadd.f32 %v1373, 0.0
    %v1376 = vld [vmem:[%s162] sm:$0x77]
    %v1377 = vld [vmem:[%s164] sm:$0x77]
    %v1379 = vcombine.high %v1376, %v1376
    %1381 = vrot.lane.b32.xlu0 %v1376, 33
    %v1382 = vpop.permute.xlu0 %1381
    %1383 = vrot.lane.b32.xlu0 %v1379, 33
    %v1384 = vpop.permute.xlu0 %1383
    %v1385 = vsel %vm1273, %v1382, %v1384
    %v1386 = vsel %vm1273, %v1384, %v1382
    %v1389 = vcombine.low %v1386, %v1385
    %v1391 = vsub.f32 %v1376, %v1389
    %v1393 = vcombine.high %v1377, %v1377
    %1395 = vrot.lane.b32.xlu0 %v1377, 33
    %v1396 = vpop.permute.xlu0 %1395
    %1397 = vrot.lane.b32.xlu0 %v1393, 33
    %v1398 = vpop.permute.xlu0 %1397
    %v1399 = vsel %vm1273, %v1396, %v1398
    %v1400 = vsel %vm1273, %v1398, %v1396
    %v1403 = vcombine.low %v1400, %v1399
    %v1405 = vsub.f32 %v1377, %v1403
    %v1406 = vmul.f32 %v1391, %v1391
    %v1408 = vcombine.high %v1406, %v1406
    %v1410 = vsel %vm115, %v1406, 0.0
    %v1411 = vrot.slane %v1410, 4
    %v1412 = vadd.f32 %v1410, %v1411
    %v1413 = vrot.slane %v1412, 2
    %v1414 = vadd.f32 %v1412, %v1413
    %v1415 = vrot.slane %v1414, 1
    %v1416 = vadd.f32 %v1414, %v1415
    %v1417 = vsel %vm115, %v1408, 0.0
    %v1418 = vrot.slane %v1417, 4
    %v1419 = vadd.f32 %v1417, %v1418
    %v1420 = vrot.slane %v1419, 2
    %v1421 = vadd.f32 %v1419, %v1420
    %v1422 = vrot.slane %v1421, 1
    %v1423 = vadd.f32 %v1421, %v1422
    %v1424 = vmul.f32 %v1416, -0.005
    %v1425 = vmul.f32 %v1423, -0.005
    %v1426 = vmul.f32 %v1424, 1.442695
    %v1427 = vpow.pop %v1426
    %v1428 = vmul.f32 %v1425, 1.442695
    %v1429 = vpow.pop %v1428
    %v1430 = vsel %vm1294, %v1427, 0.0
    %v1431 = vsel %vm1295, %v1429, 0.0
    %v1432 = vadd.f32 %v1352, %v1430
    %v1433 = vadd.f32 %v1353, %v1431
    %v1434 = vand.u32 2147483647, %v1405
    %v1436 = vcombine.high %v1434, %v1434
    %v1438 = vsel %vm115, %v1434, 0.0
    %v1439 = vrot.slane %v1438, 4
    %v1440 = vadd.f32 %v1438, %v1439
    %v1441 = vrot.slane %v1440, 2
    %v1442 = vadd.f32 %v1440, %v1441
    %v1443 = vrot.slane %v1442, 1
    %v1444 = vadd.f32 %v1442, %v1443
    %v1445 = vsel %vm115, %v1436, 0.0
    %v1446 = vrot.slane %v1445, 4
    %v1447 = vadd.f32 %v1445, %v1446
    %v1448 = vrot.slane %v1447, 2
    %v1449 = vadd.f32 %v1447, %v1448
    %v1450 = vrot.slane %v1449, 1
    %v1451 = vadd.f32 %v1449, %v1450
    %v1452 = vsel %vm1294, %v1444, 0.0
    %v1453 = vsel %vm1295, %v1451, 0.0
    %v1454 = vadd.f32 %v1374, %v1452
    %v1455 = vadd.f32 %v1375, %v1453
    %v1456 = vadd.f32 %v1432, %v1433
    %v1457 = vadd.f32 %v1454, %v1455
    %1458 = vst [vmem:[#allocation2 + $0x6] sm:$0x1] %v1456
    %1459 = vst [vmem:[#allocation2 + $0x12] sm:$0x1] %v1457
    %1460 = vrot.lane.b32.xlu0 %v23, 31
    %v1461 = vpop.permute.xlu0 %1460
    %1462 = vrot.lane.b32.xlu0 %v27, 31
    %v1463 = vpop.permute.xlu0 %1462
    %vm1464 = vcmp.lt.s32.totalorder %v33, 31
    %v1465 = vsel %vm1464, %v1461, %v1463
    %v1466 = vsel %vm1464, %v1463, %v1461
    %1467 = vrot.lane.b32.xlu0 %v40, 31
    %v1468 = vpop.permute.xlu0 %1467
    %1469 = vrot.lane.b32.xlu0 %v44, 31
    %v1470 = vpop.permute.xlu0 %1469
    %v1471 = vsel %vm1464, %v1468, %v1470
    %v1472 = vsel %vm1464, %v1470, %v1468
    %vm1473 = vcmp.eq.s32.totalorder %v1466, %v872
    %vm1474 = vcmp.eq.s32.totalorder %v1465, %v876
    %vm1475 = vcmp.eq.s32.totalorder %v1472, %v665
    %vm1476 = vcmp.eq.s32.totalorder %v1471, %v669
    %vm1477 = vmand %vm1473, %vm1475
    %vm1478 = vmand %vm1474, %vm1476
    %vm1479 = vcmp.eq.s32.totalorder %v1466, %v887
    %vm1480 = vcmp.eq.s32.totalorder %v1465, %v891
    %vm1481 = vcmp.eq.s32.totalorder %v1472, %v680
    %vm1482 = vcmp.eq.s32.totalorder %v1471, %v684
    %vm1483 = vmand %vm1479, %vm1481
    %vm1484 = vmand %vm1480, %vm1482
    %vm1485 = vmor %vm1477, %vm1483
    %vm1486 = vmor %vm1478, %vm1484
    %v1487 = vld [vmem:[%s2] sm:$0x77]
    %v1488 = vld [vmem:[%s3] sm:$0x77]
    %v1490 = vcombine.high %v1487, %v1487
    %1492 = vrot.lane.b32.xlu0 %v1487, 31
    %v1493 = vpop.permute.xlu0 %1492
    %1494 = vrot.lane.b32.xlu0 %v1490, 31
    %v1495 = vpop.permute.xlu0 %1494
    %v1496 = vsel %vm1464, %v1493, %v1495
    %v1497 = vsel %vm1464, %v1495, %v1493
    %v1500 = vcombine.low %v1497, %v1496
    %v1502 = vsub.f32 %v1487, %v1500
    %v1504 = vcombine.high %v1488, %v1488
    %1506 = vrot.lane.b32.xlu0 %v1488, 31
    %v1507 = vpop.permute.xlu0 %1506
    %1508 = vrot.lane.b32.xlu0 %v1504, 31
    %v1509 = vpop.permute.xlu0 %1508
    %v1510 = vsel %vm1464, %v1507, %v1509
    %v1511 = vsel %vm1464, %v1509, %v1507
    %v1514 = vcombine.low %v1511, %v1510
    %v1516 = vsub.f32 %v1488, %v1514
    %v1517 = vmul.f32 %v1502, %v1502
    %v1519 = vcombine.high %v1517, %v1517
    %v1521 = vsel %vm115, %v1517, 0.0
    %v1522 = vrot.slane %v1521, 4
    %v1523 = vadd.f32 %v1521, %v1522
    %v1524 = vrot.slane %v1523, 2
    %v1525 = vadd.f32 %v1523, %v1524
    %v1526 = vrot.slane %v1525, 1
    %v1527 = vadd.f32 %v1525, %v1526
    %v1528 = vsel %vm115, %v1519, 0.0
    %v1529 = vrot.slane %v1528, 4
    %v1530 = vadd.f32 %v1528, %v1529
    %v1531 = vrot.slane %v1530, 2
    %v1532 = vadd.f32 %v1530, %v1531
    %v1533 = vrot.slane %v1532, 1
    %v1534 = vadd.f32 %v1532, %v1533
    %v1535 = vmul.f32 %v1527, -0.005
    %v1536 = vmul.f32 %v1534, -0.005
    %v1537 = vmul.f32 %v1535, 1.442695
    %v1538 = vpow.pop %v1537
    %v1539 = vmul.f32 %v1536, 1.442695
    %v1540 = vpow.pop %v1539
    %v1541 = vsel %vm1485, %v1538, 0.0
    %v1542 = vsel %vm1486, %v1540, 0.0
    %v1543 = vadd.f32 %v1541, 0.0
    %v1544 = vadd.f32 %v1542, 0.0
    %v1545 = vand.u32 2147483647, %v1516
    %v1547 = vcombine.high %v1545, %v1545
    %v1549 = vsel %vm115, %v1545, 0.0
    %v1550 = vrot.slane %v1549, 4
    %v1551 = vadd.f32 %v1549, %v1550
    %v1552 = vrot.slane %v1551, 2
    %v1553 = vadd.f32 %v1551, %v1552
    %v1554 = vrot.slane %v1553, 1
    %v1555 = vadd.f32 %v1553, %v1554
    %v1556 = vsel %vm115, %v1547, 0.0
    %v1557 = vrot.slane %v1556, 4
    %v1558 = vadd.f32 %v1556, %v1557
    %v1559 = vrot.slane %v1558, 2
    %v1560 = vadd.f32 %v1558, %v1559
    %v1561 = vrot.slane %v1560, 1
    %v1562 = vadd.f32 %v1560, %v1561
    %v1563 = vsel %vm1485, %v1555, 0.0
    %v1564 = vsel %vm1486, %v1562, 0.0
    %v1565 = vadd.f32 %v1563, 0.0
    %v1566 = vadd.f32 %v1564, 0.0
    %v1567 = vld [vmem:[%s162] sm:$0x77]
    %v1568 = vld [vmem:[%s164] sm:$0x77]
    %v1570 = vcombine.high %v1567, %v1567
    %1572 = vrot.lane.b32.xlu0 %v1567, 31
    %v1573 = vpop.permute.xlu0 %1572
    %1574 = vrot.lane.b32.xlu0 %v1570, 31
    %v1575 = vpop.permute.xlu0 %1574
    %v1576 = vsel %vm1464, %v1573, %v1575
    %v1577 = vsel %vm1464, %v1575, %v1573
    %v1580 = vcombine.low %v1577, %v1576
    %v1582 = vsub.f32 %v1567, %v1580
    %v1584 = vcombine.high %v1568, %v1568
    %1586 = vrot.lane.b32.xlu0 %v1568, 31
    %v1587 = vpop.permute.xlu0 %1586
    %1588 = vrot.lane.b32.xlu0 %v1584, 31
    %v1589 = vpop.permute.xlu0 %1588
    %v1590 = vsel %vm1464, %v1587, %v1589
    %v1591 = vsel %vm1464, %v1589, %v1587
    %v1594 = vcombine.low %v1591, %v1590
    %v1596 = vsub.f32 %v1568, %v1594
    %v1597 = vmul.f32 %v1582, %v1582
    %v1599 = vcombine.high %v1597, %v1597
    %v1601 = vsel %vm115, %v1597, 0.0
    %v1602 = vrot.slane %v1601, 4
    %v1603 = vadd.f32 %v1601, %v1602
    %v1604 = vrot.slane %v1603, 2
    %v1605 = vadd.f32 %v1603, %v1604
    %v1606 = vrot.slane %v1605, 1
    %v1607 = vadd.f32 %v1605, %v1606
    %v1608 = vsel %vm115, %v1599, 0.0
    %v1609 = vrot.slane %v1608, 4
    %v1610 = vadd.f32 %v1608, %v1609
    %v1611 = vrot.slane %v1610, 2
    %v1612 = vadd.f32 %v1610, %v1611
    %v1613 = vrot.slane %v1612, 1
    %v1614 = vadd.f32 %v1612, %v1613
    %v1615 = vmul.f32 %v1607, -0.005
    %v1616 = vmul.f32 %v1614, -0.005
    %v1617 = vmul.f32 %v1615, 1.442695
    %v1618 = vpow.pop %v1617
    %v1619 = vmul.f32 %v1616, 1.442695
    %v1620 = vpow.pop %v1619
    %v1621 = vsel %vm1485, %v1618, 0.0
    %v1622 = vsel %vm1486, %v1620, 0.0
    %v1623 = vadd.f32 %v1543, %v1621
    %v1624 = vadd.f32 %v1544, %v1622
    %v1625 = vand.u32 2147483647, %v1596
    %v1627 = vcombine.high %v1625, %v1625
    %v1629 = vsel %vm115, %v1625, 0.0
    %v1630 = vrot.slane %v1629, 4
    %v1631 = vadd.f32 %v1629, %v1630
    %v1632 = vrot.slane %v1631, 2
    %v1633 = vadd.f32 %v1631, %v1632
    %v1634 = vrot.slane %v1633, 1
    %v1635 = vadd.f32 %v1633, %v1634
    %v1636 = vsel %vm115, %v1627, 0.0
    %v1637 = vrot.slane %v1636, 4
    %v1638 = vadd.f32 %v1636, %v1637
    %v1639 = vrot.slane %v1638, 2
    %v1640 = vadd.f32 %v1638, %v1639
    %v1641 = vrot.slane %v1640, 1
    %v1642 = vadd.f32 %v1640, %v1641
    %v1643 = vsel %vm1485, %v1635, 0.0
    %v1644 = vsel %vm1486, %v1642, 0.0
    %v1645 = vadd.f32 %v1565, %v1643
    %v1646 = vadd.f32 %v1566, %v1644
    %v1647 = vadd.f32 %v1623, %v1624
    %v1648 = vadd.f32 %v1645, %v1646
    %1649 = vst [vmem:[#allocation2 + $0x7] sm:$0x1] %v1647
    %1650 = vst [vmem:[#allocation2 + $0x13] sm:$0x1] %v1648
    %1651 = vrot.lane.b32.xlu0 %v23, 18
    %v1652 = vpop.permute.xlu0 %1651
    %1653 = vrot.lane.b32.xlu0 %v27, 18
    %v1654 = vpop.permute.xlu0 %1653
    %vm1655 = vcmp.lt.s32.totalorder %v33, 18
    %v1656 = vsel %vm1655, %v1652, %v1654
    %v1657 = vsel %vm1655, %v1654, %v1652
    %1658 = vrot.lane.b32.xlu0 %v40, 18
    %v1659 = vpop.permute.xlu0 %1658
    %1660 = vrot.lane.b32.xlu0 %v44, 18
    %v1661 = vpop.permute.xlu0 %1660
    %v1662 = vsel %vm1655, %v1659, %v1661
    %v1663 = vsel %vm1655, %v1661, %v1659
    %vm1664 = vcmp.eq.s32.totalorder %v1657, %v55
    %vm1665 = vcmp.eq.s32.totalorder %v1656, %v59
    %vm1666 = vcmp.eq.s32.totalorder %v1663, %v1081
    %vm1667 = vcmp.eq.s32.totalorder %v1662, %v1085
    %vm1668 = vmand %vm1664, %vm1666
    %vm1669 = vmand %vm1665, %vm1667
    %vm1670 = vcmp.eq.s32.totalorder %v1657, %v70
    %vm1671 = vcmp.eq.s32.totalorder %v1656, %v74
    %vm1672 = vcmp.eq.s32.totalorder %v1663, %v1094
    %vm1673 = vcmp.eq.s32.totalorder %v1662, %v1098
    %vm1674 = vmand %vm1670, %vm1672
    %vm1675 = vmand %vm1671, %vm1673
    %vm1676 = vmor %vm1668, %vm1674
    %vm1677 = vmor %vm1669, %vm1675
    %v1678 = vld [vmem:[%s2] sm:$0x77]
    %v1679 = vld [vmem:[%s3] sm:$0x77]
    %v1681 = vcombine.high %v1678, %v1678
    %1683 = vrot.lane.b32.xlu0 %v1678, 18
    %v1684 = vpop.permute.xlu0 %1683
    %1685 = vrot.lane.b32.xlu0 %v1681, 18
    %v1686 = vpop.permute.xlu0 %1685
    %v1687 = vsel %vm1655, %v1684, %v1686
    %v1688 = vsel %vm1655, %v1686, %v1684
    %v1691 = vcombine.low %v1688, %v1687
    %v1693 = vsub.f32 %v1678, %v1691
    %v1695 = vcombine.high %v1679, %v1679
    %1697 = vrot.lane.b32.xlu0 %v1679, 18
    %v1698 = vpop.permute.xlu0 %1697
    %1699 = vrot.lane.b32.xlu0 %v1695, 18
    %v1700 = vpop.permute.xlu0 %1699
    %v1701 = vsel %vm1655, %v1698, %v1700
    %v1702 = vsel %vm1655, %v1700, %v1698
    %v1705 = vcombine.low %v1702, %v1701
    %v1707 = vsub.f32 %v1679, %v1705
    %v1708 = vmul.f32 %v1693, %v1693
    %v1710 = vcombine.high %v1708, %v1708
    %v1712 = vsel %vm115, %v1708, 0.0
    %v1713 = vrot.slane %v1712, 4
    %v1714 = vadd.f32 %v1712, %v1713
    %v1715 = vrot.slane %v1714, 2
    %v1716 = vadd.f32 %v1714, %v1715
    %v1717 = vrot.slane %v1716, 1
    %v1718 = vadd.f32 %v1716, %v1717
    %v1719 = vsel %vm115, %v1710, 0.0
    %v1720 = vrot.slane %v1719, 4
    %v1721 = vadd.f32 %v1719, %v1720
    %v1722 = vrot.slane %v1721, 2
    %v1723 = vadd.f32 %v1721, %v1722
    %v1724 = vrot.slane %v1723, 1
    %v1725 = vadd.f32 %v1723, %v1724
    %v1726 = vmul.f32 %v1718, -0.005
    %v1727 = vmul.f32 %v1725, -0.005
    %v1728 = vmul.f32 %v1726, 1.442695
    %v1729 = vpow.pop %v1728
    %v1730 = vmul.f32 %v1727, 1.442695
    %v1731 = vpow.pop %v1730
    %v1732 = vsel %vm1676, %v1729, 0.0
    %v1733 = vsel %vm1677, %v1731, 0.0
    %v1734 = vadd.f32 %v1732, 0.0
    %v1735 = vadd.f32 %v1733, 0.0
    %v1736 = vand.u32 2147483647, %v1707
    %v1738 = vcombine.high %v1736, %v1736
    %v1740 = vsel %vm115, %v1736, 0.0
    %v1741 = vrot.slane %v1740, 4
    %v1742 = vadd.f32 %v1740, %v1741
    %v1743 = vrot.slane %v1742, 2
    %v1744 = vadd.f32 %v1742, %v1743
    %v1745 = vrot.slane %v1744, 1
    %v1746 = vadd.f32 %v1744, %v1745
    %v1747 = vsel %vm115, %v1738, 0.0
    %v1748 = vrot.slane %v1747, 4
    %v1749 = vadd.f32 %v1747, %v1748
    %v1750 = vrot.slane %v1749, 2
    %v1751 = vadd.f32 %v1749, %v1750
    %v1752 = vrot.slane %v1751, 1
    %v1753 = vadd.f32 %v1751, %v1752
    %v1754 = vsel %vm1676, %v1746, 0.0
    %v1755 = vsel %vm1677, %v1753, 0.0
    %v1756 = vadd.f32 %v1754, 0.0
    %v1757 = vadd.f32 %v1755, 0.0
    %v1758 = vld [vmem:[%s162] sm:$0x77]
    %v1759 = vld [vmem:[%s164] sm:$0x77]
    %v1761 = vcombine.high %v1758, %v1758
    %1763 = vrot.lane.b32.xlu0 %v1758, 18
    %v1764 = vpop.permute.xlu0 %1763
    %1765 = vrot.lane.b32.xlu0 %v1761, 18
    %v1766 = vpop.permute.xlu0 %1765
    %v1767 = vsel %vm1655, %v1764, %v1766
    %v1768 = vsel %vm1655, %v1766, %v1764
    %v1771 = vcombine.low %v1768, %v1767
    %v1773 = vsub.f32 %v1758, %v1771
    %v1775 = vcombine.high %v1759, %v1759
    %1777 = vrot.lane.b32.xlu0 %v1759, 18
    %v1778 = vpop.permute.xlu0 %1777
    %1779 = vrot.lane.b32.xlu0 %v1775, 18
    %v1780 = vpop.permute.xlu0 %1779
    %v1781 = vsel %vm1655, %v1778, %v1780
    %v1782 = vsel %vm1655, %v1780, %v1778
    %v1785 = vcombine.low %v1782, %v1781
    %v1787 = vsub.f32 %v1759, %v1785
    %v1788 = vmul.f32 %v1773, %v1773
    %v1790 = vcombine.high %v1788, %v1788
    %v1792 = vsel %vm115, %v1788, 0.0
    %v1793 = vrot.slane %v1792, 4
    %v1794 = vadd.f32 %v1792, %v1793
    %v1795 = vrot.slane %v1794, 2
    %v1796 = vadd.f32 %v1794, %v1795
    %v1797 = vrot.slane %v1796, 1
    %v1798 = vadd.f32 %v1796, %v1797
    %v1799 = vsel %vm115, %v1790, 0.0
    %v1800 = vrot.slane %v1799, 4
    %v1801 = vadd.f32 %v1799, %v1800
    %v1802 = vrot.slane %v1801, 2
    %v1803 = vadd.f32 %v1801, %v1802
    %v1804 = vrot.slane %v1803, 1
    %v1805 = vadd.f32 %v1803, %v1804
    %v1806 = vmul.f32 %v1798, -0.005
    %v1807 = vmul.f32 %v1805, -0.005
    %v1808 = vmul.f32 %v1806, 1.442695
    %v1809 = vpow.pop %v1808
    %v1810 = vmul.f32 %v1807, 1.442695
    %v1811 = vpow.pop %v1810
    %v1812 = vsel %vm1676, %v1809, 0.0
    %v1813 = vsel %vm1677, %v1811, 0.0
    %v1814 = vadd.f32 %v1734, %v1812
    %v1815 = vadd.f32 %v1735, %v1813
    %v1816 = vand.u32 2147483647, %v1787
    %v1818 = vcombine.high %v1816, %v1816
    %v1820 = vsel %vm115, %v1816, 0.0
    %v1821 = vrot.slane %v1820, 4
    %v1822 = vadd.f32 %v1820, %v1821
    %v1823 = vrot.slane %v1822, 2
    %v1824 = vadd.f32 %v1822, %v1823
    %v1825 = vrot.slane %v1824, 1
    %v1826 = vadd.f32 %v1824, %v1825
    %v1827 = vsel %vm115, %v1818, 0.0
    %v1828 = vrot.slane %v1827, 4
    %v1829 = vadd.f32 %v1827, %v1828
    %v1830 = vrot.slane %v1829, 2
    %v1831 = vadd.f32 %v1829, %v1830
    %v1832 = vrot.slane %v1831, 1
    %v1833 = vadd.f32 %v1831, %v1832
    %v1834 = vsel %vm1676, %v1826, 0.0
    %v1835 = vsel %vm1677, %v1833, 0.0
    %v1836 = vadd.f32 %v1756, %v1834
    %v1837 = vadd.f32 %v1757, %v1835
    %v1838 = vadd.f32 %v1814, %v1815
    %v1839 = vadd.f32 %v1836, %v1837
    %1840 = vst [vmem:[#allocation2 + $0x8] sm:$0x1] %v1838
    %1841 = vst [vmem:[#allocation2 + $0x14] sm:$0x1] %v1839
    %1842 = vrot.lane.b32.xlu0 %v23, 14
    %v1843 = vpop.permute.xlu0 %1842
    %1844 = vrot.lane.b32.xlu0 %v27, 14
    %v1845 = vpop.permute.xlu0 %1844
    %vm1846 = vcmp.lt.s32.totalorder %v33, 14
    %v1847 = vsel %vm1846, %v1843, %v1845
    %v1848 = vsel %vm1846, %v1845, %v1843
    %1849 = vrot.lane.b32.xlu0 %v40, 14
    %v1850 = vpop.permute.xlu0 %1849
    %1851 = vrot.lane.b32.xlu0 %v44, 14
    %v1852 = vpop.permute.xlu0 %1851
    %v1853 = vsel %vm1846, %v1850, %v1852
    %v1854 = vsel %vm1846, %v1852, %v1850
    %vm1855 = vcmp.eq.s32.totalorder %v1848, %v55
    %vm1856 = vcmp.eq.s32.totalorder %v1847, %v59
    %v1857 = vsub.s32 %v19, 4294967294
    %v1858 = vlaneseq
    %v1859 = vshrl.u32 %v1858, 7
    %v1860 = vsub.s32 0, %v1859
    %v1861 = vrot.slane %v1857, %v1860
    %v1862 = vlaneseq
    %v1863 = vshrl.u32 %v1862, 7
    %v1864 = vsub.s32 1, %v1863
    %v1865 = vrot.slane %v1857, %v1864
    %vm1866 = vcmp.eq.s32.totalorder %v1854, %v1861
    %vm1867 = vcmp.eq.s32.totalorder %v1853, %v1865
    %vm1868 = vmand %vm1855, %vm1866
    %vm1869 = vmand %vm1856, %vm1867
    %vm1870 = vcmp.eq.s32.totalorder %v1848, %v70
    %vm1871 = vcmp.eq.s32.totalorder %v1847, %v74
    %v1872 = vadd.s32 %v19, 4294967294
    %v1873 = vlaneseq
    %v1874 = vshrl.u32 %v1873, 7
    %v1875 = vsub.s32 0, %v1874
    %v1876 = vrot.slane %v1872, %v1875
    %v1877 = vlaneseq
    %v1878 = vshrl.u32 %v1877, 7
    %v1879 = vsub.s32 1, %v1878
    %v1880 = vrot.slane %v1872, %v1879
    %vm1881 = vcmp.eq.s32.totalorder %v1854, %v1876
    %vm1882 = vcmp.eq.s32.totalorder %v1853, %v1880
    %vm1883 = vmand %vm1870, %vm1881
    %vm1884 = vmand %vm1871, %vm1882
    %vm1885 = vmor %vm1868, %vm1883
    %vm1886 = vmor %vm1869, %vm1884
    %v1887 = vld [vmem:[%s2] sm:$0x77]
    %v1888 = vld [vmem:[%s3] sm:$0x77]
    %v1890 = vcombine.high %v1887, %v1887
    %1892 = vrot.lane.b32.xlu0 %v1887, 14
    %v1893 = vpop.permute.xlu0 %1892
    %1894 = vrot.lane.b32.xlu0 %v1890, 14
    %v1895 = vpop.permute.xlu0 %1894
    %v1896 = vsel %vm1846, %v1893, %v1895
    %v1897 = vsel %vm1846, %v1895, %v1893
    %v1900 = vcombine.low %v1897, %v1896
    %v1902 = vsub.f32 %v1887, %v1900
    %v1904 = vcombine.high %v1888, %v1888
    %1906 = vrot.lane.b32.xlu0 %v1888, 14
    %v1907 = vpop.permute.xlu0 %1906
    %1908 = vrot.lane.b32.xlu0 %v1904, 14
    %v1909 = vpop.permute.xlu0 %1908
    %v1910 = vsel %vm1846, %v1907, %v1909
    %v1911 = vsel %vm1846, %v1909, %v1907
    %v1914 = vcombine.low %v1911, %v1910
    %v1916 = vsub.f32 %v1888, %v1914
    %v1917 = vmul.f32 %v1902, %v1902
    %v1919 = vcombine.high %v1917, %v1917
    %v1921 = vsel %vm115, %v1917, 0.0
    %v1922 = vrot.slane %v1921, 4
    %v1923 = vadd.f32 %v1921, %v1922
    %v1924 = vrot.slane %v1923, 2
    %v1925 = vadd.f32 %v1923, %v1924
    %v1926 = vrot.slane %v1925, 1
    %v1927 = vadd.f32 %v1925, %v1926
    %v1928 = vsel %vm115, %v1919, 0.0
    %v1929 = vrot.slane %v1928, 4
    %v1930 = vadd.f32 %v1928, %v1929
    %v1931 = vrot.slane %v1930, 2
    %v1932 = vadd.f32 %v1930, %v1931
    %v1933 = vrot.slane %v1932, 1
    %v1934 = vadd.f32 %v1932, %v1933
    %v1935 = vmul.f32 %v1927, -0.005
    %v1936 = vmul.f32 %v1934, -0.005
    %v1937 = vmul.f32 %v1935, 1.442695
    %v1938 = vpow.pop %v1937
    %v1939 = vmul.f32 %v1936, 1.442695
    %v1940 = vpow.pop %v1939
    %v1941 = vsel %vm1885, %v1938, 0.0
    %v1942 = vsel %vm1886, %v1940, 0.0
    %v1943 = vadd.f32 %v1941, 0.0
    %v1944 = vadd.f32 %v1942, 0.0
    %v1945 = vand.u32 2147483647, %v1916
    %v1947 = vcombine.high %v1945, %v1945
    %v1949 = vsel %vm115, %v1945, 0.0
    %v1950 = vrot.slane %v1949, 4
    %v1951 = vadd.f32 %v1949, %v1950
    %v1952 = vrot.slane %v1951, 2
    %v1953 = vadd.f32 %v1951, %v1952
    %v1954 = vrot.slane %v1953, 1
    %v1955 = vadd.f32 %v1953, %v1954
    %v1956 = vsel %vm115, %v1947, 0.0
    %v1957 = vrot.slane %v1956, 4
    %v1958 = vadd.f32 %v1956, %v1957
    %v1959 = vrot.slane %v1958, 2
    %v1960 = vadd.f32 %v1958, %v1959
    %v1961 = vrot.slane %v1960, 1
    %v1962 = vadd.f32 %v1960, %v1961
    %v1963 = vsel %vm1885, %v1955, 0.0
    %v1964 = vsel %vm1886, %v1962, 0.0
    %v1965 = vadd.f32 %v1963, 0.0
    %v1966 = vadd.f32 %v1964, 0.0
    %v1967 = vld [vmem:[%s162] sm:$0x77]
    %v1968 = vld [vmem:[%s164] sm:$0x77]
    %v1970 = vcombine.high %v1967, %v1967
    %1972 = vrot.lane.b32.xlu0 %v1967, 14
    %v1973 = vpop.permute.xlu0 %1972
    %1974 = vrot.lane.b32.xlu0 %v1970, 14
    %v1975 = vpop.permute.xlu0 %1974
    %v1976 = vsel %vm1846, %v1973, %v1975
    %v1977 = vsel %vm1846, %v1975, %v1973
    %v1980 = vcombine.low %v1977, %v1976
    %v1982 = vsub.f32 %v1967, %v1980
    %v1984 = vcombine.high %v1968, %v1968
    %1986 = vrot.lane.b32.xlu0 %v1968, 14
    %v1987 = vpop.permute.xlu0 %1986
    %1988 = vrot.lane.b32.xlu0 %v1984, 14
    %v1989 = vpop.permute.xlu0 %1988
    %v1990 = vsel %vm1846, %v1987, %v1989
    %v1991 = vsel %vm1846, %v1989, %v1987
    %v1994 = vcombine.low %v1991, %v1990
    %v1996 = vsub.f32 %v1968, %v1994
    %v1997 = vmul.f32 %v1982, %v1982
    %v1999 = vcombine.high %v1997, %v1997
    %v2001 = vsel %vm115, %v1997, 0.0
    %v2002 = vrot.slane %v2001, 4
    %v2003 = vadd.f32 %v2001, %v2002
    %v2004 = vrot.slane %v2003, 2
    %v2005 = vadd.f32 %v2003, %v2004
    %v2006 = vrot.slane %v2005, 1
    %v2007 = vadd.f32 %v2005, %v2006
    %v2008 = vsel %vm115, %v1999, 0.0
    %v2009 = vrot.slane %v2008, 4
    %v2010 = vadd.f32 %v2008, %v2009
    %v2011 = vrot.slane %v2010, 2
    %v2012 = vadd.f32 %v2010, %v2011
    %v2013 = vrot.slane %v2012, 1
    %v2014 = vadd.f32 %v2012, %v2013
    %v2015 = vmul.f32 %v2007, -0.005
    %v2016 = vmul.f32 %v2014, -0.005
    %v2017 = vmul.f32 %v2015, 1.442695
    %v2018 = vpow.pop %v2017
    %v2019 = vmul.f32 %v2016, 1.442695
    %v2020 = vpow.pop %v2019
    %v2021 = vsel %vm1885, %v2018, 0.0
    %v2022 = vsel %vm1886, %v2020, 0.0
    %v2023 = vadd.f32 %v1943, %v2021
    %v2024 = vadd.f32 %v1944, %v2022
    %v2025 = vand.u32 2147483647, %v1996
    %v2027 = vcombine.high %v2025, %v2025
    %v2029 = vsel %vm115, %v2025, 0.0
    %v2030 = vrot.slane %v2029, 4
    %v2031 = vadd.f32 %v2029, %v2030
    %v2032 = vrot.slane %v2031, 2
    %v2033 = vadd.f32 %v2031, %v2032
    %v2034 = vrot.slane %v2033, 1
    %v2035 = vadd.f32 %v2033, %v2034
    %v2036 = vsel %vm115, %v2027, 0.0
    %v2037 = vrot.slane %v2036, 4
    %v2038 = vadd.f32 %v2036, %v2037
    %v2039 = vrot.slane %v2038, 2
    %v2040 = vadd.f32 %v2038, %v2039
    %v2041 = vrot.slane %v2040, 1
    %v2042 = vadd.f32 %v2040, %v2041
    %v2043 = vsel %vm1885, %v2035, 0.0
    %v2044 = vsel %vm1886, %v2042, 0.0
    %v2045 = vadd.f32 %v1965, %v2043
    %v2046 = vadd.f32 %v1966, %v2044
    %v2047 = vadd.f32 %v2023, %v2024
    %v2048 = vadd.f32 %v2045, %v2046
    %2049 = vst [vmem:[#allocation2 + $0x9] sm:$0x1] %v2047
    %2050 = vst [vmem:[#allocation2 + $0x15] sm:$0x1] %v2048
    %2051 = vrot.lane.b32.xlu0 %v23, 34
    %v2052 = vpop.permute.xlu0 %2051
    %2053 = vrot.lane.b32.xlu0 %v27, 34
    %v2054 = vpop.permute.xlu0 %2053
    %vm2055 = vcmp.lt.s32.totalorder %v33, 34
    %v2056 = vsel %vm2055, %v2052, %v2054
    %v2057 = vsel %vm2055, %v2054, %v2052
    %2058 = vrot.lane.b32.xlu0 %v40, 34
    %v2059 = vpop.permute.xlu0 %2058
    %2060 = vrot.lane.b32.xlu0 %v44, 34
    %v2061 = vpop.permute.xlu0 %2060
    %v2062 = vsel %vm2055, %v2059, %v2061
    %v2063 = vsel %vm2055, %v2061, %v2059
    %vm2064 = vcmp.eq.s32.totalorder %v2057, %v872
    %vm2065 = vcmp.eq.s32.totalorder %v2056, %v876
    %vm2066 = vcmp.eq.s32.totalorder %v2063, %v1081
    %vm2067 = vcmp.eq.s32.totalorder %v2062, %v1085
    %vm2068 = vmand %vm2064, %vm2066
    %vm2069 = vmand %vm2065, %vm2067
    %vm2070 = vcmp.eq.s32.totalorder %v2057, %v887
    %vm2071 = vcmp.eq.s32.totalorder %v2056, %v891
    %vm2072 = vcmp.eq.s32.totalorder %v2063, %v1094
    %vm2073 = vcmp.eq.s32.totalorder %v2062, %v1098
    %vm2074 = vmand %vm2070, %vm2072
    %vm2075 = vmand %vm2071, %vm2073
    %vm2076 = vmor %vm2068, %vm2074
    %vm2077 = vmor %vm2069, %vm2075
    %v2078 = vld [vmem:[%s2] sm:$0x77]
    %v2079 = vld [vmem:[%s3] sm:$0x77]
    %v2081 = vcombine.high %v2078, %v2078
    %2083 = vrot.lane.b32.xlu0 %v2078, 34
    %v2084 = vpop.permute.xlu0 %2083
    %2085 = vrot.lane.b32.xlu0 %v2081, 34
    %v2086 = vpop.permute.xlu0 %2085
    %v2087 = vsel %vm2055, %v2084, %v2086
    %v2088 = vsel %vm2055, %v2086, %v2084
    %v2091 = vcombine.low %v2088, %v2087
    %v2093 = vsub.f32 %v2078, %v2091
    %v2095 = vcombine.high %v2079, %v2079
    %2097 = vrot.lane.b32.xlu0 %v2079, 34
    %v2098 = vpop.permute.xlu0 %2097
    %2099 = vrot.lane.b32.xlu0 %v2095, 34
    %v2100 = vpop.permute.xlu0 %2099
    %v2101 = vsel %vm2055, %v2098, %v2100
    %v2102 = vsel %vm2055, %v2100, %v2098
    %v2105 = vcombine.low %v2102, %v2101
    %v2107 = vsub.f32 %v2079, %v2105
    %v2108 = vmul.f32 %v2093, %v2093
    %v2110 = vcombine.high %v2108, %v2108
    %v2112 = vsel %vm115, %v2108, 0.0
    %v2113 = vrot.slane %v2112, 4
    %v2114 = vadd.f32 %v2112, %v2113
    %v2115 = vrot.slane %v2114, 2
    %v2116 = vadd.f32 %v2114, %v2115
    %v2117 = vrot.slane %v2116, 1
    %v2118 = vadd.f32 %v2116, %v2117
    %v2119 = vsel %vm115, %v2110, 0.0
    %v2120 = vrot.slane %v2119, 4
    %v2121 = vadd.f32 %v2119, %v2120
    %v2122 = vrot.slane %v2121, 2
    %v2123 = vadd.f32 %v2121, %v2122
    %v2124 = vrot.slane %v2123, 1
    %v2125 = vadd.f32 %v2123, %v2124
    %v2126 = vmul.f32 %v2118, -0.005
    %v2127 = vmul.f32 %v2125, -0.005
    %v2128 = vmul.f32 %v2126, 1.442695
    %v2129 = vpow.pop %v2128
    %v2130 = vmul.f32 %v2127, 1.442695
    %v2131 = vpow.pop %v2130
    %v2132 = vsel %vm2076, %v2129, 0.0
    %v2133 = vsel %vm2077, %v2131, 0.0
    %v2134 = vadd.f32 %v2132, 0.0
    %v2135 = vadd.f32 %v2133, 0.0
    %v2136 = vand.u32 2147483647, %v2107
    %v2138 = vcombine.high %v2136, %v2136
    %v2140 = vsel %vm115, %v2136, 0.0
    %v2141 = vrot.slane %v2140, 4
    %v2142 = vadd.f32 %v2140, %v2141
    %v2143 = vrot.slane %v2142, 2
    %v2144 = vadd.f32 %v2142, %v2143
    %v2145 = vrot.slane %v2144, 1
    %v2146 = vadd.f32 %v2144, %v2145
    %v2147 = vsel %vm115, %v2138, 0.0
    %v2148 = vrot.slane %v2147, 4
    %v2149 = vadd.f32 %v2147, %v2148
    %v2150 = vrot.slane %v2149, 2
    %v2151 = vadd.f32 %v2149, %v2150
    %v2152 = vrot.slane %v2151, 1
    %v2153 = vadd.f32 %v2151, %v2152
    %v2154 = vsel %vm2076, %v2146, 0.0
    %v2155 = vsel %vm2077, %v2153, 0.0
    %v2156 = vadd.f32 %v2154, 0.0
    %v2157 = vadd.f32 %v2155, 0.0
    %v2158 = vld [vmem:[%s162] sm:$0x77]
    %v2159 = vld [vmem:[%s164] sm:$0x77]
    %v2161 = vcombine.high %v2158, %v2158
    %2163 = vrot.lane.b32.xlu0 %v2158, 34
    %v2164 = vpop.permute.xlu0 %2163
    %2165 = vrot.lane.b32.xlu0 %v2161, 34
    %v2166 = vpop.permute.xlu0 %2165
    %v2167 = vsel %vm2055, %v2164, %v2166
    %v2168 = vsel %vm2055, %v2166, %v2164
    %v2171 = vcombine.low %v2168, %v2167
    %v2173 = vsub.f32 %v2158, %v2171
    %v2175 = vcombine.high %v2159, %v2159
    %2177 = vrot.lane.b32.xlu0 %v2159, 34
    %v2178 = vpop.permute.xlu0 %2177
    %2179 = vrot.lane.b32.xlu0 %v2175, 34
    %v2180 = vpop.permute.xlu0 %2179
    %v2181 = vsel %vm2055, %v2178, %v2180
    %v2182 = vsel %vm2055, %v2180, %v2178
    %v2185 = vcombine.low %v2182, %v2181
    %v2187 = vsub.f32 %v2159, %v2185
    %v2188 = vmul.f32 %v2173, %v2173
    %v2190 = vcombine.high %v2188, %v2188
    %v2192 = vsel %vm115, %v2188, 0.0
    %v2193 = vrot.slane %v2192, 4
    %v2194 = vadd.f32 %v2192, %v2193
    %v2195 = vrot.slane %v2194, 2
    %v2196 = vadd.f32 %v2194, %v2195
    %v2197 = vrot.slane %v2196, 1
    %v2198 = vadd.f32 %v2196, %v2197
    %v2199 = vsel %vm115, %v2190, 0.0
    %v2200 = vrot.slane %v2199, 4
    %v2201 = vadd.f32 %v2199, %v2200
    %v2202 = vrot.slane %v2201, 2
    %v2203 = vadd.f32 %v2201, %v2202
    %v2204 = vrot.slane %v2203, 1
    %v2205 = vadd.f32 %v2203, %v2204
    %v2206 = vmul.f32 %v2198, -0.005
    %v2207 = vmul.f32 %v2205, -0.005
    %v2208 = vmul.f32 %v2206, 1.442695
    %v2209 = vpow.pop %v2208
    %v2210 = vmul.f32 %v2207, 1.442695
    %v2211 = vpow.pop %v2210
    %v2212 = vsel %vm2076, %v2209, 0.0
    %v2213 = vsel %vm2077, %v2211, 0.0
    %v2214 = vadd.f32 %v2134, %v2212
    %v2215 = vadd.f32 %v2135, %v2213
    %v2216 = vand.u32 2147483647, %v2187
    %v2218 = vcombine.high %v2216, %v2216
    %v2220 = vsel %vm115, %v2216, 0.0
    %v2221 = vrot.slane %v2220, 4
    %v2222 = vadd.f32 %v2220, %v2221
    %v2223 = vrot.slane %v2222, 2
    %v2224 = vadd.f32 %v2222, %v2223
    %v2225 = vrot.slane %v2224, 1
    %v2226 = vadd.f32 %v2224, %v2225
    %v2227 = vsel %vm115, %v2218, 0.0
    %v2228 = vrot.slane %v2227, 4
    %v2229 = vadd.f32 %v2227, %v2228
    %v2230 = vrot.slane %v2229, 2
    %v2231 = vadd.f32 %v2229, %v2230
    %v2232 = vrot.slane %v2231, 1
    %v2233 = vadd.f32 %v2231, %v2232
    %v2234 = vsel %vm2076, %v2226, 0.0
    %v2235 = vsel %vm2077, %v2233, 0.0
    %v2236 = vadd.f32 %v2156, %v2234
    %v2237 = vadd.f32 %v2157, %v2235
    %v2238 = vadd.f32 %v2214, %v2215
    %v2239 = vadd.f32 %v2236, %v2237
    %2240 = vst [vmem:[#allocation2 + $0xa] sm:$0x1] %v2238
    %2241 = vst [vmem:[#allocation2 + $0x16] sm:$0x1] %v2239
    %2242 = vrot.lane.b32.xlu0 %v23, 30
    %v2243 = vpop.permute.xlu0 %2242
    %2244 = vrot.lane.b32.xlu0 %v27, 30
    %v2245 = vpop.permute.xlu0 %2244
    %vm2246 = vcmp.lt.s32.totalorder %v33, 30
    %v2247 = vsel %vm2246, %v2243, %v2245
    %v2248 = vsel %vm2246, %v2245, %v2243
    %2249 = vrot.lane.b32.xlu0 %v40, 30
    %v2250 = vpop.permute.xlu0 %2249
    %2251 = vrot.lane.b32.xlu0 %v44, 30
    %v2252 = vpop.permute.xlu0 %2251
    %v2253 = vsel %vm2246, %v2250, %v2252
    %v2254 = vsel %vm2246, %v2252, %v2250
    %vm2255 = vcmp.eq.s32.totalorder %v2248, %v872
    %vm2256 = vcmp.eq.s32.totalorder %v2247, %v876
    %vm2257 = vcmp.eq.s32.totalorder %v2254, %v1861
    %vm2258 = vcmp.eq.s32.totalorder %v2253, %v1865
    %vm2259 = vmand %vm2255, %vm2257
    %vm2260 = vmand %vm2256, %vm2258
    %vm2261 = vcmp.eq.s32.totalorder %v2248, %v887
    %vm2262 = vcmp.eq.s32.totalorder %v2247, %v891
    %vm2263 = vcmp.eq.s32.totalorder %v2254, %v1876
    %vm2264 = vcmp.eq.s32.totalorder %v2253, %v1880
    %vm2265 = vmand %vm2261, %vm2263
    %vm2266 = vmand %vm2262, %vm2264
    %vm2267 = vmor %vm2259, %vm2265
    %vm2268 = vmor %vm2260, %vm2266
    %v2269 = vld [vmem:[%s2] sm:$0x77]
    %v2270 = vld [vmem:[%s3] sm:$0x77]
    %v2272 = vcombine.high %v2269, %v2269
    %2274 = vrot.lane.b32.xlu0 %v2269, 30
    %v2275 = vpop.permute.xlu0 %2274
    %2276 = vrot.lane.b32.xlu0 %v2272, 30
    %v2277 = vpop.permute.xlu0 %2276
    %v2278 = vsel %vm2246, %v2275, %v2277
    %v2279 = vsel %vm2246, %v2277, %v2275
    %v2282 = vcombine.low %v2279, %v2278
    %v2284 = vsub.f32 %v2269, %v2282
    %v2286 = vcombine.high %v2270, %v2270
    %2288 = vrot.lane.b32.xlu0 %v2270, 30
    %v2289 = vpop.permute.xlu0 %2288
    %2290 = vrot.lane.b32.xlu0 %v2286, 30
    %v2291 = vpop.permute.xlu0 %2290
    %v2292 = vsel %vm2246, %v2289, %v2291
    %v2293 = vsel %vm2246, %v2291, %v2289
    %v2296 = vcombine.low %v2293, %v2292
    %v2298 = vsub.f32 %v2270, %v2296
    %v2299 = vmul.f32 %v2284, %v2284
    %v2301 = vcombine.high %v2299, %v2299
    %v2303 = vsel %vm115, %v2299, 0.0
    %v2304 = vrot.slane %v2303, 4
    %v2305 = vadd.f32 %v2303, %v2304
    %v2306 = vrot.slane %v2305, 2
    %v2307 = vadd.f32 %v2305, %v2306
    %v2308 = vrot.slane %v2307, 1
    %v2309 = vadd.f32 %v2307, %v2308
    %v2310 = vsel %vm115, %v2301, 0.0
    %v2311 = vrot.slane %v2310, 4
    %v2312 = vadd.f32 %v2310, %v2311
    %v2313 = vrot.slane %v2312, 2
    %v2314 = vadd.f32 %v2312, %v2313
    %v2315 = vrot.slane %v2314, 1
    %v2316 = vadd.f32 %v2314, %v2315
    %v2317 = vmul.f32 %v2309, -0.005
    %v2318 = vmul.f32 %v2316, -0.005
    %v2319 = vmul.f32 %v2317, 1.442695
    %v2320 = vpow.pop %v2319
    %v2321 = vmul.f32 %v2318, 1.442695
    %v2322 = vpow.pop %v2321
    %v2323 = vsel %vm2267, %v2320, 0.0
    %v2324 = vsel %vm2268, %v2322, 0.0
    %v2325 = vadd.f32 %v2323, 0.0
    %v2326 = vadd.f32 %v2324, 0.0
    %v2327 = vand.u32 2147483647, %v2298
    %v2329 = vcombine.high %v2327, %v2327
    %v2331 = vsel %vm115, %v2327, 0.0
    %v2332 = vrot.slane %v2331, 4
    %v2333 = vadd.f32 %v2331, %v2332
    %v2334 = vrot.slane %v2333, 2
    %v2335 = vadd.f32 %v2333, %v2334
    %v2336 = vrot.slane %v2335, 1
    %v2337 = vadd.f32 %v2335, %v2336
    %v2338 = vsel %vm115, %v2329, 0.0
    %v2339 = vrot.slane %v2338, 4
    %v2340 = vadd.f32 %v2338, %v2339
    %v2341 = vrot.slane %v2340, 2
    %v2342 = vadd.f32 %v2340, %v2341
    %v2343 = vrot.slane %v2342, 1
    %v2344 = vadd.f32 %v2342, %v2343
    %v2345 = vsel %vm2267, %v2337, 0.0
    %v2346 = vsel %vm2268, %v2344, 0.0
    %v2347 = vadd.f32 %v2345, 0.0
    %v2348 = vadd.f32 %v2346, 0.0
    %v2349 = vld [vmem:[%s162] sm:$0x77]
    %v2350 = vld [vmem:[%s164] sm:$0x77]
    %v2352 = vcombine.high %v2349, %v2349
    %2354 = vrot.lane.b32.xlu0 %v2349, 30
    %v2355 = vpop.permute.xlu0 %2354
    %2356 = vrot.lane.b32.xlu0 %v2352, 30
    %v2357 = vpop.permute.xlu0 %2356
    %v2358 = vsel %vm2246, %v2355, %v2357
    %v2359 = vsel %vm2246, %v2357, %v2355
    %v2362 = vcombine.low %v2359, %v2358
    %v2364 = vsub.f32 %v2349, %v2362
    %v2366 = vcombine.high %v2350, %v2350
    %2368 = vrot.lane.b32.xlu0 %v2350, 30
    %v2369 = vpop.permute.xlu0 %2368
    %2370 = vrot.lane.b32.xlu0 %v2366, 30
    %v2371 = vpop.permute.xlu0 %2370
    %v2372 = vsel %vm2246, %v2369, %v2371
    %v2373 = vsel %vm2246, %v2371, %v2369
    %v2376 = vcombine.low %v2373, %v2372
    %v2378 = vsub.f32 %v2350, %v2376
    %v2379 = vmul.f32 %v2364, %v2364
    %v2381 = vcombine.high %v2379, %v2379
    %v2383 = vsel %vm115, %v2379, 0.0
    %v2384 = vrot.slane %v2383, 4
    %v2385 = vadd.f32 %v2383, %v2384
    %v2386 = vrot.slane %v2385, 2
    %v2387 = vadd.f32 %v2385, %v2386
    %v2388 = vrot.slane %v2387, 1
    %v2389 = vadd.f32 %v2387, %v2388
    %v2390 = vsel %vm115, %v2381, 0.0
    %v2391 = vrot.slane %v2390, 4
    %v2392 = vadd.f32 %v2390, %v2391
    %v2393 = vrot.slane %v2392, 2
    %v2394 = vadd.f32 %v2392, %v2393
    %v2395 = vrot.slane %v2394, 1
    %v2396 = vadd.f32 %v2394, %v2395
    %v2397 = vmul.f32 %v2389, -0.005
    %v2398 = vmul.f32 %v2396, -0.005
    %v2399 = vmul.f32 %v2397, 1.442695
    %v2400 = vpow.pop %v2399
    %v2401 = vmul.f32 %v2398, 1.442695
    %v2402 = vpow.pop %v2401
    %v2403 = vsel %vm2267, %v2400, 0.0
    %v2404 = vsel %vm2268, %v2402, 0.0
    %v2405 = vadd.f32 %v2325, %v2403
    %v2406 = vadd.f32 %v2326, %v2404
    %v2407 = vand.u32 2147483647, %v2378
    %v2409 = vcombine.high %v2407, %v2407
    %v2411 = vsel %vm115, %v2407, 0.0
    %v2412 = vrot.slane %v2411, 4
    %v2413 = vadd.f32 %v2411, %v2412
    %v2414 = vrot.slane %v2413, 2
    %v2415 = vadd.f32 %v2413, %v2414
    %v2416 = vrot.slane %v2415, 1
    %v2417 = vadd.f32 %v2415, %v2416
    %v2418 = vsel %vm115, %v2409, 0.0
    %v2419 = vrot.slane %v2418, 4
    %v2420 = vadd.f32 %v2418, %v2419
    %v2421 = vrot.slane %v2420, 2
    %v2422 = vadd.f32 %v2420, %v2421
    %v2423 = vrot.slane %v2422, 1
    %v2424 = vadd.f32 %v2422, %v2423
    %v2425 = vsel %vm2267, %v2417, 0.0
    %v2426 = vsel %vm2268, %v2424, 0.0
    %v2427 = vadd.f32 %v2347, %v2425
    %v2428 = vadd.f32 %v2348, %v2426
    %v2429 = vadd.f32 %v2405, %v2406
    %v2430 = vadd.f32 %v2427, %v2428
    %2431 = vst [vmem:[#allocation2 + $0xb] sm:$0x1] %v2429
    %2432 = vst [vmem:[#allocation2 + $0x17] sm:$0x1] %v2430
    // Predicated region
    $region18: #{tpu_custom_call.1} parent=1 // pred_check
      _
    $region19: #{tpu_custom_call.1} parent=1 // pred_check_branch
      %2434 = sbr.rel (0) target = $region21
    $region20: #{tpu_custom_call.1} parent=1 // pred_region
      %s2436 = ssub.s32 384, 384
      %2437 = vsyncadd [#allocation3], %s2436
      %s2438 = sshll.u32 [#allocation2], 4
      %s2439 = int_to_ptr.vmem [resolvable:$true] %s2438
      %2444 = dma.vmem_to_hbm [thread:$0]  %s2439, 384, %s4, [#allocation3], 128, 128, 8
    $region21: #{tpu_custom_call.1} parent=1 // pred_fallthru
      _
    // Predicated region
    $region22: #{tpu_custom_call.1} parent=1 // pred_check
      _
    $region23: #{tpu_custom_call.1} parent=1 // pred_check_branch
      %2446 = sbr.rel (0) target = $region25
    $region24: #{tpu_custom_call.1} parent=1 // pred_region
      %2447 = dma.done [#allocation3], 384
    $region25: #{tpu_custom_call.1} parent=1 // pred_fallthru
      _
    %2448 = vsyncpa [#allocation3], 1

</llo_original>
